<compile_context>
chip_gen: v6e
topology: v6e:2x2x1
jax: 0.10.0
libtpu: 0.0.40
codegen_flags: <defaults>
</compile_context>

<pallas_src>
import jax
import jax.numpy as jnp
from jax import lax
from jax.experimental import pallas as pl
from jax.experimental.pallas import tpu as pltpu

# ----------------------------- configuration --------------------------------
B = 2                  # batch
S = 8                  # sequence length
H = 128                # hidden size (BERT: 768; scaled down, lane-aligned)
NH = 2                 # attention heads
DH = H // NH           # head dim = 64
DH_PAD = 128           # per-head lane padding (all slices lane-aligned)
QKV_BLK = NH * DH_PAD  # 256: width of the padded Q / K / V blocks
FF = 4 * H             # FFN intermediate = 512
LAYERS = 2             # transformer layers (BERT: 12)
VOCAB = 100
MAXPOS = 32
LN_EPS = 1e-12         # BERT layer-norm epsilon
HEAD_PAD = 128         # lane-dense padding of the 1-wide regression head


# ----------------------------- Pallas kernel ---------------------------------
def _layer_kernel(
        emb_ref, mask_ref, embg_ref, embb_ref,
        wqkv_ref, bqkv_ref, wo_ref, bo_ref, ln1g_ref, ln1b_ref,
        w1_ref, b1_ref, w2_ref, b2_ref, ln2g_ref, ln2b_ref,
        linw_ref, linb_ref,
        out_ref,
        x_ref, ctx_ref):
    """One transformer layer per grid step; x carried in VMEM scratch."""
    layer = pl.program_id(0)

    def layer_norm(x, g, b):                       # f32 throughout
        mu = jnp.mean(x, axis=-1, keepdims=True)
        d = x - mu
        var = jnp.mean(d * d, axis=-1, keepdims=True)
        return d * lax.rsqrt(var + LN_EPS) * g + b

    def gelu(y):                                   # tanh-approx GELU (EUP)
        return 0.5 * y * (1.0 + jnp.tanh(
            0.7978845608028654 * (y + 0.044715 * y * y * y)))

    def dense(x_f32, w_bf16, b_f32):
        # bf16 operands on the MXU, f32 accumulation; bias epilogue fused.
        return jnp.dot(x_f32.astype(jnp.bfloat16), w_bf16,
                       preferred_element_type=jnp.float32) + b_f32

    scale = 1.0 / (DH ** 0.5)

    # ---- embedding LayerNorm only on the first grid step ----
    @pl.when(layer == 0)
    def _():
        x_ref[...] = layer_norm(emb_ref[...], embg_ref[...], embb_ref[...])

    x = x_ref[...]                                                 # [B*S, H]

    # fused Q|K|V projection (per-head columns padded to 128 lanes)
    qkv = dense(x, wqkv_ref[0], bqkv_ref[0])                       # [B*S, 3*QKV_BLK]

    # attention: statically unrolled per-(batch, head); all slices lane/sublane
    # aligned; per-head context stored straight into the ctx scratch.
    for b in range(B):
        r0 = b * S
        m = mask_ref[b]                                            # [1, S] additive
        for h in range(NH):
            c0 = h * DH_PAD
            q = qkv[r0:r0 + S, c0:c0 + DH_PAD]                     # [S, 128]
            k = qkv[r0:r0 + S, QKV_BLK + c0:QKV_BLK + c0 + DH_PAD]
            v = qkv[r0:r0 + S, 2 * QKV_BLK + c0:2 * QKV_BLK + c0 + DH_PAD]
            # K "transpose" folded into the contraction (no explicit k.T)
            s = lax.dot_general(q, k, (((1,), (1,)), ((), ())),
                                preferred_element_type=jnp.float32) * scale + m
            # max-subtraction kept: fully-masked rows stay finite
            s = s - jnp.max(s, axis=-1, keepdims=True)
            p = jnp.exp(s)
            p = p * pl.reciprocal(jnp.sum(p, axis=-1, keepdims=True), approx=True)
            ctx_ref[r0:r0 + S, c0:c0 + DH_PAD] = jnp.dot(
                p, v, preferred_element_type=jnp.float32)

    # output projection (padded-layout W_o) + residual + LayerNorm
    x = layer_norm(dense(ctx_ref[...], wo_ref[0], bo_ref[0]) + x,
                   ln1g_ref[0], ln1b_ref[0])

    # feed-forward: GELU + residual + LayerNorm; h1 never leaves VMEM
    h1 = gelu(dense(x, w1_ref[0], b1_ref[0]))                      # [B*S, FF]
    x = layer_norm(dense(h1, w2_ref[0], b2_ref[0]) + x,
                   ln2g_ref[0], ln2b_ref[0])

    x_ref[...] = x                                                 # carry to next layer

    # ---- regression head (128-lane padded) only on the last grid step ----
    @pl.when(layer == LAYERS - 1)
    def _():
        out_ref[...] = dense(x, linw_ref[...], linb_ref[...]).astype(out_ref.dtype)


# ----------------------------- parameters ------------------------------------
def init_params(key):
    def normal(k, shape, std=0.02):
        return std * jax.random.normal(k, shape, dtype=jnp.float32)

    def pad_head_cols(w):   # [H, H] -> [H, QKV_BLK]: per-head output columns -> 128 lanes
        w3 = w.reshape(H, NH, DH)
        w3 = jnp.pad(w3, ((0, 0), (0, 0), (0, DH_PAD - DH)))
        return w3.reshape(H, QKV_BLK)

    def pad_head_rows(w):   # [H, H] -> [QKV_BLK, H]: per-head input rows -> 128 lanes
        w3 = w.reshape(NH, DH, H)
        w3 = jnp.pad(w3, ((0, 0), (0, DH_PAD - DH), (0, 0)))
        return w3.reshape(QKV_BLK, H)

    keys = iter(jax.random.split(key, 64))
    p = {
        "word_emb": normal(next(keys), (VOCAB, H)),
        "pos_emb": normal(next(keys), (MAXPOS, H)),
        "type_emb": normal(next(keys), (2, H)),
        "emb_ln_g": jnp.ones((1, H), jnp.float32),
        "emb_ln_b": jnp.zeros((1, H), jnp.float32),
    }

    wqkv, bqkv, wo, bo = [], [], [], []
    ln1g, ln1b, w1, b1, w2, b2, ln2g, ln2b = [], [], [], [], [], [], [], []
    for _ in range(LAYERS):
        wq = pad_head_cols(normal(next(keys), (H, H)))
        wk = pad_head_cols(normal(next(keys), (H, H)))
        wv = pad_head_cols(normal(next(keys), (H, H)))
        wqkv.append(jnp.concatenate([wq, wk, wv], axis=1))          # [H, 3*QKV_BLK]
        bqkv.append(jnp.zeros((1, 3 * QKV_BLK), jnp.float32))
        wo.append(pad_head_rows(normal(next(keys), (H, H))))        # [QKV_BLK, H]
        bo.append(jnp.zeros((1, H), jnp.float32))
        ln1g.append(jnp.ones((1, H), jnp.float32))
        ln1b.append(jnp.zeros((1, H), jnp.float32))
        w1.append(normal(next(keys), (H, FF)))
        b1.append(jnp.zeros((1, FF), jnp.float32))
        w2.append(normal(next(keys), (FF, H)))
        b2.append(jnp.zeros((1, H), jnp.float32))
        ln2g.append(jnp.ones((1, H), jnp.float32))
        ln2b.append(jnp.zeros((1, H), jnp.float32))

    stack = lambda xs: jnp.stack(xs, axis=0)
    p.update({
        # matmul weights stored bf16 (f32 accumulation inside the kernel)
        "w_qkv": stack(wqkv).astype(jnp.bfloat16),   # [L, H, 3*QKV_BLK]
        "b_qkv": stack(bqkv),                        # [L, 1, 3*QKV_BLK]  f32
        "w_o":   stack(wo).astype(jnp.bfloat16),     # [L, QKV_BLK, H]
        "b_o":   stack(bo),
        "ln1_g": stack(ln1g), "ln1_b": stack(ln1b),
        "w_1":   stack(w1).astype(jnp.bfloat16),     # [L, H, FF]
        "b_1":   stack(b1),
        "w_2":   stack(w2).astype(jnp.bfloat16),     # [L, FF, H]
        "b_2":   stack(b2),
        "ln2_g": stack(ln2g), "ln2_b": stack(ln2b),
    })

    # regression head Linear(H -> 1), zero-padded to a lane-dense width
    lin_w = normal(next(keys), (H, 1))
    p["lin_w_pad"] = jnp.pad(lin_w, ((0, 0), (0, HEAD_PAD - 1))).astype(jnp.bfloat16)
    p["lin_b_pad"] = jnp.zeros((1, HEAD_PAD), jnp.float32)
    return p


# ----------------------------- forward pass -----------------------------------
def salary_predictor_forward(params, input_ids, attention_mask):
    # ---- embeddings (table gathers are glue in plain JAX) ----
    emb = (params["word_emb"][input_ids]                      # [B, S, H]
           + params["pos_emb"][jnp.arange(S)][None, :, :]
           + params["type_emb"][0][None, None, :]).reshape(B * S, H)

    # additive attention mask: 0 where attended, -1e9 where masked; [B, 1, S]
    mask_add = ((1.0 - attention_mask.astype(jnp.float32)) * -1e9).reshape(B, 1, S)

    # BlockSpec helpers: full-array blocks vs per-layer blocks of stacked weights
    full2 = lambda shape: pl.BlockSpec(shape, lambda l: (0, 0))
    full3 = lambda shape: pl.BlockSpec(shape, lambda l: (0, 0, 0))
    per_layer = lambda shape: pl.BlockSpec((1,) + shape, lambda l: (l, 0, 0))

    grid_spec = pltpu.PrefetchScalarGridSpec(
        num_scalar_prefetch=0,
        grid=(LAYERS,),
        in_specs=[
            full2((B * S, H)),            # emb
            full3((B, 1, S)),             # additive mask
            full2((1, H)), full2((1, H)),                         # emb LN g/b
            per_layer((H, 3 * QKV_BLK)), per_layer((1, 3 * QKV_BLK)),  # W_qkv, b_qkv
            per_layer((QKV_BLK, H)), per_layer((1, H)),                # W_o, b_o
            per_layer((1, H)), per_layer((1, H)),                      # LN1 g/b
            per_layer((H, FF)), per_layer((1, FF)),                    # W_1, b_1
            per_layer((FF, H)), per_layer((1, H)),                     # W_2, b_2
            per_layer((1, H)), per_layer((1, H)),                      # LN2 g/b
            full2((H, HEAD_PAD)), full2((1, HEAD_PAD)),                # head W, b
        ],
        out_specs=pl.BlockSpec((B * S, HEAD_PAD), lambda l: (0, 0)),
        scratch_shapes=[
            pltpu.VMEM((B * S, H), jnp.float32),          # carried activation x
            pltpu.VMEM((B * S, QKV_BLK), jnp.float32),    # per-head attention ctx
        ],
    )

    out_pad = pl.pallas_call(
        _layer_kernel,
        out_shape=jax.ShapeDtypeStruct((B * S, HEAD_PAD), jnp.float32),
        grid_spec=grid_spec,
        compiler_params=pltpu.CompilerParams(
            dimension_semantics=("arbitrary",)),
    )(emb, mask_add,
      params["emb_ln_g"], params["emb_ln_b"],
      params["w_qkv"], params["b_qkv"], params["w_o"], params["b_o"],
      params["ln1_g"], params["ln1_b"],
      params["w_1"], params["b_1"], params["w_2"], params["b_2"],
      params["ln2_g"], params["ln2_b"],
      params["lin_w_pad"], params["lin_b_pad"])

    # CLS token of each sequence (last_hidden_state[:, 0, :]) -> head column 0
    # Dropout(p=0.1) is identity in eval mode.
    return out_pad.reshape(B, S, HEAD_PAD)[:, 0, :1]          # [B, 1]


# ----------------------------- main -------------------------------------------
if __name__ == "__main__":
    key = jax.random.PRNGKey(0)
    pkey, ikey = jax.random.split(key)

    params = init_params(pkey)

    input_ids = jax.random.randint(ikey, (B, S), 0, VOCAB, dtype=jnp.int32)
    attention_mask = jnp.ones((B, S), dtype=jnp.int32)
    attention_mask = attention_mask.at[1, S - 2:].set(0)      # padded tail in batch 1

    fwd = jax.jit(salary_predictor_forward)
    out = fwd(params, input_ids, attention_mask)
    jax.block_until_ready(out)

    assert out.shape == (B, 1), out.shape
    assert jnp.all(jnp.isfinite(out))
    print("KERNEL_OK")
</pallas_src>

<mosaic_0001>
module attributes {stable_mosaic.version = 11 : i64} {
  func.func @_layer_kernel(%arg0: i32, %arg1: memref<16x128xf32, #tpu.memory_space<vmem>>, %arg2: memref<2x1x8xf32, #tpu.memory_space<vmem>>, %arg3: memref<1x128xf32, #tpu.memory_space<vmem>>, %arg4: memref<1x128xf32, #tpu.memory_space<vmem>>, %arg5: memref<1x128x768xbf16, #tpu.memory_space<vmem>>, %arg6: memref<1x1x768xf32, #tpu.memory_space<vmem>>, %arg7: memref<1x256x128xbf16, #tpu.memory_space<vmem>>, %arg8: memref<1x1x128xf32, #tpu.memory_space<vmem>>, %arg9: memref<1x1x128xf32, #tpu.memory_space<vmem>>, %arg10: memref<1x1x128xf32, #tpu.memory_space<vmem>>, %arg11: memref<1x128x512xbf16, #tpu.memory_space<vmem>>, %arg12: memref<1x1x512xf32, #tpu.memory_space<vmem>>, %arg13: memref<1x512x128xbf16, #tpu.memory_space<vmem>>, %arg14: memref<1x1x128xf32, #tpu.memory_space<vmem>>, %arg15: memref<1x1x128xf32, #tpu.memory_space<vmem>>, %arg16: memref<1x1x128xf32, #tpu.memory_space<vmem>>, %arg17: memref<128x128xbf16, #tpu.memory_space<vmem>>, %arg18: memref<1x128xf32, #tpu.memory_space<vmem>>, %arg19: memref<16x128xf32, #tpu.memory_space<vmem>>, %arg20: memref<16x128xf32, #tpu.memory_space<vmem>>, %arg21: memref<16x256xf32, #tpu.memory_space<vmem>>) attributes {dimension_semantics = [#tpu.dimension_semantics<arbitrary>], iteration_bounds = array<i64: 2>, scalar_prefetch = 0 : i64, scratch_operands = 2 : i64, tpu.core_type = #tpu.core_type<tc>, window_params = [{pipeline_mode = #tpu.pipeline_mode<synchronous>, transform_indices = @transform_0, window_bounds = array<i64: 16, 128>}, {pipeline_mode = #tpu.pipeline_mode<synchronous>, transform_indices = @transform_1, window_bounds = array<i64: 2, 1, 8>}, {pipeline_mode = #tpu.pipeline_mode<synchronous>, transform_indices = @transform_2, window_bounds = array<i64: 1, 128>}, {pipeline_mode = #tpu.pipeline_mode<synchronous>, transform_indices = @transform_3, window_bounds = array<i64: 1, 128>}, {transform_indices = @transform_4, window_bounds = array<i64: 1, 128, 768>}, {transform_indices = @transform_5, window_bounds = array<i64: 1, 1, 768>}, {transform_indices = @transform_6, window_bounds = array<i64: 1, 256, 128>}, {transform_indices = @transform_7, window_bounds = array<i64: 1, 1, 128>}, {transform_indices = @transform_8, window_bounds = array<i64: 1, 1, 128>}, {transform_indices = @transform_9, window_bounds = array<i64: 1, 1, 128>}, {transform_indices = @transform_10, window_bounds = array<i64: 1, 128, 512>}, {transform_indices = @transform_11, window_bounds = array<i64: 1, 1, 512>}, {transform_indices = @transform_12, window_bounds = array<i64: 1, 512, 128>}, {transform_indices = @transform_13, window_bounds = array<i64: 1, 1, 128>}, {transform_indices = @transform_14, window_bounds = array<i64: 1, 1, 128>}, {transform_indices = @transform_15, window_bounds = array<i64: 1, 1, 128>}, {pipeline_mode = #tpu.pipeline_mode<synchronous>, transform_indices = @transform_16, window_bounds = array<i64: 128, 128>}, {pipeline_mode = #tpu.pipeline_mode<synchronous>, transform_indices = @transform_17, window_bounds = array<i64: 1, 128>}, {pipeline_mode = #tpu.pipeline_mode<synchronous>, transform_indices = @transform_18, window_bounds = array<i64: 16, 128>}]} {
    %c0_i32 = arith.constant 0 : i32
    %0 = arith.cmpi eq, %arg0, %c0_i32 : i32
    %1 = arith.extui %0 : i1 to i32
    %c0_i32_0 = arith.constant 0 : i32
    %2 = arith.cmpi ne, %1, %c0_i32_0 : i32
    scf.if %2 {
      %c0_91 = arith.constant 0 : index
      %c0_92 = arith.constant 0 : index
      %188 = vector.load %arg1[%c0_91, %c0_92] : memref<16x128xf32, #tpu.memory_space<vmem>>, vector<16x128xf32>
      %c0_93 = arith.constant 0 : index
      %c0_94 = arith.constant 0 : index
      %189 = vector.load %arg3[%c0_93, %c0_94] : memref<1x128xf32, #tpu.memory_space<vmem>>, vector<1x128xf32>
      %c0_95 = arith.constant 0 : index
      %c0_96 = arith.constant 0 : index
      %190 = vector.load %arg4[%c0_95, %c0_96] : memref<1x128xf32, #tpu.memory_space<vmem>>, vector<1x128xf32>
      %cst_97 = arith.constant dense<0.000000e+00> : vector<16xf32>
      %191 = vector.multi_reduction <add>, %188, %cst_97 [1] : vector<16x128xf32> to vector<16xf32>
      %192 = vector.shape_cast %191 : vector<16xf32> to vector<16x1xf32>
      %cst_98 = arith.constant 1.280000e+02 : f32
      %193 = vector.broadcast %cst_98 : f32 to vector<16x1xf32>
      %194 = arith.divf %192, %193 : vector<16x1xf32>
      %195 = vector.broadcast %194 : vector<16x1xf32> to vector<16x128xf32>
      %196 = arith.subf %188, %195 : vector<16x128xf32>
      %197 = arith.mulf %196, %196 : vector<16x128xf32>
      %cst_99 = arith.constant dense<0.000000e+00> : vector<16xf32>
      %198 = vector.multi_reduction <add>, %197, %cst_99 [1] : vector<16x128xf32> to vector<16xf32>
      %199 = vector.shape_cast %198 : vector<16xf32> to vector<16x1xf32>
      %cst_100 = arith.constant 1.280000e+02 : f32
      %200 = vector.broadcast %cst_100 : f32 to vector<16x1xf32>
      %201 = arith.divf %199, %200 : vector<16x1xf32>
      %cst_101 = arith.constant 9.99999996E-13 : f32
      %202 = vector.broadcast %cst_101 : f32 to vector<16x1xf32>
      %203 = arith.addf %201, %202 : vector<16x1xf32>
      %204 = math.rsqrt %203 : vector<16x1xf32>
      %205 = vector.broadcast %204 : vector<16x1xf32> to vector<16x128xf32>
      %206 = arith.mulf %196, %205 : vector<16x128xf32>
      %207 = vector.broadcast %189 : vector<1x128xf32> to vector<16x128xf32>
      %208 = arith.mulf %206, %207 : vector<16x128xf32>
      %209 = vector.broadcast %190 : vector<1x128xf32> to vector<16x128xf32>
      %210 = arith.addf %208, %209 : vector<16x128xf32>
      %c0_102 = arith.constant 0 : index
      %c0_103 = arith.constant 0 : index
      %211 = vector.load %arg20[%c0_102, %c0_103] : memref<16x128xf32, #tpu.memory_space<vmem>>, vector<16x128xf32>
      tpu.vector_store %arg20[%c0_102, %c0_103], %210 {strides = array<i32>} : memref<16x128xf32, #tpu.memory_space<vmem>>, vector<16x128xf32>,
    } else {
    }
    %c0 = arith.constant 0 : index
    %c0_1 = arith.constant 0 : index
    %3 = vector.load %arg20[%c0, %c0_1] : memref<16x128xf32, #tpu.memory_space<vmem>>, vector<16x128xf32>
    %c0_2 = arith.constant 0 : index
    %c0_3 = arith.constant 0 : index
    %c0_4 = arith.constant 0 : index
    %4 = vector.load %arg5[%c0_2, %c0_3, %c0_4] : memref<1x128x768xbf16, #tpu.memory_space<vmem>>, vector<1x128x768xbf16>
    %5 = vector.shape_cast %4 : vector<1x128x768xbf16> to vector<128x768xbf16>
    %c0_5 = arith.constant 0 : index
    %c0_6 = arith.constant 0 : index
    %c0_7 = arith.constant 0 : index
    %6 = vector.load %arg6[%c0_5, %c0_6, %c0_7] : memref<1x1x768xf32, #tpu.memory_space<vmem>>, vector<1x1x768xf32>
    %7 = vector.shape_cast %6 : vector<1x1x768xf32> to vector<1x768xf32>
    %8 = arith.truncf %3 : vector<16x128xf32> to vector<16x128xbf16>
    %cst = arith.constant dense<0.000000e+00> : vector<16x768xf32>
    %9 = tpu.matmul %8, %5, %cst {dimension_numbers = #tpu.dot_dimension_numbers<[1], [0], [0], [1], [0, 0, 1, 1], [], []>} : vector<16x128xbf16>, vector<128x768xbf16>, vector<16x768xf32> -> vector<16x768xf32>
    %10 = vector.broadcast %7 : vector<1x768xf32> to vector<16x768xf32>
    %11 = arith.addf %9, %10 : vector<16x768xf32>
    %c0_8 = arith.constant 0 : index
    %c0_9 = arith.constant 0 : index
    %c0_10 = arith.constant 0 : index
    %12 = vector.load %arg2[%c0_8, %c0_9, %c0_10] : memref<2x1x8xf32, #tpu.memory_space<vmem>>, vector<1x1x8xf32>
    %13 = vector.shape_cast %12 : vector<1x1x8xf32> to vector<1x8xf32>
    %14 = vector.extract_strided_slice %11 {offsets = [0, 0], sizes = [8, 128], strides = [1, 1]} : vector<16x768xf32> to vector<8x128xf32>
    %15 = vector.extract_strided_slice %11 {offsets = [0, 256], sizes = [8, 128], strides = [1, 1]} : vector<16x768xf32> to vector<8x128xf32>
    %16 = vector.extract_strided_slice %11 {offsets = [0, 512], sizes = [8, 128], strides = [1, 1]} : vector<16x768xf32> to vector<8x128xf32>
    %cst_11 = arith.constant dense<0.000000e+00> : vector<8x8xf32>
    %17 = tpu.matmul %14, %15, %cst_11 {dimension_numbers = #tpu.dot_dimension_numbers<[1], [1], [0], [0], [0, 0, 1, 0], [], []>} : vector<8x128xf32>, vector<8x128xf32>, vector<8x8xf32> -> vector<8x8xf32>
    %cst_12 = arith.constant 1.250000e-01 : f32
    %18 = vector.broadcast %cst_12 : f32 to vector<8x8xf32>
    %19 = arith.mulf %17, %18 : vector<8x8xf32>
    %20 = vector.broadcast %13 : vector<1x8xf32> to vector<8x8xf32>
    %21 = arith.addf %19, %20 : vector<8x8xf32>
    %cst_13 = arith.constant dense<0xFF800000> : vector<8xf32>
    %22 = vector.multi_reduction <maximumf>, %21, %cst_13 [1] : vector<8x8xf32> to vector<8xf32>
    %23 = vector.shape_cast %22 : vector<8xf32> to vector<8x1xf32>
    %24 = vector.broadcast %23 : vector<8x1xf32> to vector<8x8xf32>
    %25 = arith.subf %21, %24 : vector<8x8xf32>
    %26 = math.exp %25 : vector<8x8xf32>
    %cst_14 = arith.constant dense<0.000000e+00> : vector<8xf32>
    %27 = vector.multi_reduction <add>, %26, %cst_14 [1] : vector<8x8xf32> to vector<8xf32>
    %28 = vector.shape_cast %27 : vector<8xf32> to vector<8x1xf32>
    %29 = tpu.reciprocal %28 {approx = true} : vector<8x1xf32> -> vector<8x1xf32>
    %30 = vector.broadcast %29 : vector<8x1xf32> to vector<8x8xf32>
    %31 = arith.mulf %26, %30 : vector<8x8xf32>
    %cst_15 = arith.constant dense<0.000000e+00> : vector<8x128xf32>
    %32 = tpu.matmul %31, %16, %cst_15 {dimension_numbers = #tpu.dot_dimension_numbers<[1], [0], [0], [1], [0, 0, 1, 1], [], []>} : vector<8x8xf32>, vector<8x128xf32>, vector<8x128xf32> -> vector<8x128xf32>
    %c0_16 = arith.constant 0 : index
    %c0_17 = arith.constant 0 : index
    %33 = vector.load %arg21[%c0_16, %c0_17] : memref<16x256xf32, #tpu.memory_space<vmem>>, vector<8x128xf32>
    tpu.vector_store %arg21[%c0_16, %c0_17], %32 {strides = array<i32>} : memref<16x256xf32, #tpu.memory_space<vmem>>, vector<8x128xf32>,
    %34 = vector.extract_strided_slice %11 {offsets = [0, 128], sizes = [8, 128], strides = [1, 1]} : vector<16x768xf32> to vector<8x128xf32>
    %35 = vector.extract_strided_slice %11 {offsets = [0, 384], sizes = [8, 128], strides = [1, 1]} : vector<16x768xf32> to vector<8x128xf32>
    %36 = vector.extract_strided_slice %11 {offsets = [0, 640], sizes = [8, 128], strides = [1, 1]} : vector<16x768xf32> to vector<8x128xf32>
    %cst_18 = arith.constant dense<0.000000e+00> : vector<8x8xf32>
    %37 = tpu.matmul %34, %35, %cst_18 {dimension_numbers = #tpu.dot_dimension_numbers<[1], [1], [0], [0], [0, 0, 1, 0], [], []>} : vector<8x128xf32>, vector<8x128xf32>, vector<8x8xf32> -> vector<8x8xf32>
    %cst_19 = arith.constant 1.250000e-01 : f32
    %38 = vector.broadcast %cst_19 : f32 to vector<8x8xf32>
    %39 = arith.mulf %37, %38 : vector<8x8xf32>
    %40 = vector.broadcast %13 : vector<1x8xf32> to vector<8x8xf32>
    %41 = arith.addf %39, %40 : vector<8x8xf32>
    %cst_20 = arith.constant dense<0xFF800000> : vector<8xf32>
    %42 = vector.multi_reduction <maximumf>, %41, %cst_20 [1] : vector<8x8xf32> to vector<8xf32>
    %43 = vector.shape_cast %42 : vector<8xf32> to vector<8x1xf32>
    %44 = vector.broadcast %43 : vector<8x1xf32> to vector<8x8xf32>
    %45 = arith.subf %41, %44 : vector<8x8xf32>
    %46 = math.exp %45 : vector<8x8xf32>
    %cst_21 = arith.constant dense<0.000000e+00> : vector<8xf32>
    %47 = vector.multi_reduction <add>, %46, %cst_21 [1] : vector<8x8xf32> to vector<8xf32>
    %48 = vector.shape_cast %47 : vector<8xf32> to vector<8x1xf32>
    %49 = tpu.reciprocal %48 {approx = true} : vector<8x1xf32> -> vector<8x1xf32>
    %50 = vector.broadcast %49 : vector<8x1xf32> to vector<8x8xf32>
    %51 = arith.mulf %46, %50 : vector<8x8xf32>
    %cst_22 = arith.constant dense<0.000000e+00> : vector<8x128xf32>
    %52 = tpu.matmul %51, %36, %cst_22 {dimension_numbers = #tpu.dot_dimension_numbers<[1], [0], [0], [1], [0, 0, 1, 1], [], []>} : vector<8x8xf32>, vector<8x128xf32>, vector<8x128xf32> -> vector<8x128xf32>
    %c0_23 = arith.constant 0 : index
    %c128 = arith.constant 128 : index
    %53 = vector.load %arg21[%c0_23, %c128] : memref<16x256xf32, #tpu.memory_space<vmem>>, vector<8x128xf32>
    tpu.vector_store %arg21[%c0_23, %c128], %52 {strides = array<i32>} : memref<16x256xf32, #tpu.memory_space<vmem>>, vector<8x128xf32>,
    %c1 = arith.constant 1 : index
    %c0_24 = arith.constant 0 : index
    %c0_25 = arith.constant 0 : index
    %54 = vector.load %arg2[%c1, %c0_24, %c0_25] : memref<2x1x8xf32, #tpu.memory_space<vmem>>, vector<1x1x8xf32>
    %55 = vector.shape_cast %54 : vector<1x1x8xf32> to vector<1x8xf32>
    %56 = vector.extract_strided_slice %11 {offsets = [8, 0], sizes = [8, 128], strides = [1, 1]} : vector<16x768xf32> to vector<8x128xf32>
    %57 = vector.extract_strided_slice %11 {offsets = [8, 256], sizes = [8, 128], strides = [1, 1]} : vector<16x768xf32> to vector<8x128xf32>
    %58 = vector.extract_strided_slice %11 {offsets = [8, 512], sizes = [8, 128], strides = [1, 1]} : vector<16x768xf32> to vector<8x128xf32>
    %cst_26 = arith.constant dense<0.000000e+00> : vector<8x8xf32>
    %59 = tpu.matmul %56, %57, %cst_26 {dimension_numbers = #tpu.dot_dimension_numbers<[1], [1], [0], [0], [0, 0, 1, 0], [], []>} : vector<8x128xf32>, vector<8x128xf32>, vector<8x8xf32> -> vector<8x8xf32>
    %cst_27 = arith.constant 1.250000e-01 : f32
    %60 = vector.broadcast %cst_27 : f32 to vector<8x8xf32>
    %61 = arith.mulf %59, %60 : vector<8x8xf32>
    %62 = vector.broadcast %55 : vector<1x8xf32> to vector<8x8xf32>
    %63 = arith.addf %61, %62 : vector<8x8xf32>
    %cst_28 = arith.constant dense<0xFF800000> : vector<8xf32>
    %64 = vector.multi_reduction <maximumf>, %63, %cst_28 [1] : vector<8x8xf32> to vector<8xf32>
    %65 = vector.shape_cast %64 : vector<8xf32> to vector<8x1xf32>
    %66 = vector.broadcast %65 : vector<8x1xf32> to vector<8x8xf32>
    %67 = arith.subf %63, %66 : vector<8x8xf32>
    %68 = math.exp %67 : vector<8x8xf32>
    %cst_29 = arith.constant dense<0.000000e+00> : vector<8xf32>
    %69 = vector.multi_reduction <add>, %68, %cst_29 [1] : vector<8x8xf32> to vector<8xf32>
    %70 = vector.shape_cast %69 : vector<8xf32> to vector<8x1xf32>
    %71 = tpu.reciprocal %70 {approx = true} : vector<8x1xf32> -> vector<8x1xf32>
    %72 = vector.broadcast %71 : vector<8x1xf32> to vector<8x8xf32>
    %73 = arith.mulf %68, %72 : vector<8x8xf32>
    %cst_30 = arith.constant dense<0.000000e+00> : vector<8x128xf32>
    %74 = tpu.matmul %73, %58, %cst_30 {dimension_numbers = #tpu.dot_dimension_numbers<[1], [0], [0], [1], [0, 0, 1, 1], [], []>} : vector<8x8xf32>, vector<8x128xf32>, vector<8x128xf32> -> vector<8x128xf32>
    %c8 = arith.constant 8 : index
    %c0_31 = arith.constant 0 : index
    %75 = vector.load %arg21[%c8, %c0_31] : memref<16x256xf32, #tpu.memory_space<vmem>>, vector<8x128xf32>
    tpu.vector_store %arg21[%c8, %c0_31], %74 {strides = array<i32>} : memref<16x256xf32, #tpu.memory_space<vmem>>, vector<8x128xf32>,
    %76 = vector.extract_strided_slice %11 {offsets = [8, 128], sizes = [8, 128], strides = [1, 1]} : vector<16x768xf32> to vector<8x128xf32>
    %77 = vector.extract_strided_slice %11 {offsets = [8, 384], sizes = [8, 128], strides = [1, 1]} : vector<16x768xf32> to vector<8x128xf32>
    %78 = vector.extract_strided_slice %11 {offsets = [8, 640], sizes = [8, 128], strides = [1, 1]} : vector<16x768xf32> to vector<8x128xf32>
    %cst_32 = arith.constant dense<0.000000e+00> : vector<8x8xf32>
    %79 = tpu.matmul %76, %77, %cst_32 {dimension_numbers = #tpu.dot_dimension_numbers<[1], [1], [0], [0], [0, 0, 1, 0], [], []>} : vector<8x128xf32>, vector<8x128xf32>, vector<8x8xf32> -> vector<8x8xf32>
    %cst_33 = arith.constant 1.250000e-01 : f32
    %80 = vector.broadcast %cst_33 : f32 to vector<8x8xf32>
    %81 = arith.mulf %79, %80 : vector<8x8xf32>
    %82 = vector.broadcast %55 : vector<1x8xf32> to vector<8x8xf32>
    %83 = arith.addf %81, %82 : vector<8x8xf32>
    %cst_34 = arith.constant dense<0xFF800000> : vector<8xf32>
    %84 = vector.multi_reduction <maximumf>, %83, %cst_34 [1] : vector<8x8xf32> to vector<8xf32>
    %85 = vector.shape_cast %84 : vector<8xf32> to vector<8x1xf32>
    %86 = vector.broadcast %85 : vector<8x1xf32> to vector<8x8xf32>
    %87 = arith.subf %83, %86 : vector<8x8xf32>
    %88 = math.exp %87 : vector<8x8xf32>
    %cst_35 = arith.constant dense<0.000000e+00> : vector<8xf32>
    %89 = vector.multi_reduction <add>, %88, %cst_35 [1] : vector<8x8xf32> to vector<8xf32>
    %90 = vector.shape_cast %89 : vector<8xf32> to vector<8x1xf32>
    %91 = tpu.reciprocal %90 {approx = true} : vector<8x1xf32> -> vector<8x1xf32>
    %92 = vector.broadcast %91 : vector<8x1xf32> to vector<8x8xf32>
    %93 = arith.mulf %88, %92 : vector<8x8xf32>
    %cst_36 = arith.constant dense<0.000000e+00> : vector<8x128xf32>
    %94 = tpu.matmul %93, %78, %cst_36 {dimension_numbers = #tpu.dot_dimension_numbers<[1], [0], [0], [1], [0, 0, 1, 1], [], []>} : vector<8x8xf32>, vector<8x128xf32>, vector<8x128xf32> -> vector<8x128xf32>
    %c8_37 = arith.constant 8 : index
    %c128_38 = arith.constant 128 : index
    %95 = vector.load %arg21[%c8_37, %c128_38] : memref<16x256xf32, #tpu.memory_space<vmem>>, vector<8x128xf32>
    tpu.vector_store %arg21[%c8_37, %c128_38], %94 {strides = array<i32>} : memref<16x256xf32, #tpu.memory_space<vmem>>, vector<8x128xf32>,
    %c0_39 = arith.constant 0 : index
    %c0_40 = arith.constant 0 : index
    %96 = vector.load %arg21[%c0_39, %c0_40] : memref<16x256xf32, #tpu.memory_space<vmem>>, vector<16x256xf32>
    %c0_41 = arith.constant 0 : index
    %c0_42 = arith.constant 0 : index
    %c0_43 = arith.constant 0 : index
    %97 = vector.load %arg7[%c0_41, %c0_42, %c0_43] : memref<1x256x128xbf16, #tpu.memory_space<vmem>>, vector<1x256x128xbf16>
    %98 = vector.shape_cast %97 : vector<1x256x128xbf16> to vector<256x128xbf16>
    %c0_44 = arith.constant 0 : index
    %c0_45 = arith.constant 0 : index
    %c0_46 = arith.constant 0 : index
    %99 = vector.load %arg8[%c0_44, %c0_45, %c0_46] : memref<1x1x128xf32, #tpu.memory_space<vmem>>, vector<1x1x128xf32>
    %100 = vector.shape_cast %99 : vector<1x1x128xf32> to vector<1x128xf32>
    %101 = arith.truncf %96 : vector<16x256xf32> to vector<16x256xbf16>
    %cst_47 = arith.constant dense<0.000000e+00> : vector<16x128xf32>
    %102 = tpu.matmul %101, %98, %cst_47 {dimension_numbers = #tpu.dot_dimension_numbers<[1], [0], [0], [1], [0, 0, 1, 1], [], []>} : vector<16x256xbf16>, vector<256x128xbf16>, vector<16x128xf32> -> vector<16x128xf32>
    %103 = vector.broadcast %100 : vector<1x128xf32> to vector<16x128xf32>
    %104 = arith.addf %102, %103 : vector<16x128xf32>
    %105 = arith.addf %104, %3 : vector<16x128xf32>
    %c0_48 = arith.constant 0 : index
    %c0_49 = arith.constant 0 : index
    %c0_50 = arith.constant 0 : index
    %106 = vector.load %arg9[%c0_48, %c0_49, %c0_50] : memref<1x1x128xf32, #tpu.memory_space<vmem>>, vector<1x1x128xf32>
    %107 = vector.shape_cast %106 : vector<1x1x128xf32> to vector<1x128xf32>
    %c0_51 = arith.constant 0 : index
    %c0_52 = arith.constant 0 : index
    %c0_53 = arith.constant 0 : index
    %108 = vector.load %arg10[%c0_51, %c0_52, %c0_53] : memref<1x1x128xf32, #tpu.memory_space<vmem>>, vector<1x1x128xf32>
    %109 = vector.shape_cast %108 : vector<1x1x128xf32> to vector<1x128xf32>
    %cst_54 = arith.constant dense<0.000000e+00> : vector<16xf32>
    %110 = vector.multi_reduction <add>, %105, %cst_54 [1] : vector<16x128xf32> to vector<16xf32>
    %111 = vector.shape_cast %110 : vector<16xf32> to vector<16x1xf32>
    %cst_55 = arith.constant 1.280000e+02 : f32
    %112 = vector.broadcast %cst_55 : f32 to vector<16x1xf32>
    %113 = arith.divf %111, %112 : vector<16x1xf32>
    %114 = vector.broadcast %113 : vector<16x1xf32> to vector<16x128xf32>
    %115 = arith.subf %105, %114 : vector<16x128xf32>
    %116 = arith.mulf %115, %115 : vector<16x128xf32>
    %cst_56 = arith.constant dense<0.000000e+00> : vector<16xf32>
    %117 = vector.multi_reduction <add>, %116, %cst_56 [1] : vector<16x128xf32> to vector<16xf32>
    %118 = vector.shape_cast %117 : vector<16xf32> to vector<16x1xf32>
    %cst_57 = arith.constant 1.280000e+02 : f32
    %119 = vector.broadcast %cst_57 : f32 to vector<16x1xf32>
    %120 = arith.divf %118, %119 : vector<16x1xf32>
    %cst_58 = arith.constant 9.99999996E-13 : f32
    %121 = vector.broadcast %cst_58 : f32 to vector<16x1xf32>
    %122 = arith.addf %120, %121 : vector<16x1xf32>
    %123 = math.rsqrt %122 : vector<16x1xf32>
    %124 = vector.broadcast %123 : vector<16x1xf32> to vector<16x128xf32>
    %125 = arith.mulf %115, %124 : vector<16x128xf32>
    %126 = vector.broadcast %107 : vector<1x128xf32> to vector<16x128xf32>
    %127 = arith.mulf %125, %126 : vector<16x128xf32>
    %128 = vector.broadcast %109 : vector<1x128xf32> to vector<16x128xf32>
    %129 = arith.addf %127, %128 : vector<16x128xf32>
    %c0_59 = arith.constant 0 : index
    %c0_60 = arith.constant 0 : index
    %c0_61 = arith.constant 0 : index
    %130 = vector.load %arg11[%c0_59, %c0_60, %c0_61] : memref<1x128x512xbf16, #tpu.memory_space<vmem>>, vector<1x128x512xbf16>
    %131 = vector.shape_cast %130 : vector<1x128x512xbf16> to vector<128x512xbf16>
    %c0_62 = arith.constant 0 : index
    %c0_63 = arith.constant 0 : index
    %c0_64 = arith.constant 0 : index
    %132 = vector.load %arg12[%c0_62, %c0_63, %c0_64] : memref<1x1x512xf32, #tpu.memory_space<vmem>>, vector<1x1x512xf32>
    %133 = vector.shape_cast %132 : vector<1x1x512xf32> to vector<1x512xf32>
    %134 = arith.truncf %129 : vector<16x128xf32> to vector<16x128xbf16>
    %cst_65 = arith.constant dense<0.000000e+00> : vector<16x512xf32>
    %135 = tpu.matmul %134, %131, %cst_65 {dimension_numbers = #tpu.dot_dimension_numbers<[1], [0], [0], [1], [0, 0, 1, 1], [], []>} : vector<16x128xbf16>, vector<128x512xbf16>, vector<16x512xf32> -> vector<16x512xf32>
    %136 = vector.broadcast %133 : vector<1x512xf32> to vector<16x512xf32>
    %137 = arith.addf %135, %136 : vector<16x512xf32>
    %cst_66 = arith.constant 5.000000e-01 : f32
    %138 = vector.broadcast %cst_66 : f32 to vector<16x512xf32>
    %139 = arith.mulf %138, %137 : vector<16x512xf32>
    %cst_67 = arith.constant 4.471500e-02 : f32
    %140 = vector.broadcast %cst_67 : f32 to vector<16x512xf32>
    %141 = arith.mulf %140, %137 : vector<16x512xf32>
    %142 = arith.mulf %141, %137 : vector<16x512xf32>
    %143 = arith.mulf %142, %137 : vector<16x512xf32>
    %144 = arith.addf %137, %143 : vector<16x512xf32>
    %cst_68 = arith.constant 0.797884583 : f32
    %145 = vector.broadcast %cst_68 : f32 to vector<16x512xf32>
    %146 = arith.mulf %145, %144 : vector<16x512xf32>
    %147 = math.tanh %146 : vector<16x512xf32>
    %cst_69 = arith.constant 1.000000e+00 : f32
    %148 = vector.broadcast %cst_69 : f32 to vector<16x512xf32>
    %149 = arith.addf %148, %147 : vector<16x512xf32>
    %150 = arith.mulf %139, %149 : vector<16x512xf32>
    %c0_70 = arith.constant 0 : index
    %c0_71 = arith.constant 0 : index
    %c0_72 = arith.constant 0 : index
    %151 = vector.load %arg13[%c0_70, %c0_71, %c0_72] : memref<1x512x128xbf16, #tpu.memory_space<vmem>>, vector<1x512x128xbf16>
    %152 = vector.shape_cast %151 : vector<1x512x128xbf16> to vector<512x128xbf16>
    %c0_73 = arith.constant 0 : index
    %c0_74 = arith.constant 0 : index
    %c0_75 = arith.constant 0 : index
    %153 = vector.load %arg14[%c0_73, %c0_74, %c0_75] : memref<1x1x128xf32, #tpu.memory_space<vmem>>, vector<1x1x128xf32>
    %154 = vector.shape_cast %153 : vector<1x1x128xf32> to vector<1x128xf32>
    %155 = arith.truncf %150 : vector<16x512xf32> to vector<16x512xbf16>
    %cst_76 = arith.constant dense<0.000000e+00> : vector<16x128xf32>
    %156 = tpu.matmul %155, %152, %cst_76 {dimension_numbers = #tpu.dot_dimension_numbers<[1], [0], [0], [1], [0, 0, 1, 1], [], []>} : vector<16x512xbf16>, vector<512x128xbf16>, vector<16x128xf32> -> vector<16x128xf32>
    %157 = vector.broadcast %154 : vector<1x128xf32> to vector<16x128xf32>
    %158 = arith.addf %156, %157 : vector<16x128xf32>
    %159 = arith.addf %158, %129 : vector<16x128xf32>
    %c0_77 = arith.constant 0 : index
    %c0_78 = arith.constant 0 : index
    %c0_79 = arith.constant 0 : index
    %160 = vector.load %arg15[%c0_77, %c0_78, %c0_79] : memref<1x1x128xf32, #tpu.memory_space<vmem>>, vector<1x1x128xf32>
    %161 = vector.shape_cast %160 : vector<1x1x128xf32> to vector<1x128xf32>
    %c0_80 = arith.constant 0 : index
    %c0_81 = arith.constant 0 : index
    %c0_82 = arith.constant 0 : index
    %162 = vector.load %arg16[%c0_80, %c0_81, %c0_82] : memref<1x1x128xf32, #tpu.memory_space<vmem>>, vector<1x1x128xf32>
    %163 = vector.shape_cast %162 : vector<1x1x128xf32> to vector<1x128xf32>
    %cst_83 = arith.constant dense<0.000000e+00> : vector<16xf32>
    %164 = vector.multi_reduction <add>, %159, %cst_83 [1] : vector<16x128xf32> to vector<16xf32>
    %165 = vector.shape_cast %164 : vector<16xf32> to vector<16x1xf32>
    %cst_84 = arith.constant 1.280000e+02 : f32
    %166 = vector.broadcast %cst_84 : f32 to vector<16x1xf32>
    %167 = arith.divf %165, %166 : vector<16x1xf32>
    %168 = vector.broadcast %167 : vector<16x1xf32> to vector<16x128xf32>
    %169 = arith.subf %159, %168 : vector<16x128xf32>
    %170 = arith.mulf %169, %169 : vector<16x128xf32>
    %cst_85 = arith.constant dense<0.000000e+00> : vector<16xf32>
    %171 = vector.multi_reduction <add>, %170, %cst_85 [1] : vector<16x128xf32> to vector<16xf32>
    %172 = vector.shape_cast %171 : vector<16xf32> to vector<16x1xf32>
    %cst_86 = arith.constant 1.280000e+02 : f32
    %173 = vector.broadcast %cst_86 : f32 to vector<16x1xf32>
    %174 = arith.divf %172, %173 : vector<16x1xf32>
    %cst_87 = arith.constant 9.99999996E-13 : f32
    %175 = vector.broadcast %cst_87 : f32 to vector<16x1xf32>
    %176 = arith.addf %174, %175 : vector<16x1xf32>
    %177 = math.rsqrt %176 : vector<16x1xf32>
    %178 = vector.broadcast %177 : vector<16x1xf32> to vector<16x128xf32>
    %179 = arith.mulf %169, %178 : vector<16x128xf32>
    %180 = vector.broadcast %161 : vector<1x128xf32> to vector<16x128xf32>
    %181 = arith.mulf %179, %180 : vector<16x128xf32>
    %182 = vector.broadcast %163 : vector<1x128xf32> to vector<16x128xf32>
    %183 = arith.addf %181, %182 : vector<16x128xf32>
    %c0_88 = arith.constant 0 : index
    %c0_89 = arith.constant 0 : index
    %184 = vector.load %arg20[%c0_88, %c0_89] : memref<16x128xf32, #tpu.memory_space<vmem>>, vector<16x128xf32>
    tpu.vector_store %arg20[%c0_88, %c0_89], %183 {strides = array<i32>} : memref<16x128xf32, #tpu.memory_space<vmem>>, vector<16x128xf32>,
    %c1_i32 = arith.constant 1 : i32
    %185 = arith.cmpi eq, %arg0, %c1_i32 : i32
    %186 = arith.extui %185 : i1 to i32
    %c0_i32_90 = arith.constant 0 : i32
    %187 = arith.cmpi ne, %186, %c0_i32_90 : i32
    scf.if %187 {
      %c0_91 = arith.constant 0 : index
      %c0_92 = arith.constant 0 : index
      %188 = vector.load %arg17[%c0_91, %c0_92] : memref<128x128xbf16, #tpu.memory_space<vmem>>, vector<128x128xbf16>
      %c0_93 = arith.constant 0 : index
      %c0_94 = arith.constant 0 : index
      %189 = vector.load %arg18[%c0_93, %c0_94] : memref<1x128xf32, #tpu.memory_space<vmem>>, vector<1x128xf32>
      %190 = arith.truncf %183 : vector<16x128xf32> to vector<16x128xbf16>
      %cst_95 = arith.constant dense<0.000000e+00> : vector<16x128xf32>
      %191 = tpu.matmul %190, %188, %cst_95 {dimension_numbers = #tpu.dot_dimension_numbers<[1], [0], [0], [1], [0, 0, 1, 1], [], []>} : vector<16x128xbf16>, vector<128x128xbf16>, vector<16x128xf32> -> vector<16x128xf32>
      %192 = vector.broadcast %189 : vector<1x128xf32> to vector<16x128xf32>
      %193 = arith.addf %191, %192 : vector<16x128xf32>
      %c0_96 = arith.constant 0 : index
      %c0_97 = arith.constant 0 : index
      %194 = vector.load %arg19[%c0_96, %c0_97] : memref<16x128xf32, #tpu.memory_space<vmem>>, vector<16x128xf32>
      tpu.vector_store %arg19[%c0_96, %c0_97], %193 {strides = array<i32>} : memref<16x128xf32, #tpu.memory_space<vmem>>, vector<16x128xf32>,
    } else {
    }
    return
  }
  func.func @transform_0(%arg0: i32) -> (i32, i32) {
    %c0_i32 = arith.constant 0 : i32
    %c0_i32_0 = arith.constant 0 : i32
    %c0_i32_1 = arith.constant 0 : i32
    return %c0_i32, %c0_i32_0 : i32, i32
  }
  func.func @transform_1(%arg0: i32) -> (i32, i32, i32) {
    %c0_i32 = arith.constant 0 : i32
    %c0_i32_0 = arith.constant 0 : i32
    %c0_i32_1 = arith.constant 0 : i32
    %c0_i32_2 = arith.constant 0 : i32
    return %c0_i32, %c0_i32_0, %c0_i32_1 : i32, i32, i32
  }
  func.func @transform_2(%arg0: i32) -> (i32, i32) {
    %c0_i32 = arith.constant 0 : i32
    %c0_i32_0 = arith.constant 0 : i32
    %c0_i32_1 = arith.constant 0 : i32
    return %c0_i32, %c0_i32_0 : i32, i32
  }
  func.func @transform_3(%arg0: i32) -> (i32, i32) {
    %c0_i32 = arith.constant 0 : i32
    %c0_i32_0 = arith.constant 0 : i32
    %c0_i32_1 = arith.constant 0 : i32
    return %c0_i32, %c0_i32_0 : i32, i32
  }
  func.func @transform_4(%arg0: i32) -> (i32, i32, i32) {
    %c0_i32 = arith.constant 0 : i32
    %c0_i32_0 = arith.constant 0 : i32
    %c0_i32_1 = arith.constant 0 : i32
    return %arg0, %c0_i32, %c0_i32_0 : i32, i32, i32
  }
  func.func @transform_5(%arg0: i32) -> (i32, i32, i32) {
    %c0_i32 = arith.constant 0 : i32
    %c0_i32_0 = arith.constant 0 : i32
    %c0_i32_1 = arith.constant 0 : i32
    return %arg0, %c0_i32, %c0_i32_0 : i32, i32, i32
  }
  func.func @transform_6(%arg0: i32) -> (i32, i32, i32) {
    %c0_i32 = arith.constant 0 : i32
    %c0_i32_0 = arith.constant 0 : i32
    %c0_i32_1 = arith.constant 0 : i32
    return %arg0, %c0_i32, %c0_i32_0 : i32, i32, i32
  }
  func.func @transform_7(%arg0: i32) -> (i32, i32, i32) {
    %c0_i32 = arith.constant 0 : i32
    %c0_i32_0 = arith.constant 0 : i32
    %c0_i32_1 = arith.constant 0 : i32
    return %arg0, %c0_i32, %c0_i32_0 : i32, i32, i32
  }
  func.func @transform_8(%arg0: i32) -> (i32, i32, i32) {
    %c0_i32 = arith.constant 0 : i32
    %c0_i32_0 = arith.constant 0 : i32
    %c0_i32_1 = arith.constant 0 : i32
    return %arg0, %c0_i32, %c0_i32_0 : i32, i32, i32
  }
  func.func @transform_9(%arg0: i32) -> (i32, i32, i32) {
    %c0_i32 = arith.constant 0 : i32
    %c0_i32_0 = arith.constant 0 : i32
    %c0_i32_1 = arith.constant 0 : i32
    return %arg0, %c0_i32, %c0_i32_0 : i32, i32, i32
  }
  func.func @transform_10(%arg0: i32) -> (i32, i32, i32) {
    %c0_i32 = arith.constant 0 : i32
    %c0_i32_0 = arith.constant 0 : i32
    %c0_i32_1 = arith.constant 0 : i32
    return %arg0, %c0_i32, %c0_i32_0 : i32, i32, i32
  }
  func.func @transform_11(%arg0: i32) -> (i32, i32, i32) {
    %c0_i32 = arith.constant 0 : i32
    %c0_i32_0 = arith.constant 0 : i32
    %c0_i32_1 = arith.constant 0 : i32
    return %arg0, %c0_i32, %c0_i32_0 : i32, i32, i32
  }
  func.func @transform_12(%arg0: i32) -> (i32, i32, i32) {
    %c0_i32 = arith.constant 0 : i32
    %c0_i32_0 = arith.constant 0 : i32
    %c0_i32_1 = arith.constant 0 : i32
    return %arg0, %c0_i32, %c0_i32_0 : i32, i32, i32
  }
  func.func @transform_13(%arg0: i32) -> (i32, i32, i32) {
    %c0_i32 = arith.constant 0 : i32
    %c0_i32_0 = arith.constant 0 : i32
    %c0_i32_1 = arith.constant 0 : i32
    return %arg0, %c0_i32, %c0_i32_0 : i32, i32, i32
  }
  func.func @transform_14(%arg0: i32) -> (i32, i32, i32) {
    %c0_i32 = arith.constant 0 : i32
    %c0_i32_0 = arith.constant 0 : i32
    %c0_i32_1 = arith.constant 0 : i32
    return %arg0, %c0_i32, %c0_i32_0 : i32, i32, i32
  }
  func.func @transform_15(%arg0: i32) -> (i32, i32, i32) {
    %c0_i32 = arith.constant 0 : i32
    %c0_i32_0 = arith.constant 0 : i32
    %c0_i32_1 = arith.constant 0 : i32
    return %arg0, %c0_i32, %c0_i32_0 : i32, i32, i32
  }
  func.func @transform_16(%arg0: i32) -> (i32, i32) {
    %c0_i32 = arith.constant 0 : i32
    %c0_i32_0 = arith.constant 0 : i32
    %c0_i32_1 = arith.constant 0 : i32
    return %c0_i32, %c0_i32_0 : i32, i32
  }
  func.func @transform_17(%arg0: i32) -> (i32, i32) {
    %c0_i32 = arith.constant 0 : i32
    %c0_i32_0 = arith.constant 0 : i32
    %c0_i32_1 = arith.constant 0 : i32
    return %c0_i32, %c0_i32_0 : i32, i32
  }
  func.func @transform_18(%arg0: i32) -> (i32, i32) {
    %c0_i32 = arith.constant 0 : i32
    %c0_i32_0 = arith.constant 0 : i32
    %c0_i32_1 = arith.constant 0 : i32
    return %c0_i32, %c0_i32_0 : i32, i32
  }
}

</mosaic_0001>

<llo_original>
// kernel: salary_predictor_forward.1
$region0: #{salary_predictor_forward.1}
  #allocation0 [shape = 'u32[]', space=smem, size = 0x4, offset = 0x4, fixed_abs, tag = 'smem constant byte address 0x4 - core index']
  #allocation1 [shape = 'u32[144,128]{1,0:T(1,128)}', space=vmem, size = 0x12000, scoped, tag = 'internal scratch']
  #allocation2 [shape = 'f32[16,128]{1,0:T(8,128)}', space=vmem, size = 0x2000, scoped, tag = 'scratch operand']
  #allocation3 [shape = 'f32[16,256]{1,0:T(8,128)}', space=vmem, size = 0x4000, scoped, tag = 'scratch operand']
  %s0 = inlined_call_operand.vmem [shape: f32[16,128], index: 0, kind: input, shape index: {}]
  %s1 = inlined_call_operand.vmem [shape: f32[2,1,8], index: 1, kind: input, shape index: {}]
  %s2 = inlined_call_operand.hbm [shape: f32[1,128], index: 2, kind: input, shape index: {}]
  %s3 = inlined_call_operand.hbm [shape: f32[1,128], index: 3, kind: input, shape index: {}]
  %s4 = inlined_call_operand.hbm [shape: bf16[2,128,768], index: 4, kind: input, shape index: {}]
  %s5 = inlined_call_operand.vmem [shape: f32[2,1,768], index: 5, kind: input, shape index: {}]
  %s6 = inlined_call_operand.vmem [shape: bf16[2,256,128], index: 6, kind: input, shape index: {}]
  %s7 = inlined_call_operand.vmem [shape: f32[2,1,128], index: 7, kind: input, shape index: {}]
  %s8 = inlined_call_operand.hbm [shape: f32[2,1,128], index: 8, kind: input, shape index: {}]
  %s9 = inlined_call_operand.hbm [shape: f32[2,1,128], index: 9, kind: input, shape index: {}]
  %s10 = inlined_call_operand.hbm [shape: bf16[2,128,512], index: 10, kind: input, shape index: {}]
  %s11 = inlined_call_operand.vmem [shape: f32[2,1,512], index: 11, kind: input, shape index: {}]
  %s12 = inlined_call_operand.hbm [shape: bf16[2,512,128], index: 12, kind: input, shape index: {}]
  %s13 = inlined_call_operand.vmem [shape: f32[2,1,128], index: 13, kind: input, shape index: {}]
  %s14 = inlined_call_operand.hbm [shape: f32[2,1,128], index: 14, kind: input, shape index: {}]
  %s15 = inlined_call_operand.hbm [shape: f32[2,1,128], index: 15, kind: input, shape index: {}]
  %s16 = inlined_call_operand.hbm [shape: bf16[128,128], index: 16, kind: input, shape index: {}]
  %s17 = inlined_call_operand.hbm [shape: f32[1,128], index: 17, kind: input, shape index: {}]
  %s18 = inlined_call_operand.vmem [shape: f32[16,128], index: 18, kind: output, shape index: {}]
  %s19 = sld [smem:[#allocation0]]
  $region157: #{salary_predictor_forward.1} parent=0
    _
  %s21 = ssub.s32 1, %s19
  %s22 = scalar_select 0, %s21, %s19
  $region1: #{salary_predictor_forward.1} parent=0
    #allocation4 [shape = 'u8[512]{0}', space=vmem, size = 0x400, scoped, tag = 'input window, operand 2, single buffered']
    #allocation5 [shape = 's32[2]{0}', space=sflag, size = 0x8, scoped, tag = 'scoped memory for salary_predictor_forward.1']
    #allocation6 [shape = 'u8[512]{0}', space=vmem, size = 0x400, scoped, tag = 'input window, operand 3, single buffered']
    #allocation7 [shape = 's32[1]{0}', space=sflag, size = 0x4, scoped, tag = 'scoped memory for salary_predictor_forward.1']
    #allocation8 [shape = 'u8[393216]{0}', space=vmem, size = 0x60000, scoped, tag = 'input window, operand 4']
    #allocation9 [shape = 'u8[1024]{0}', space=vmem, size = 0x400, scoped, tag = 'input window, operand 8']
    #allocation10 [shape = 'u8[1024]{0}', space=vmem, size = 0x400, scoped, tag = 'input window, operand 9']
    #allocation11 [shape = 'u8[262144]{0}', space=vmem, size = 0x40000, scoped, tag = 'input window, operand 10']
    #allocation12 [shape = 'u8[262144]{0}', space=vmem, size = 0x40000, scoped, tag = 'input window, operand 12']
    #allocation13 [shape = 'u8[1024]{0}', space=vmem, size = 0x400, scoped, tag = 'input window, operand 14']
    #allocation14 [shape = 'u8[1024]{0}', space=vmem, size = 0x400, scoped, tag = 'input window, operand 15']
    #allocation15 [shape = 'u8[32768]{0}', space=vmem, size = 0x8000, scoped, tag = 'input window, operand 16, single buffered']
    #allocation16 [shape = 'u8[512]{0}', space=vmem, size = 0x400, scoped, tag = 'input window, operand 17, single buffered']
    #allocation17 [shape = 's32[1]{0}', space=sflag, size = 0x4, scoped, tag = 'scoped memory for salary_predictor_forward.1']
    %23 = vsyncpa [#allocation5], 0
    %24 = vsyncpa [#allocation7], 0
    %25 = vsyncpa [#allocation17], 0
    loop: start=0, step=1, limit=4
    $region2: #{salary_predictor_forward.1} parent=1 // loop_pre_header
      _
    $region3: #{salary_predictor_forward.1} parent=1 // loop_header
      %s27 = sphi 0, %s31
      %p28 = scmp.ge.s32.totalorder %s27, 4
      %s35 = sphi 0, %s35
      %s37 = sphi 0, %s35
      %s38 = sphi 0, %s37
      %s52 = sphi 0, %s38
      %s56 = sphi 0, %s56
      %s58 = sphi 0, %s56
      %s59 = sphi 0, %s58
      %s73 = sphi 0, %s59
      %s77 = sphi 0, %s77
      %s79 = sphi 0, %s77
      %s80 = sphi 0, %s79
      %s94 = sphi 0, %s80
      %s98 = sphi 0, %s98
      %s100 = sphi 0, %s98
      %s101 = sphi 0, %s100
      %s115 = sphi 0, %s101
      %s121 = sphi 0, %s123
      %s124 = sphi 0, %s121
      %s125 = sphi 0, %s124
      %s141 = sphi 0, %s125
      %s147 = sphi 0, %s149
      %s150 = sphi 0, %s147
      %s151 = sphi 0, %s150
      %s167 = sphi 0, %s151
      %s173 = sphi 0, %s175
      %s176 = sphi 0, %s173
      %s177 = sphi 0, %s176
      %s193 = sphi 0, %s177
      %s199 = sphi 0, %s201
      %s202 = sphi 0, %s199
      %s203 = sphi 0, %s202
      %s219 = sphi 0, %s203
      %s225 = sphi 0, %s227
      %s228 = sphi 0, %s225
      %s229 = sphi 0, %s228
      %s245 = sphi 0, %s229
      %s251 = sphi 0, %s253
      %s254 = sphi 0, %s251
      %s255 = sphi 0, %s254
      %s271 = sphi 0, %s255
      %s277 = sphi 0, %s279
      %s280 = sphi 0, %s277
      %s281 = sphi 0, %s280
      %s297 = sphi 0, %s281
      %s303 = sphi 0, %s305
      %s306 = sphi 0, %s303
      %s307 = sphi 0, %s306
      %s323 = sphi 0, %s307
      %s329 = sphi 0, %s331
      %s332 = sphi 0, %s329
      %s333 = sphi 0, %s332
      %s349 = sphi 0, %s333
      %s355 = sphi 0, %s357
      %s358 = sphi 0, %s355
      %s359 = sphi 0, %s358
      %s375 = sphi 0, %s359
      %s381 = sphi 0, %s383
      %s384 = sphi 0, %s381
      %s385 = sphi 0, %s384
      %s401 = sphi 0, %s385
      %s407 = sphi 0, %s409
      %s410 = sphi 0, %s407
      %s411 = sphi 0, %s410
      %s427 = sphi 0, %s411
      %s431 = sphi 0, %s431
      %s433 = sphi 0, %s431
      %s434 = sphi 0, %s433
      %s448 = sphi 0, %s434
      %s452 = sphi 0, %s452
      %s454 = sphi 0, %s452
      %s455 = sphi 0, %s454
      %s469 = sphi 0, %s455
      %s473 = sphi 0, %s473
      %s475 = sphi 0, %s473
      %s476 = sphi 0, %s475
      %s490 = sphi 0, %s476
    $region4: #{salary_predictor_forward.1} parent=1 // loop_header_branch
      %30 = sbr.rel (%p28) target = $region8
    $region5: #{salary_predictor_forward.1} parent=1 // loop_body
      %s32 = ssub.s32 %s27, 1
      %s33 = ssub.s32 %s27, 2
      %s34 = sadd.s32 %s27, 1
      %s36 = sadd.s32 %s35, 1
      %p39 = scmp.eq.s32.totalorder %s27, 1
      %p40 = scmp.ne.s32.totalorder %s35, %s37
      %p41 = scmp.eq.s32.totalorder %s27, 0
      %p42 = por %p40, %p41
      %p43 = scmp.ne.s32.totalorder %s35, %s37
      %p44 = scmp.eq.s32.totalorder %s32, 1
      %p45 = por %p43, %p44
      %p46 = scmp.ne.s32.totalorder %s37, %s38
      %p47 = scmp.eq.s32.totalorder %s32, 0
      %p48 = por %p46, %p47
      %p49 = scmp.ne.s32.totalorder %s37, %s38
      %p50 = scmp.eq.s32.totalorder %s33, 1
      %p51 = por %p49, %p50
      %p53 = scmp.ne.s32.totalorder %s38, %s52
      %p54 = scmp.eq.s32.totalorder %s33, 0
      %p55 = por %p53, %p54
      %s57 = sadd.s32 %s56, 1
      %p60 = scmp.eq.s32.totalorder %s27, 1
      %p61 = scmp.ne.s32.totalorder %s56, %s58
      %p62 = scmp.eq.s32.totalorder %s27, 0
      %p63 = por %p61, %p62
      %p64 = scmp.ne.s32.totalorder %s56, %s58
      %p65 = scmp.eq.s32.totalorder %s32, 1
      %p66 = por %p64, %p65
      %p67 = scmp.ne.s32.totalorder %s58, %s59
      %p68 = scmp.eq.s32.totalorder %s32, 0
      %p69 = por %p67, %p68
      %p70 = scmp.ne.s32.totalorder %s58, %s59
      %p71 = scmp.eq.s32.totalorder %s33, 1
      %p72 = por %p70, %p71
      %p74 = scmp.ne.s32.totalorder %s59, %s73
      %p75 = scmp.eq.s32.totalorder %s33, 0
      %p76 = por %p74, %p75
      %s78 = sadd.s32 %s77, 1
      %p81 = scmp.eq.s32.totalorder %s27, 1
      %p82 = scmp.ne.s32.totalorder %s77, %s79
      %p83 = scmp.eq.s32.totalorder %s27, 0
      %p84 = por %p82, %p83
      %p85 = scmp.ne.s32.totalorder %s77, %s79
      %p86 = scmp.eq.s32.totalorder %s32, 1
      %p87 = por %p85, %p86
      %p88 = scmp.ne.s32.totalorder %s79, %s80
      %p89 = scmp.eq.s32.totalorder %s32, 0
      %p90 = por %p88, %p89
      %p91 = scmp.ne.s32.totalorder %s79, %s80
      %p92 = scmp.eq.s32.totalorder %s33, 1
      %p93 = por %p91, %p92
      %p95 = scmp.ne.s32.totalorder %s80, %s94
      %p96 = scmp.eq.s32.totalorder %s33, 0
      %p97 = por %p95, %p96
      %s99 = sadd.s32 %s98, 1
      %p102 = scmp.eq.s32.totalorder %s27, 1
      %p103 = scmp.ne.s32.totalorder %s98, %s100
      %p104 = scmp.eq.s32.totalorder %s27, 0
      %p105 = por %p103, %p104
      %p106 = scmp.ne.s32.totalorder %s98, %s100
      %p107 = scmp.eq.s32.totalorder %s32, 1
      %p108 = por %p106, %p107
      %p109 = scmp.ne.s32.totalorder %s100, %s101
      %p110 = scmp.eq.s32.totalorder %s32, 0
      %p111 = por %p109, %p110
      %p112 = scmp.ne.s32.totalorder %s100, %s101
      %p113 = scmp.eq.s32.totalorder %s33, 1
      %p114 = por %p112, %p113
      %p116 = scmp.ne.s32.totalorder %s101, %s115
      %p117 = scmp.eq.s32.totalorder %s33, 0
      %p118 = por %p116, %p117
      %s119 = ssub.s32 %s27, %s34
      %p120 = scmp.eq.s32.totalorder %s119, 0
      %s122 = sadd.s32 %s121, 1
      %s123 = scalar_select %p120, %s121, %s122
      %p126 = pneg %p120
      %p127 = scmp.eq.s32.totalorder %s27, 1
      %p128 = por %p126, %p127
      %p129 = scmp.ne.s32.totalorder %s121, %s124
      %p130 = scmp.eq.s32.totalorder %s27, 0
      %p131 = por %p129, %p130
      %p132 = scmp.ne.s32.totalorder %s121, %s124
      %p133 = scmp.eq.s32.totalorder %s32, 1
      %p134 = por %p132, %p133
      %p135 = scmp.ne.s32.totalorder %s124, %s125
      %p136 = scmp.eq.s32.totalorder %s32, 0
      %p137 = por %p135, %p136
      %p138 = scmp.ne.s32.totalorder %s124, %s125
      %p139 = scmp.eq.s32.totalorder %s33, 1
      %p140 = por %p138, %p139
      %p142 = scmp.ne.s32.totalorder %s125, %s141
      %p143 = scmp.eq.s32.totalorder %s33, 0
      %p144 = por %p142, %p143
      %s145 = ssub.s32 %s27, %s34
      %p146 = scmp.eq.s32.totalorder %s145, 0
      %s148 = sadd.s32 %s147, 1
      %s149 = scalar_select %p146, %s147, %s148
      %p152 = pneg %p146
      %p153 = scmp.eq.s32.totalorder %s27, 1
      %p154 = por %p152, %p153
      %p155 = scmp.ne.s32.totalorder %s147, %s150
      %p156 = scmp.eq.s32.totalorder %s27, 0
      %p157 = por %p155, %p156
      %p158 = scmp.ne.s32.totalorder %s147, %s150
      %p159 = scmp.eq.s32.totalorder %s32, 1
      %p160 = por %p158, %p159
      %p161 = scmp.ne.s32.totalorder %s150, %s151
      %p162 = scmp.eq.s32.totalorder %s32, 0
      %p163 = por %p161, %p162
      %p164 = scmp.ne.s32.totalorder %s150, %s151
      %p165 = scmp.eq.s32.totalorder %s33, 1
      %p166 = por %p164, %p165
      %p168 = scmp.ne.s32.totalorder %s151, %s167
      %p169 = scmp.eq.s32.totalorder %s33, 0
      %p170 = por %p168, %p169
      %s171 = ssub.s32 %s27, %s34
      %p172 = scmp.eq.s32.totalorder %s171, 0
      %s174 = sadd.s32 %s173, 1
      %s175 = scalar_select %p172, %s173, %s174
      %p178 = pneg %p172
      %p179 = scmp.eq.s32.totalorder %s27, 1
      %p180 = por %p178, %p179
      %p181 = scmp.ne.s32.totalorder %s173, %s176
      %p182 = scmp.eq.s32.totalorder %s27, 0
      %p183 = por %p181, %p182
      %p184 = scmp.ne.s32.totalorder %s173, %s176
      %p185 = scmp.eq.s32.totalorder %s32, 1
      %p186 = por %p184, %p185
      %p187 = scmp.ne.s32.totalorder %s176, %s177
      %p188 = scmp.eq.s32.totalorder %s32, 0
      %p189 = por %p187, %p188
      %p190 = scmp.ne.s32.totalorder %s176, %s177
      %p191 = scmp.eq.s32.totalorder %s33, 1
      %p192 = por %p190, %p191
      %p194 = scmp.ne.s32.totalorder %s177, %s193
      %p195 = scmp.eq.s32.totalorder %s33, 0
      %p196 = por %p194, %p195
      %s197 = ssub.s32 %s27, %s34
      %p198 = scmp.eq.s32.totalorder %s197, 0
      %s200 = sadd.s32 %s199, 1
      %s201 = scalar_select %p198, %s199, %s200
      %p204 = pneg %p198
      %p205 = scmp.eq.s32.totalorder %s27, 1
      %p206 = por %p204, %p205
      %p207 = scmp.ne.s32.totalorder %s199, %s202
      %p208 = scmp.eq.s32.totalorder %s27, 0
      %p209 = por %p207, %p208
      %p210 = scmp.ne.s32.totalorder %s199, %s202
      %p211 = scmp.eq.s32.totalorder %s32, 1
      %p212 = por %p210, %p211
      %p213 = scmp.ne.s32.totalorder %s202, %s203
      %p214 = scmp.eq.s32.totalorder %s32, 0
      %p215 = por %p213, %p214
      %p216 = scmp.ne.s32.totalorder %s202, %s203
      %p217 = scmp.eq.s32.totalorder %s33, 1
      %p218 = por %p216, %p217
      %p220 = scmp.ne.s32.totalorder %s203, %s219
      %p221 = scmp.eq.s32.totalorder %s33, 0
      %p222 = por %p220, %p221
      %s223 = ssub.s32 %s27, %s34
      %p224 = scmp.eq.s32.totalorder %s223, 0
      %s226 = sadd.s32 %s225, 1
      %s227 = scalar_select %p224, %s225, %s226
      %p230 = pneg %p224
      %p231 = scmp.eq.s32.totalorder %s27, 1
      %p232 = por %p230, %p231
      %p233 = scmp.ne.s32.totalorder %s225, %s228
      %p234 = scmp.eq.s32.totalorder %s27, 0
      %p235 = por %p233, %p234
      %p236 = scmp.ne.s32.totalorder %s225, %s228
      %p237 = scmp.eq.s32.totalorder %s32, 1
      %p238 = por %p236, %p237
      %p239 = scmp.ne.s32.totalorder %s228, %s229
      %p240 = scmp.eq.s32.totalorder %s32, 0
      %p241 = por %p239, %p240
      %p242 = scmp.ne.s32.totalorder %s228, %s229
      %p243 = scmp.eq.s32.totalorder %s33, 1
      %p244 = por %p242, %p243
      %p246 = scmp.ne.s32.totalorder %s229, %s245
      %p247 = scmp.eq.s32.totalorder %s33, 0
      %p248 = por %p246, %p247
      %s249 = ssub.s32 %s27, %s34
      %p250 = scmp.eq.s32.totalorder %s249, 0
      %s252 = sadd.s32 %s251, 1
      %s253 = scalar_select %p250, %s251, %s252
      %p256 = pneg %p250
      %p257 = scmp.eq.s32.totalorder %s27, 1
      %p258 = por %p256, %p257
      %p259 = scmp.ne.s32.totalorder %s251, %s254
      %p260 = scmp.eq.s32.totalorder %s27, 0
      %p261 = por %p259, %p260
      %p262 = scmp.ne.s32.totalorder %s251, %s254
      %p263 = scmp.eq.s32.totalorder %s32, 1
      %p264 = por %p262, %p263
      %p265 = scmp.ne.s32.totalorder %s254, %s255
      %p266 = scmp.eq.s32.totalorder %s32, 0
      %p267 = por %p265, %p266
      %p268 = scmp.ne.s32.totalorder %s254, %s255
      %p269 = scmp.eq.s32.totalorder %s33, 1
      %p270 = por %p268, %p269
      %p272 = scmp.ne.s32.totalorder %s255, %s271
      %p273 = scmp.eq.s32.totalorder %s33, 0
      %p274 = por %p272, %p273
      %s275 = ssub.s32 %s27, %s34
      %p276 = scmp.eq.s32.totalorder %s275, 0
      %s278 = sadd.s32 %s277, 1
      %s279 = scalar_select %p276, %s277, %s278
      %p282 = pneg %p276
      %p283 = scmp.eq.s32.totalorder %s27, 1
      %p284 = por %p282, %p283
      %p285 = scmp.ne.s32.totalorder %s277, %s280
      %p286 = scmp.eq.s32.totalorder %s27, 0
      %p287 = por %p285, %p286
      %p288 = scmp.ne.s32.totalorder %s277, %s280
      %p289 = scmp.eq.s32.totalorder %s32, 1
      %p290 = por %p288, %p289
      %p291 = scmp.ne.s32.totalorder %s280, %s281
      %p292 = scmp.eq.s32.totalorder %s32, 0
      %p293 = por %p291, %p292
      %p294 = scmp.ne.s32.totalorder %s280, %s281
      %p295 = scmp.eq.s32.totalorder %s33, 1
      %p296 = por %p294, %p295
      %p298 = scmp.ne.s32.totalorder %s281, %s297
      %p299 = scmp.eq.s32.totalorder %s33, 0
      %p300 = por %p298, %p299
      %s301 = ssub.s32 %s27, %s34
      %p302 = scmp.eq.s32.totalorder %s301, 0
      %s304 = sadd.s32 %s303, 1
      %s305 = scalar_select %p302, %s303, %s304
      %p308 = pneg %p302
      %p309 = scmp.eq.s32.totalorder %s27, 1
      %p310 = por %p308, %p309
      %p311 = scmp.ne.s32.totalorder %s303, %s306
      %p312 = scmp.eq.s32.totalorder %s27, 0
      %p313 = por %p311, %p312
      %p314 = scmp.ne.s32.totalorder %s303, %s306
      %p315 = scmp.eq.s32.totalorder %s32, 1
      %p316 = por %p314, %p315
      %p317 = scmp.ne.s32.totalorder %s306, %s307
      %p318 = scmp.eq.s32.totalorder %s32, 0
      %p319 = por %p317, %p318
      %p320 = scmp.ne.s32.totalorder %s306, %s307
      %p321 = scmp.eq.s32.totalorder %s33, 1
      %p322 = por %p320, %p321
      %p324 = scmp.ne.s32.totalorder %s307, %s323
      %p325 = scmp.eq.s32.totalorder %s33, 0
      %p326 = por %p324, %p325
      %s327 = ssub.s32 %s27, %s34
      %p328 = scmp.eq.s32.totalorder %s327, 0
      %s330 = sadd.s32 %s329, 1
      %s331 = scalar_select %p328, %s329, %s330
      %p334 = pneg %p328
      %p335 = scmp.eq.s32.totalorder %s27, 1
      %p336 = por %p334, %p335
      %p337 = scmp.ne.s32.totalorder %s329, %s332
      %p338 = scmp.eq.s32.totalorder %s27, 0
      %p339 = por %p337, %p338
      %p340 = scmp.ne.s32.totalorder %s329, %s332
      %p341 = scmp.eq.s32.totalorder %s32, 1
      %p342 = por %p340, %p341
      %p343 = scmp.ne.s32.totalorder %s332, %s333
      %p344 = scmp.eq.s32.totalorder %s32, 0
      %p345 = por %p343, %p344
      %p346 = scmp.ne.s32.totalorder %s332, %s333
      %p347 = scmp.eq.s32.totalorder %s33, 1
      %p348 = por %p346, %p347
      %p350 = scmp.ne.s32.totalorder %s333, %s349
      %p351 = scmp.eq.s32.totalorder %s33, 0
      %p352 = por %p350, %p351
      %s353 = ssub.s32 %s27, %s34
      %p354 = scmp.eq.s32.totalorder %s353, 0
      %s356 = sadd.s32 %s355, 1
      %s357 = scalar_select %p354, %s355, %s356
      %p360 = pneg %p354
      %p361 = scmp.eq.s32.totalorder %s27, 1
      %p362 = por %p360, %p361
      %p363 = scmp.ne.s32.totalorder %s355, %s358
      %p364 = scmp.eq.s32.totalorder %s27, 0
      %p365 = por %p363, %p364
      %p366 = scmp.ne.s32.totalorder %s355, %s358
      %p367 = scmp.eq.s32.totalorder %s32, 1
      %p368 = por %p366, %p367
      %p369 = scmp.ne.s32.totalorder %s358, %s359
      %p370 = scmp.eq.s32.totalorder %s32, 0
      %p371 = por %p369, %p370
      %p372 = scmp.ne.s32.totalorder %s358, %s359
      %p373 = scmp.eq.s32.totalorder %s33, 1
      %p374 = por %p372, %p373
      %p376 = scmp.ne.s32.totalorder %s359, %s375
      %p377 = scmp.eq.s32.totalorder %s33, 0
      %p378 = por %p376, %p377
      %s379 = ssub.s32 %s27, %s34
      %p380 = scmp.eq.s32.totalorder %s379, 0
      %s382 = sadd.s32 %s381, 1
      %s383 = scalar_select %p380, %s381, %s382
      %p386 = pneg %p380
      %p387 = scmp.eq.s32.totalorder %s27, 1
      %p388 = por %p386, %p387
      %p389 = scmp.ne.s32.totalorder %s381, %s384
      %p390 = scmp.eq.s32.totalorder %s27, 0
      %p391 = por %p389, %p390
      %p392 = scmp.ne.s32.totalorder %s381, %s384
      %p393 = scmp.eq.s32.totalorder %s32, 1
      %p394 = por %p392, %p393
      %p395 = scmp.ne.s32.totalorder %s384, %s385
      %p396 = scmp.eq.s32.totalorder %s32, 0
      %p397 = por %p395, %p396
      %p398 = scmp.ne.s32.totalorder %s384, %s385
      %p399 = scmp.eq.s32.totalorder %s33, 1
      %p400 = por %p398, %p399
      %p402 = scmp.ne.s32.totalorder %s385, %s401
      %p403 = scmp.eq.s32.totalorder %s33, 0
      %p404 = por %p402, %p403
      %s405 = ssub.s32 %s27, %s34
      %p406 = scmp.eq.s32.totalorder %s405, 0
      %s408 = sadd.s32 %s407, 1
      %s409 = scalar_select %p406, %s407, %s408
      %p412 = pneg %p406
      %p413 = scmp.eq.s32.totalorder %s27, 1
      %p414 = por %p412, %p413
      %p415 = scmp.ne.s32.totalorder %s407, %s410
      %p416 = scmp.eq.s32.totalorder %s27, 0
      %p417 = por %p415, %p416
      %p418 = scmp.ne.s32.totalorder %s407, %s410
      %p419 = scmp.eq.s32.totalorder %s32, 1
      %p420 = por %p418, %p419
      %p421 = scmp.ne.s32.totalorder %s410, %s411
      %p422 = scmp.eq.s32.totalorder %s32, 0
      %p423 = por %p421, %p422
      %p424 = scmp.ne.s32.totalorder %s410, %s411
      %p425 = scmp.eq.s32.totalorder %s33, 1
      %p426 = por %p424, %p425
      %p428 = scmp.ne.s32.totalorder %s411, %s427
      %p429 = scmp.eq.s32.totalorder %s33, 0
      %p430 = por %p428, %p429
      %s432 = sadd.s32 %s431, 1
      %p435 = scmp.eq.s32.totalorder %s27, 1
      %p436 = scmp.ne.s32.totalorder %s431, %s433
      %p437 = scmp.eq.s32.totalorder %s27, 0
      %p438 = por %p436, %p437
      %p439 = scmp.ne.s32.totalorder %s431, %s433
      %p440 = scmp.eq.s32.totalorder %s32, 1
      %p441 = por %p439, %p440
      %p442 = scmp.ne.s32.totalorder %s433, %s434
      %p443 = scmp.eq.s32.totalorder %s32, 0
      %p444 = por %p442, %p443
      %p445 = scmp.ne.s32.totalorder %s433, %s434
      %p446 = scmp.eq.s32.totalorder %s33, 1
      %p447 = por %p445, %p446
      %p449 = scmp.ne.s32.totalorder %s434, %s448
      %p450 = scmp.eq.s32.totalorder %s33, 0
      %p451 = por %p449, %p450
      %s453 = sadd.s32 %s452, 1
      %p456 = scmp.eq.s32.totalorder %s27, 1
      %p457 = scmp.ne.s32.totalorder %s452, %s454
      %p458 = scmp.eq.s32.totalorder %s27, 0
      %p459 = por %p457, %p458
      %p460 = scmp.ne.s32.totalorder %s452, %s454
      %p461 = scmp.eq.s32.totalorder %s32, 1
      %p462 = por %p460, %p461
      %p463 = scmp.ne.s32.totalorder %s454, %s455
      %p464 = scmp.eq.s32.totalorder %s32, 0
      %p465 = por %p463, %p464
      %p466 = scmp.ne.s32.totalorder %s454, %s455
      %p467 = scmp.eq.s32.totalorder %s33, 1
      %p468 = por %p466, %p467
      %p470 = scmp.ne.s32.totalorder %s455, %s469
      %p471 = scmp.eq.s32.totalorder %s33, 0
      %p472 = por %p470, %p471
      %s474 = sadd.s32 %s473, 1
      %p477 = scmp.eq.s32.totalorder %s27, 1
      %p478 = scmp.ne.s32.totalorder %s473, %s475
      %p479 = scmp.eq.s32.totalorder %s27, 0
      %p480 = por %p478, %p479
      %p481 = scmp.ne.s32.totalorder %s473, %s475
      %p482 = scmp.eq.s32.totalorder %s32, 1
      %p483 = por %p481, %p482
      %p484 = scmp.ne.s32.totalorder %s475, %s476
      %p485 = scmp.eq.s32.totalorder %s32, 0
      %p486 = por %p484, %p485
      %p487 = scmp.ne.s32.totalorder %s475, %s476
      %p488 = scmp.eq.s32.totalorder %s33, 1
      %p489 = por %p487, %p488
      %p491 = scmp.ne.s32.totalorder %s476, %s490
      %p492 = scmp.eq.s32.totalorder %s33, 0
      %p493 = por %p491, %p492
      %p494 = scmp.le.s32.totalorder 1, %s27
      %p495 = scmp.lt.s32.totalorder %s27, 3
      %p496 = pnand %p494, %p495
      %p497 = pneg %p496
      // Predicated region
      $region9: #{salary_predictor_forward.1} parent=5 // pred_check
        _
      $region10: #{salary_predictor_forward.1} parent=5 // pred_check_branch
        %499 = sbr.rel (%p496) target = $region12
      $region11: #{salary_predictor_forward.1} parent=5 // pred_region
        %s500 = ssub.s32 %s27, 1
        // Predicated region
        $region13: #{salary_predictor_forward.1} parent=11 // pred_check
          %p501 = pneg %p48
        $region14: #{salary_predictor_forward.1} parent=11 // pred_check_branch
          %503 = sbr.rel (%p501) target = $region16
        $region15: #{salary_predictor_forward.1} parent=11 // pred_region
          _
        $region16: #{salary_predictor_forward.1} parent=11 // pred_fallthru
          _
        // Predicated region
        $region17: #{salary_predictor_forward.1} parent=11 // pred_check
          %p504 = pneg %p69
        $region18: #{salary_predictor_forward.1} parent=11 // pred_check_branch
          %506 = sbr.rel (%p504) target = $region20
        $region19: #{salary_predictor_forward.1} parent=11 // pred_region
          _
        $region20: #{salary_predictor_forward.1} parent=11 // pred_fallthru
          _
        // Predicated region
        $region21: #{salary_predictor_forward.1} parent=11 // pred_check
          %p507 = pneg %p90
        $region22: #{salary_predictor_forward.1} parent=11 // pred_check_branch
          %509 = sbr.rel (%p507) target = $region24
        $region23: #{salary_predictor_forward.1} parent=11 // pred_region
          %s511 = ssub.s32 16, 16
          %512 = vsyncadd [#allocation5], %s511
          %s514 = sshll.u32 [#allocation4], 4
          %s515 = int_to_ptr.vmem [resolvable:$true] %s514
          %517 = dma.hbm_to_vmem [thread:$0]  %s2, 16, %s515, [#allocation5]
        $region24: #{salary_predictor_forward.1} parent=11 // pred_fallthru
          _
        // Predicated region
        $region25: #{salary_predictor_forward.1} parent=11 // pred_check
          %p518 = pneg %p111
        $region26: #{salary_predictor_forward.1} parent=11 // pred_check_branch
          %520 = sbr.rel (%p518) target = $region28
        $region27: #{salary_predictor_forward.1} parent=11 // pred_region
          %s522 = ssub.s32 16, 16
          %523 = vsyncadd [#allocation7], %s522
          %s525 = sshll.u32 [#allocation6], 4
          %s526 = int_to_ptr.vmem [resolvable:$true] %s525
          %528 = dma.hbm_to_vmem [thread:$0]  %s3, 16, %s526, [#allocation7]
        $region28: #{salary_predictor_forward.1} parent=11 // pred_fallthru
          _
        // Predicated region
        $region29: #{salary_predictor_forward.1} parent=11 // pred_check
          %p529 = pneg %p444
        $region30: #{salary_predictor_forward.1} parent=11 // pred_check_branch
          %531 = sbr.rel (%p529) target = $region32
        $region31: #{salary_predictor_forward.1} parent=11 // pred_region
          %s533 = ssub.s32 1024, 1024
          %534 = vsyncadd [#allocation7], %s533
          %s535 = sshll.u32 [#allocation15], 4
          %s536 = int_to_ptr.vmem [resolvable:$true] %s535
          %541 = dma.hbm_to_vmem [thread:$0]  %s16, 1024, %s536, [#allocation7], 64, 64, 4
        $region32: #{salary_predictor_forward.1} parent=11 // pred_fallthru
          _
        // Predicated region
        $region33: #{salary_predictor_forward.1} parent=11 // pred_check
          %p542 = pneg %p465
        $region34: #{salary_predictor_forward.1} parent=11 // pred_check_branch
          %544 = sbr.rel (%p542) target = $region36
        $region35: #{salary_predictor_forward.1} parent=11 // pred_region
          %s546 = ssub.s32 16, 16
          %547 = vsyncadd [#allocation17], %s546
          %s549 = sshll.u32 [#allocation16], 4
          %s550 = int_to_ptr.vmem [resolvable:$true] %s549
          %552 = dma.hbm_to_vmem [thread:$0]  %s17, 16, %s550, [#allocation17]
        $region36: #{salary_predictor_forward.1} parent=11 // pred_fallthru
          _
      $region12: #{salary_predictor_forward.1} parent=5 // pred_fallthru
        _
      %p553 = scmp.lt.s32.totalorder %s27, 2
      // Predicated region
      $region37: #{salary_predictor_forward.1} parent=5 // pred_check
        %p554 = pneg %p553
      $region38: #{salary_predictor_forward.1} parent=5 // pred_check_branch
        %556 = sbr.rel (%p554) target = $region40
      $region39: #{salary_predictor_forward.1} parent=5 // pred_region
        // Predicated region
        $region41: #{salary_predictor_forward.1} parent=39 // pred_check
          %p557 = pneg %p131
        $region42: #{salary_predictor_forward.1} parent=39 // pred_check_branch
          %559 = sbr.rel (%p557) target = $region44
        $region43: #{salary_predictor_forward.1} parent=39 // pred_region
          %s560 = sand.u32 %s27, 1
          %s561 = scalar_lea.sflag [#allocation5], %s560
          %s562 = sand.u32 %s121, 1
          %s563 = smul.addr %s562, 384
          %s564 = scalar_lea.vmem [#allocation8], %s563
          %s566 = ssub.s32 6144, 6144
          %567 = vsyncadd %s561, %s566
          %s568 = smul.addr %s27, 96
          %s569 = smul.addr %s568, 64
          %s570 = scalar_lea.hbm %s4, %s569
          %s571 = sshll.u32 %s564, 4
          %s572 = int_to_ptr.vmem [resolvable:$true] %s571
          %577 = dma.hbm_to_vmem [thread:$0]  %s570, 6144, %s572, %s561, 384, 384, 24
        $region44: #{salary_predictor_forward.1} parent=39 // pred_fallthru
          _
        // Predicated region
        $region45: #{salary_predictor_forward.1} parent=39 // pred_check
          %p578 = pneg %p157
        $region46: #{salary_predictor_forward.1} parent=39 // pred_check_branch
          %580 = sbr.rel (%p578) target = $region48
        $region47: #{salary_predictor_forward.1} parent=39 // pred_region
          %p581 = scmp.lt.s32.totalorder %s27, 1
          %s582 = scalar_select %p581, %s27, 1
          %s583 = smul.addr %s582, 6
          %s584 = scalar_lea.vmem %s5, %s583
        $region48: #{salary_predictor_forward.1} parent=39 // pred_fallthru
          _
        // Predicated region
        $region49: #{salary_predictor_forward.1} parent=39 // pred_check
          %p585 = pneg %p183
        $region50: #{salary_predictor_forward.1} parent=39 // pred_check_branch
          %587 = sbr.rel (%p585) target = $region52
        $region51: #{salary_predictor_forward.1} parent=39 // pred_region
          %p588 = scmp.lt.s32.totalorder %s27, 1
          %s589 = scalar_select %p588, %s27, 1
          %s590 = smul.addr %s589, 32
          %s591 = smul.addr %s590, 4
          %s592 = scalar_lea.vmem %s6, %s591
        $region52: #{salary_predictor_forward.1} parent=39 // pred_fallthru
          _
        // Predicated region
        $region53: #{salary_predictor_forward.1} parent=39 // pred_check
          %p593 = pneg %p209
        $region54: #{salary_predictor_forward.1} parent=39 // pred_check_branch
          %595 = sbr.rel (%p593) target = $region56
        $region55: #{salary_predictor_forward.1} parent=39 // pred_region
          %p596 = scmp.lt.s32.totalorder %s27, 1
          %s597 = scalar_select %p596, %s27, 1
          %s598 = scalar_lea.vmem %s7, %s597
        $region56: #{salary_predictor_forward.1} parent=39 // pred_fallthru
          _
        // Predicated region
        $region57: #{salary_predictor_forward.1} parent=39 // pred_check
          %p599 = pneg %p235
        $region58: #{salary_predictor_forward.1} parent=39 // pred_check_branch
          %601 = sbr.rel (%p599) target = $region60
        $region59: #{salary_predictor_forward.1} parent=39 // pred_region
          %s602 = sand.u32 %s27, 1
          %s603 = scalar_lea.sflag [#allocation5], %s602
          %s604 = sand.u32 %s225, 1
          %s605 = scalar_lea.vmem [#allocation9], %s604
          %s607 = ssub.s32 16, 16
          %608 = vsyncadd %s603, %s607
          %s609 = smul.addr %s27, 16
          %s610 = scalar_lea.hbm %s8, %s609
          %s612 = sshll.u32 %s605, 4
          %s613 = int_to_ptr.vmem [resolvable:$true] %s612
          %615 = dma.hbm_to_vmem [thread:$0]  %s610, 16, %s613, %s603
        $region60: #{salary_predictor_forward.1} parent=39 // pred_fallthru
          _
        // Predicated region
        $region61: #{salary_predictor_forward.1} parent=39 // pred_check
          %p616 = pneg %p261
        $region62: #{salary_predictor_forward.1} parent=39 // pred_check_branch
          %618 = sbr.rel (%p616) target = $region64
        $region63: #{salary_predictor_forward.1} parent=39 // pred_region
          %s619 = sand.u32 %s27, 1
          %s620 = scalar_lea.sflag [#allocation5], %s619
          %s621 = sand.u32 %s251, 1
          %s622 = scalar_lea.vmem [#allocation10], %s621
          %s624 = ssub.s32 16, 16
          %625 = vsyncadd %s620, %s624
          %s626 = smul.addr %s27, 16
          %s627 = scalar_lea.hbm %s9, %s626
          %s629 = sshll.u32 %s622, 4
          %s630 = int_to_ptr.vmem [resolvable:$true] %s629
          %632 = dma.hbm_to_vmem [thread:$0]  %s627, 16, %s630, %s620
        $region64: #{salary_predictor_forward.1} parent=39 // pred_fallthru
          _
        // Predicated region
        $region65: #{salary_predictor_forward.1} parent=39 // pred_check
          %p633 = pneg %p287
        $region66: #{salary_predictor_forward.1} parent=39 // pred_check_branch
          %635 = sbr.rel (%p633) target = $region68
        $region67: #{salary_predictor_forward.1} parent=39 // pred_region
          %s636 = sand.u32 %s27, 1
          %s637 = scalar_lea.sflag [#allocation5], %s636
          %s638 = sand.u32 %s277, 1
          %s639 = smul.addr %s638, 256
          %s640 = scalar_lea.vmem [#allocation11], %s639
          %s642 = ssub.s32 4096, 4096
          %643 = vsyncadd %s637, %s642
          %s644 = smul.addr %s27, 64
          %s645 = smul.addr %s644, 64
          %s646 = scalar_lea.hbm %s10, %s645
          %s647 = sshll.u32 %s640, 4
          %s648 = int_to_ptr.vmem [resolvable:$true] %s647
          %653 = dma.hbm_to_vmem [thread:$0]  %s646, 4096, %s648, %s637, 256, 256, 16
        $region68: #{salary_predictor_forward.1} parent=39 // pred_fallthru
          _
        // Predicated region
        $region69: #{salary_predictor_forward.1} parent=39 // pred_check
          %p654 = pneg %p313
        $region70: #{salary_predictor_forward.1} parent=39 // pred_check_branch
          %656 = sbr.rel (%p654) target = $region72
        $region71: #{salary_predictor_forward.1} parent=39 // pred_region
          %p657 = scmp.lt.s32.totalorder %s27, 1
          %s658 = scalar_select %p657, %s27, 1
          %s659 = smul.addr %s658, 4
          %s660 = scalar_lea.vmem %s11, %s659
        $region72: #{salary_predictor_forward.1} parent=39 // pred_fallthru
          _
        // Predicated region
        $region73: #{salary_predictor_forward.1} parent=39 // pred_check
          %p661 = pneg %p339
        $region74: #{salary_predictor_forward.1} parent=39 // pred_check_branch
          %663 = sbr.rel (%p661) target = $region76
        $region75: #{salary_predictor_forward.1} parent=39 // pred_region
          %s664 = sand.u32 %s27, 1
          %s665 = scalar_lea.sflag [#allocation5], %s664
          %s666 = sand.u32 %s329, 1
          %s667 = smul.addr %s666, 256
          %s668 = scalar_lea.vmem [#allocation12], %s667
          %s670 = ssub.s32 4096, 4096
          %671 = vsyncadd %s665, %s670
          %s672 = smul.addr %s27, 64
          %s673 = smul.addr %s672, 64
          %s674 = scalar_lea.hbm %s12, %s673
          %s675 = sshll.u32 %s668, 4
          %s676 = int_to_ptr.vmem [resolvable:$true] %s675
          %681 = dma.hbm_to_vmem [thread:$0]  %s674, 4096, %s676, %s665, 64, 64, 4
        $region76: #{salary_predictor_forward.1} parent=39 // pred_fallthru
          _
        // Predicated region
        $region77: #{salary_predictor_forward.1} parent=39 // pred_check
          %p682 = pneg %p365
        $region78: #{salary_predictor_forward.1} parent=39 // pred_check_branch
          %684 = sbr.rel (%p682) target = $region80
        $region79: #{salary_predictor_forward.1} parent=39 // pred_region
          %p685 = scmp.lt.s32.totalorder %s27, 1
          %s686 = scalar_select %p685, %s27, 1
          %s687 = scalar_lea.vmem %s13, %s686
        $region80: #{salary_predictor_forward.1} parent=39 // pred_fallthru
          _
        // Predicated region
        $region81: #{salary_predictor_forward.1} parent=39 // pred_check
          %p688 = pneg %p391
        $region82: #{salary_predictor_forward.1} parent=39 // pred_check_branch
          %690 = sbr.rel (%p688) target = $region84
        $region83: #{salary_predictor_forward.1} parent=39 // pred_region
          %s691 = sand.u32 %s27, 1
          %s692 = scalar_lea.sflag [#allocation5], %s691
          %s693 = sand.u32 %s381, 1
          %s694 = scalar_lea.vmem [#allocation13], %s693
          %s696 = ssub.s32 16, 16
          %697 = vsyncadd %s692, %s696
          %s698 = smul.addr %s27, 16
          %s699 = scalar_lea.hbm %s14, %s698
          %s701 = sshll.u32 %s694, 4
          %s702 = int_to_ptr.vmem [resolvable:$true] %s701
          %704 = dma.hbm_to_vmem [thread:$0]  %s699, 16, %s702, %s692
        $region84: #{salary_predictor_forward.1} parent=39 // pred_fallthru
          _
        // Predicated region
        $region85: #{salary_predictor_forward.1} parent=39 // pred_check
          %p705 = pneg %p417
        $region86: #{salary_predictor_forward.1} parent=39 // pred_check_branch
          %707 = sbr.rel (%p705) target = $region88
        $region87: #{salary_predictor_forward.1} parent=39 // pred_region
          %s708 = sand.u32 %s27, 1
          %s709 = scalar_lea.sflag [#allocation5], %s708
          %s710 = sand.u32 %s407, 1
          %s711 = scalar_lea.vmem [#allocation14], %s710
          %s713 = ssub.s32 16, 16
          %714 = vsyncadd %s709, %s713
          %s715 = smul.addr %s27, 16
          %s716 = scalar_lea.hbm %s15, %s715
          %s718 = sshll.u32 %s711, 4
          %s719 = int_to_ptr.vmem [resolvable:$true] %s718
          %721 = dma.hbm_to_vmem [thread:$0]  %s716, 16, %s719, %s709
        $region88: #{salary_predictor_forward.1} parent=39 // pred_fallthru
          _
      $region40: #{salary_predictor_forward.1} parent=5 // pred_fallthru
        _
      %p722 = scmp.le.s32.totalorder 1, %s27
      %p723 = scmp.lt.s32.totalorder %s27, 3
      %p724 = pnand %p722, %p723
      %p725 = pneg %p724
      // Predicated region
      $region89: #{salary_predictor_forward.1} parent=5 // pred_check
        _
      $region90: #{salary_predictor_forward.1} parent=5 // pred_check_branch
        %727 = sbr.rel (%p724) target = $region92
      $region91: #{salary_predictor_forward.1} parent=5 // pred_region
        %s728 = ssub.s32 %s27, 1
        // Predicated region
        $region93: #{salary_predictor_forward.1} parent=91 // pred_check
          %p729 = pneg %p90
        $region94: #{salary_predictor_forward.1} parent=91 // pred_check_branch
          %731 = sbr.rel (%p729) target = $region96
        $region95: #{salary_predictor_forward.1} parent=91 // pred_region
          %732 = dma.done [#allocation5], 16
        $region96: #{salary_predictor_forward.1} parent=91 // pred_fallthru
          _
        // Predicated region
        $region97: #{salary_predictor_forward.1} parent=91 // pred_check
          %p733 = pneg %p111
        $region98: #{salary_predictor_forward.1} parent=91 // pred_check_branch
          %735 = sbr.rel (%p733) target = $region100
        $region99: #{salary_predictor_forward.1} parent=91 // pred_region
          %736 = dma.done [#allocation7], 16
        $region100: #{salary_predictor_forward.1} parent=91 // pred_fallthru
          _
        %s737 = sand.u32 %s32, 1
        %s738 = scalar_lea.sflag [#allocation5], %s737
        %s739 = sand.u32 %s124, 1
        %s740 = smul.addr %s739, 384
        %s741 = scalar_lea.vmem [#allocation8], %s740
        // Predicated region
        $region101: #{salary_predictor_forward.1} parent=91 // pred_check
          %p742 = pneg %p137
        $region102: #{salary_predictor_forward.1} parent=91 // pred_check_branch
          %744 = sbr.rel (%p742) target = $region104
        $region103: #{salary_predictor_forward.1} parent=91 // pred_region
          %745 = dma.done %s738, 6144
        $region104: #{salary_predictor_forward.1} parent=91 // pred_fallthru
          _
        %s746 = sand.u32 %s32, 1
        %s747 = scalar_lea.sflag [#allocation5], %s746
        %s748 = sand.u32 %s228, 1
        %s749 = scalar_lea.vmem [#allocation9], %s748
        // Predicated region
        $region105: #{salary_predictor_forward.1} parent=91 // pred_check
          %p750 = pneg %p241
        $region106: #{salary_predictor_forward.1} parent=91 // pred_check_branch
          %752 = sbr.rel (%p750) target = $region108
        $region107: #{salary_predictor_forward.1} parent=91 // pred_region
          %753 = dma.done %s747, 16
        $region108: #{salary_predictor_forward.1} parent=91 // pred_fallthru
          _
        %s754 = sand.u32 %s32, 1
        %s755 = scalar_lea.sflag [#allocation5], %s754
        %s756 = sand.u32 %s254, 1
        %s757 = scalar_lea.vmem [#allocation10], %s756
        // Predicated region
        $region109: #{salary_predictor_forward.1} parent=91 // pred_check
          %p758 = pneg %p267
        $region110: #{salary_predictor_forward.1} parent=91 // pred_check_branch
          %760 = sbr.rel (%p758) target = $region112
        $region111: #{salary_predictor_forward.1} parent=91 // pred_region
          %761 = dma.done %s755, 16
        $region112: #{salary_predictor_forward.1} parent=91 // pred_fallthru
          _
        %s762 = sand.u32 %s32, 1
        %s763 = scalar_lea.sflag [#allocation5], %s762
        %s764 = sand.u32 %s280, 1
        %s765 = smul.addr %s764, 256
        %s766 = scalar_lea.vmem [#allocation11], %s765
        // Predicated region
        $region113: #{salary_predictor_forward.1} parent=91 // pred_check
          %p767 = pneg %p293
        $region114: #{salary_predictor_forward.1} parent=91 // pred_check_branch
          %769 = sbr.rel (%p767) target = $region116
        $region115: #{salary_predictor_forward.1} parent=91 // pred_region
          %770 = dma.done %s763, 4096
        $region116: #{salary_predictor_forward.1} parent=91 // pred_fallthru
          _
        %s771 = sand.u32 %s32, 1
        %s772 = scalar_lea.sflag [#allocation5], %s771
        %s773 = sand.u32 %s332, 1
        %s774 = smul.addr %s773, 256
        %s775 = scalar_lea.vmem [#allocation12], %s774
        // Predicated region
        $region117: #{salary_predictor_forward.1} parent=91 // pred_check
          %p776 = pneg %p345
        $region118: #{salary_predictor_forward.1} parent=91 // pred_check_branch
          %778 = sbr.rel (%p776) target = $region120
        $region119: #{salary_predictor_forward.1} parent=91 // pred_region
          %779 = dma.done %s772, 4096
        $region120: #{salary_predictor_forward.1} parent=91 // pred_fallthru
          _
        %s780 = sand.u32 %s32, 1
        %s781 = scalar_lea.sflag [#allocation5], %s780
        %s782 = sand.u32 %s384, 1
        %s783 = scalar_lea.vmem [#allocation13], %s782
        // Predicated region
        $region121: #{salary_predictor_forward.1} parent=91 // pred_check
          %p784 = pneg %p397
        $region122: #{salary_predictor_forward.1} parent=91 // pred_check_branch
          %786 = sbr.rel (%p784) target = $region124
        $region123: #{salary_predictor_forward.1} parent=91 // pred_region
          %787 = dma.done %s781, 16
        $region124: #{salary_predictor_forward.1} parent=91 // pred_fallthru
          _
        %s788 = sand.u32 %s32, 1
        %s789 = scalar_lea.sflag [#allocation5], %s788
        %s790 = sand.u32 %s410, 1
        %s791 = scalar_lea.vmem [#allocation14], %s790
        // Predicated region
        $region125: #{salary_predictor_forward.1} parent=91 // pred_check
          %p792 = pneg %p423
        $region126: #{salary_predictor_forward.1} parent=91 // pred_check_branch
          %794 = sbr.rel (%p792) target = $region128
        $region127: #{salary_predictor_forward.1} parent=91 // pred_region
          %795 = dma.done %s789, 16
        $region128: #{salary_predictor_forward.1} parent=91 // pred_fallthru
          _
        // Predicated region
        $region129: #{salary_predictor_forward.1} parent=91 // pred_check
          %p796 = pneg %p444
        $region130: #{salary_predictor_forward.1} parent=91 // pred_check_branch
          %798 = sbr.rel (%p796) target = $region132
        $region131: #{salary_predictor_forward.1} parent=91 // pred_region
          %799 = dma.done [#allocation7], 1024
        $region132: #{salary_predictor_forward.1} parent=91 // pred_fallthru
          _
        // Predicated region
        $region133: #{salary_predictor_forward.1} parent=91 // pred_check
          %p800 = pneg %p465
        $region134: #{salary_predictor_forward.1} parent=91 // pred_check_branch
          %802 = sbr.rel (%p800) target = $region136
        $region135: #{salary_predictor_forward.1} parent=91 // pred_region
          %803 = dma.done [#allocation17], 16
        $region136: #{salary_predictor_forward.1} parent=91 // pred_fallthru
          _
        %p804 = pneg %p48
        %p805 = pneg %p45
        %p806 = pneg %p69
        %p807 = pneg %p66
        %p808 = pneg %p90
        %p809 = pneg %p87
        %p810 = pneg %p111
        %p811 = pneg %p108
        %s812 = sand.u32 %s32, 1
        %s813 = scalar_lea.sflag [#allocation5], %s812
        %s814 = sand.u32 %s124, 1
        %s815 = smul.addr %s814, 384
        %s816 = scalar_lea.vmem [#allocation8], %s815
        %p817 = pneg %p137
        %p818 = pneg %p134
        %p819 = scmp.lt.s32.totalorder %s32, 1
        %s820 = scalar_select %p819, %s32, 1
        %s821 = smul.addr %s820, 6
        %s822 = scalar_lea.vmem %s5, %s821
        %p823 = pneg %p163
        %p824 = pneg %p160
        %p825 = scmp.lt.s32.totalorder %s32, 1
        %s826 = scalar_select %p825, %s32, 1
        %s827 = smul.addr %s826, 32
        %s828 = smul.addr %s827, 4
        %s829 = scalar_lea.vmem %s6, %s828
        %p830 = pneg %p189
        %p831 = pneg %p186
        %p832 = scmp.lt.s32.totalorder %s32, 1
        %s833 = scalar_select %p832, %s32, 1
        %s834 = scalar_lea.vmem %s7, %s833
        %p835 = pneg %p215
        %p836 = pneg %p212
        %s837 = sand.u32 %s32, 1
        %s838 = scalar_lea.sflag [#allocation5], %s837
        %s839 = sand.u32 %s228, 1
        %s840 = scalar_lea.vmem [#allocation9], %s839
        %p841 = pneg %p241
        %p842 = pneg %p238
        %s843 = sand.u32 %s32, 1
        %s844 = scalar_lea.sflag [#allocation5], %s843
        %s845 = sand.u32 %s254, 1
        %s846 = scalar_lea.vmem [#allocation10], %s845
        %p847 = pneg %p267
        %p848 = pneg %p264
        %s849 = sand.u32 %s32, 1
        %s850 = scalar_lea.sflag [#allocation5], %s849
        %s851 = sand.u32 %s280, 1
        %s852 = smul.addr %s851, 256
        %s853 = scalar_lea.vmem [#allocation11], %s852
        %p854 = pneg %p293
        %p855 = pneg %p290
        %p856 = scmp.lt.s32.totalorder %s32, 1
        %s857 = scalar_select %p856, %s32, 1
        %s858 = smul.addr %s857, 4
        %s859 = scalar_lea.vmem %s11, %s858
        %p860 = pneg %p319
        %p861 = pneg %p316
        %s862 = sand.u32 %s32, 1
        %s863 = scalar_lea.sflag [#allocation5], %s862
        %s864 = sand.u32 %s332, 1
        %s865 = smul.addr %s864, 256
        %s866 = scalar_lea.vmem [#allocation12], %s865
        %p867 = pneg %p345
        %p868 = pneg %p342
        %p869 = scmp.lt.s32.totalorder %s32, 1
        %s870 = scalar_select %p869, %s32, 1
        %s871 = scalar_lea.vmem %s13, %s870
        %p872 = pneg %p371
        %p873 = pneg %p368
        %s874 = sand.u32 %s32, 1
        %s875 = scalar_lea.sflag [#allocation5], %s874
        %s876 = sand.u32 %s384, 1
        %s877 = scalar_lea.vmem [#allocation13], %s876
        %p878 = pneg %p397
        %p879 = pneg %p394
        %s880 = sand.u32 %s32, 1
        %s881 = scalar_lea.sflag [#allocation5], %s880
        %s882 = sand.u32 %s410, 1
        %s883 = scalar_lea.vmem [#allocation14], %s882
        %p884 = pneg %p423
        %p885 = pneg %p420
        %p886 = pneg %p444
        %p887 = pneg %p441
        %p888 = pneg %p465
        %p889 = pneg %p462
        %p890 = pneg %p486
        %p891 = pneg %p483
        %p892 = scmp.lt.s32.totalorder %s32, 1
        %s893 = scalar_select %p892, %s32, 1
        %s894 = smul.addr %s893, 6
        %s895 = scalar_lea.vmem %s5, %s894
        %p896 = scmp.lt.s32.totalorder %s32, 1
        %s897 = scalar_select %p896, %s32, 1
        %s898 = smul.addr %s897, 32
        %s899 = smul.addr %s898, 4
        %s900 = scalar_lea.vmem %s6, %s899
        %p901 = scmp.lt.s32.totalorder %s32, 1
        %s902 = scalar_select %p901, %s32, 1
        %s903 = scalar_lea.vmem %s7, %s902
        %p904 = scmp.lt.s32.totalorder %s32, 1
        %s905 = scalar_select %p904, %s32, 1
        %s906 = smul.addr %s905, 4
        %s907 = scalar_lea.vmem %s11, %s906
        %p908 = scmp.lt.s32.totalorder %s32, 1
        %s909 = scalar_select %p908, %s32, 1
        %s910 = scalar_lea.vmem %s13, %s909
        %p912 = scmp.eq.s32.totalorder %s32, 0
        // Predicated region
        $region137: #{salary_predictor_forward.1} parent=91 // pred_check
          %p913 = pneg %p912
        $region138: #{salary_predictor_forward.1} parent=91 // pred_check_branch
          %915 = sbr.rel (%p913) target = $region140
        $region139: #{salary_predictor_forward.1} parent=91 // pred_region
          %v916 = vld [vmem:[%s0] sm:$0xff]
          %v917 = vld [vmem:[%s0 + $0x8] sm:$0xff]
          %v918 = vld [vmem:[#allocation4] sm:$0x1]
          %v919 = vld [vmem:[#allocation6] sm:$0x1]
          %920 = vadd.xlane.f32.xlu0 %v916
          %v921 = vpop.xlane.xlu0 %920
          %922 = vadd.xlane.f32.xlu0 %v917
          %v923 = vpop.xlane.xlu0 %922
          %v924 = vrcp.pop 128.0
          %v925 = vmul.f32 %v921, %v924
          %v926 = vmul.f32 %v923, %v924
          %v927 = vsub.f32 %v916, %v925
          %v928 = vsub.f32 %v917, %v926
          %v929 = vmul.f32 %v927, %v927
          %v930 = vmul.f32 %v928, %v928
          %931 = vadd.xlane.f32.xlu0 %v929
          %v932 = vpop.xlane.xlu0 %931
          %933 = vadd.xlane.f32.xlu0 %v930
          %v934 = vpop.xlane.xlu0 %933
          %v935 = vmul.f32 %v932, %v924
          %v936 = vmul.f32 %v934, %v924
          %v937 = vadd.f32 %v935, 1e-12
          %v938 = vadd.f32 %v936, 1e-12
          %v939 = vrsqrt.pop %v937
          %v940 = vrsqrt.pop %v938
          %v941 = vmul.f32 %v927, %v939
          %v942 = vmul.f32 %v928, %v940
          %v944 = vlaneseq
          %v945 = vshrl.u32 %v944, 7
          %v946 = vsub.s32 0, %v945
          %v947 = vrot.slane %v918, %v946
          %v949 = vmul.f32 %v941, %v947
          %v950 = vmul.f32 %v942, %v947
          %v952 = vlaneseq
          %v953 = vshrl.u32 %v952, 7
          %v954 = vsub.s32 0, %v953
          %v955 = vrot.slane %v919, %v954
          %v957 = vadd.f32 %v949, %v955
          %v958 = vadd.f32 %v950, %v955
          %959 = vst [vmem:[#allocation2] sm:$0xff] %v957
          %960 = vst [vmem:[#allocation2 + $0x8] sm:$0xff] %v958
        $region140: #{salary_predictor_forward.1} parent=91 // pred_fallthru
          _
        %v961 = vld [vmem:[#allocation2] sm:$0xff]
        %v962 = vld [vmem:[#allocation2 + $0x8] sm:$0xff]
        %v963 = vld [vmem:[%s741] sm:$0xff]
        %v964 = vld [vmem:[%s741 + $0x8] sm:$0xff]
        %v965 = vld [vmem:[%s741 + $0x10] sm:$0xff]
        %v966 = vld [vmem:[%s741 + $0x18] sm:$0xff]
        %v967 = vld [vmem:[%s741 + $0x20] sm:$0xff]
        %v968 = vld [vmem:[%s741 + $0x28] sm:$0xff]
        %v969 = vld [vmem:[%s741 + $0x30] sm:$0xff]
        %v970 = vld [vmem:[%s741 + $0x38] sm:$0xff]
        %v971 = vld [vmem:[%s741 + $0x40] sm:$0xff]
        %v972 = vld [vmem:[%s741 + $0x48] sm:$0xff]
        %v973 = vld [vmem:[%s741 + $0x50] sm:$0xff]
        %v974 = vld [vmem:[%s741 + $0x58] sm:$0xff]
        %v975 = vld [vmem:[%s741 + $0x60] sm:$0xff]
        %v976 = vld [vmem:[%s741 + $0x68] sm:$0xff]
        %v977 = vld [vmem:[%s741 + $0x70] sm:$0xff]
        %v978 = vld [vmem:[%s741 + $0x78] sm:$0xff]
        %v979 = vld [vmem:[%s741 + $0x80] sm:$0xff]
        %v980 = vld [vmem:[%s741 + $0x88] sm:$0xff]
        %v981 = vld [vmem:[%s741 + $0x90] sm:$0xff]
        %v982 = vld [vmem:[%s741 + $0x98] sm:$0xff]
        %v983 = vld [vmem:[%s741 + $0xa0] sm:$0xff]
        %v984 = vld [vmem:[%s741 + $0xa8] sm:$0xff]
        %v985 = vld [vmem:[%s741 + $0xb0] sm:$0xff]
        %v986 = vld [vmem:[%s741 + $0xb8] sm:$0xff]
        %v987 = vld [vmem:[%s741 + $0xc0] sm:$0xff]
        %v988 = vld [vmem:[%s741 + $0xc8] sm:$0xff]
        %v989 = vld [vmem:[%s741 + $0xd0] sm:$0xff]
        %v990 = vld [vmem:[%s741 + $0xd8] sm:$0xff]
        %v991 = vld [vmem:[%s741 + $0xe0] sm:$0xff]
        %v992 = vld [vmem:[%s741 + $0xe8] sm:$0xff]
        %v993 = vld [vmem:[%s741 + $0xf0] sm:$0xff]
        %v994 = vld [vmem:[%s741 + $0xf8] sm:$0xff]
        %v995 = vld [vmem:[%s741 + $0x100] sm:$0xff]
        %v996 = vld [vmem:[%s741 + $0x108] sm:$0xff]
        %v997 = vld [vmem:[%s741 + $0x110] sm:$0xff]
        %v998 = vld [vmem:[%s741 + $0x118] sm:$0xff]
        %v999 = vld [vmem:[%s741 + $0x120] sm:$0xff]
        %v1000 = vld [vmem:[%s741 + $0x128] sm:$0xff]
        %v1001 = vld [vmem:[%s741 + $0x130] sm:$0xff]
        %v1002 = vld [vmem:[%s741 + $0x138] sm:$0xff]
        %v1003 = vld [vmem:[%s741 + $0x140] sm:$0xff]
        %v1004 = vld [vmem:[%s741 + $0x148] sm:$0xff]
        %v1005 = vld [vmem:[%s741 + $0x150] sm:$0xff]
        %v1006 = vld [vmem:[%s741 + $0x158] sm:$0xff]
        %v1007 = vld [vmem:[%s741 + $0x160] sm:$0xff]
        %v1008 = vld [vmem:[%s741 + $0x168] sm:$0xff]
        %v1009 = vld [vmem:[%s741 + $0x170] sm:$0xff]
        %v1010 = vld [vmem:[%s741 + $0x178] sm:$0xff]
        %v1011 = vld [vmem:[%s895] sm:$0x3f]
        %v1012 = vpack.c.bf16 %v962, %v961
        %v1014 = vlaneseq
        %v1015 = vshrl.u32 %v1014, 7
        %v1016 = vsub.s32 0, %v1015
        %v1017 = vrot.slane %v1011, %v1016
        %v1018 = vlaneseq
        %v1019 = vshrl.u32 %v1018, 7
        %v1020 = vsub.s32 1, %v1019
        %v1021 = vrot.slane %v1011, %v1020
        %v1022 = vlaneseq
        %v1023 = vshrl.u32 %v1022, 7
        %v1024 = vsub.s32 2, %v1023
        %v1025 = vrot.slane %v1011, %v1024
        %v1026 = vlaneseq
        %v1027 = vshrl.u32 %v1026, 7
        %v1028 = vsub.s32 3, %v1027
        %v1029 = vrot.slane %v1011, %v1028
        %v1030 = vlaneseq
        %v1031 = vshrl.u32 %v1030, 7
        %v1032 = vsub.s32 4, %v1031
        %v1033 = vrot.slane %v1011, %v1032
        %v1034 = vlaneseq
        %v1035 = vshrl.u32 %v1034, 7
        %v1036 = vsub.s32 5, %v1035
        %v1037 = vrot.slane %v1011, %v1036
        %v1092 = vunpack.c.l.b16 %v963
        %v1093 = vunpack.c.h.b16 %v963
        %v1094 = vunpack.c.l.b16 %v964
        %v1095 = vunpack.c.h.b16 %v964
        %v1096 = vunpack.c.l.b16 %v965
        %v1097 = vunpack.c.h.b16 %v965
        %v1098 = vunpack.c.l.b16 %v966
        %v1099 = vunpack.c.h.b16 %v966
        %v1100 = vunpack.c.l.b16 %v967
        %v1101 = vunpack.c.h.b16 %v967
        %v1102 = vunpack.c.l.b16 %v968
        %v1103 = vunpack.c.h.b16 %v968
        %v1104 = vunpack.c.l.b16 %v969
        %v1105 = vunpack.c.h.b16 %v969
        %v1106 = vunpack.c.l.b16 %v970
        %v1107 = vunpack.c.h.b16 %v970
        %v1108 = vunpack.c.l.b16 %v971
        %v1109 = vunpack.c.h.b16 %v971
        %v1110 = vunpack.c.l.b16 %v972
        %v1111 = vunpack.c.h.b16 %v972
        %v1112 = vunpack.c.l.b16 %v973
        %v1113 = vunpack.c.h.b16 %v973
        %v1114 = vunpack.c.l.b16 %v974
        %v1115 = vunpack.c.h.b16 %v974
        %v1116 = vunpack.c.l.b16 %v975
        %v1117 = vunpack.c.h.b16 %v975
        %v1118 = vunpack.c.l.b16 %v976
        %v1119 = vunpack.c.h.b16 %v976
        %v1120 = vunpack.c.l.b16 %v977
        %v1121 = vunpack.c.h.b16 %v977
        %v1122 = vunpack.c.l.b16 %v978
        %v1123 = vunpack.c.h.b16 %v978
        %v1124 = vunpack.c.l.b16 %v979
        %v1125 = vunpack.c.h.b16 %v979
        %v1126 = vunpack.c.l.b16 %v980
        %v1127 = vunpack.c.h.b16 %v980
        %v1128 = vunpack.c.l.b16 %v981
        %v1129 = vunpack.c.h.b16 %v981
        %v1130 = vunpack.c.l.b16 %v982
        %v1131 = vunpack.c.h.b16 %v982
        %v1132 = vunpack.c.l.b16 %v983
        %v1133 = vunpack.c.h.b16 %v983
        %v1134 = vunpack.c.l.b16 %v984
        %v1135 = vunpack.c.h.b16 %v984
        %v1136 = vunpack.c.l.b16 %v985
        %v1137 = vunpack.c.h.b16 %v985
        %v1138 = vunpack.c.l.b16 %v986
        %v1139 = vunpack.c.h.b16 %v986
        %v1140 = vunpack.c.l.b16 %v987
        %v1141 = vunpack.c.h.b16 %v987
        %v1142 = vunpack.c.l.b16 %v988
        %v1143 = vunpack.c.h.b16 %v988
        %v1144 = vunpack.c.l.b16 %v989
        %v1145 = vunpack.c.h.b16 %v989
        %v1146 = vunpack.c.l.b16 %v990
        %v1147 = vunpack.c.h.b16 %v990
        %v1148 = vunpack.c.l.b16 %v991
        %v1149 = vunpack.c.h.b16 %v991
        %v1150 = vunpack.c.l.b16 %v992
        %v1151 = vunpack.c.h.b16 %v992
        %v1152 = vunpack.c.l.b16 %v993
        %v1153 = vunpack.c.h.b16 %v993
        %v1154 = vunpack.c.l.b16 %v994
        %v1155 = vunpack.c.h.b16 %v994
        %v1156 = vunpack.c.l.b16 %v995
        %v1157 = vunpack.c.h.b16 %v995
        %v1158 = vunpack.c.l.b16 %v996
        %v1159 = vunpack.c.h.b16 %v996
        %v1160 = vunpack.c.l.b16 %v997
        %v1161 = vunpack.c.h.b16 %v997
        %v1162 = vunpack.c.l.b16 %v998
        %v1163 = vunpack.c.h.b16 %v998
        %v1164 = vunpack.c.l.b16 %v999
        %v1165 = vunpack.c.h.b16 %v999
        %v1166 = vunpack.c.l.b16 %v1000
        %v1167 = vunpack.c.h.b16 %v1000
        %v1168 = vunpack.c.l.b16 %v1001
        %v1169 = vunpack.c.h.b16 %v1001
        %v1170 = vunpack.c.l.b16 %v1002
        %v1171 = vunpack.c.h.b16 %v1002
        %v1172 = vunpack.c.l.b16 %v1003
        %v1173 = vunpack.c.h.b16 %v1003
        %v1174 = vunpack.c.l.b16 %v1004
        %v1175 = vunpack.c.h.b16 %v1004
        %v1176 = vunpack.c.l.b16 %v1005
        %v1177 = vunpack.c.h.b16 %v1005
        %v1178 = vunpack.c.l.b16 %v1006
        %v1179 = vunpack.c.h.b16 %v1006
        %v1180 = vunpack.c.l.b16 %v1007
        %v1181 = vunpack.c.h.b16 %v1007
        %v1182 = vunpack.c.l.b16 %v1008
        %v1183 = vunpack.c.h.b16 %v1008
        %v1184 = vunpack.c.l.b16 %v1009
        %v1185 = vunpack.c.h.b16 %v1009
        %v1186 = vunpack.c.l.b16 %v1010
        %v1187 = vunpack.c.h.b16 %v1010
        %v1188 = vpack.c.b16 %v1098, %v1092
        %v1189 = vpack.c.b16 %v1099, %v1093
        %v1190 = vpack.c.b16 %v1100, %v1094
        %v1191 = vpack.c.b16 %v1101, %v1095
        %v1192 = vpack.c.b16 %v1102, %v1096
        %v1193 = vpack.c.b16 %v1103, %v1097
        %v1194 = vpack.c.b16 %v1110, %v1104
        %v1195 = vpack.c.b16 %v1111, %v1105
        %v1196 = vpack.c.b16 %v1112, %v1106
        %v1197 = vpack.c.b16 %v1113, %v1107
        %v1198 = vpack.c.b16 %v1114, %v1108
        %v1199 = vpack.c.b16 %v1115, %v1109
        %v1200 = vpack.c.b16 %v1122, %v1116
        %v1201 = vpack.c.b16 %v1123, %v1117
        %v1202 = vpack.c.b16 %v1124, %v1118
        %v1203 = vpack.c.b16 %v1125, %v1119
        %v1204 = vpack.c.b16 %v1126, %v1120
        %v1205 = vpack.c.b16 %v1127, %v1121
        %v1206 = vpack.c.b16 %v1134, %v1128
        %v1207 = vpack.c.b16 %v1135, %v1129
        %v1208 = vpack.c.b16 %v1136, %v1130
        %v1209 = vpack.c.b16 %v1137, %v1131
        %v1210 = vpack.c.b16 %v1138, %v1132
        %v1211 = vpack.c.b16 %v1139, %v1133
        %v1212 = vpack.c.b16 %v1146, %v1140
        %v1213 = vpack.c.b16 %v1147, %v1141
        %v1214 = vpack.c.b16 %v1148, %v1142
        %v1215 = vpack.c.b16 %v1149, %v1143
        %v1216 = vpack.c.b16 %v1150, %v1144
        %v1217 = vpack.c.b16 %v1151, %v1145
        %v1218 = vpack.c.b16 %v1158, %v1152
        %v1219 = vpack.c.b16 %v1159, %v1153
        %v1220 = vpack.c.b16 %v1160, %v1154
        %v1221 = vpack.c.b16 %v1161, %v1155
        %v1222 = vpack.c.b16 %v1162, %v1156
        %v1223 = vpack.c.b16 %v1163, %v1157
        %v1224 = vpack.c.b16 %v1170, %v1164
        %v1225 = vpack.c.b16 %v1171, %v1165
        %v1226 = vpack.c.b16 %v1172, %v1166
        %v1227 = vpack.c.b16 %v1173, %v1167
        %v1228 = vpack.c.b16 %v1174, %v1168
        %v1229 = vpack.c.b16 %v1175, %v1169
        %v1230 = vpack.c.b16 %v1182, %v1176
        %v1231 = vpack.c.b16 %v1183, %v1177
        %v1232 = vpack.c.b16 %v1184, %v1178
        %v1233 = vpack.c.b16 %v1185, %v1179
        %v1234 = vpack.c.b16 %v1186, %v1180
        %v1235 = vpack.c.b16 %v1187, %v1181
        %1284 = vmatprep.subr.bf16.mxu0 %v1231
        %1285 = vmatpush1.bf16.msra.mxu0 %v1230
        %1286 = vmatprep.subr.bf16.mxu0 %v1225
        %1287 = vmatpush1.bf16.msra.mxu0 %v1224
        %1288 = vmatprep.subr.bf16.mxu0 %v1219
        %1289 = vmatpush1.bf16.msra.mxu0 %v1218
        %1290 = vmatprep.subr.bf16.mxu0 %v1213
        %1291 = vmatpush1.bf16.msra.mxu0 %v1212
        %1292 = vmatprep.subr.bf16.mxu0 %v1207
        %1293 = vmatpush1.bf16.msra.mxu0 %v1206
        %1294 = vmatprep.subr.bf16.mxu0 %v1201
        %1295 = vmatpush1.bf16.msra.mxu0 %v1200
        %1296 = vmatprep.subr.bf16.mxu0 %v1195
        %1297 = vmatpush1.bf16.msra.mxu0 %v1194
        %1298 = vmatprep.subr.bf16.mxu0 %v1189
        %1299 = vmatpush1.bf16.msra.mxu0 %v1188
        %1300 = vmatprep.subr.bf16.mxu0 0
        %1301 = vmatpush2.bf16.msra.mxu0 0
        %1302 = vmatprep.subr.bf16.mxu0 0
        %1303 = vmatpush2.bf16.msra.mxu0 0
        %1304 = vmatprep.subr.bf16.mxu0 0
        %1305 = vmatpush2.bf16.msra.mxu0 0
        %1306 = vmatprep.subr.bf16.mxu0 0
        %1307 = vmatpush2.bf16.msra.mxu0 0
        %1308 = vmatprep.subr.bf16.mxu0 0
        %1309 = vmatpush2.bf16.msra.mxu0 0
        %1310 = vmatprep.subr.bf16.mxu0 0
        %1311 = vmatpush2.bf16.msra.mxu0 0
        %1312 = vmatprep.subr.bf16.mxu0 0
        %1313 = vmatpush2.bf16.msra.mxu0 0
        %1314 = vmatprep.subr.bf16.mxu0 0
        %1315 = vmatpush2.bf16.msra.mxu0 0
        %1316 = vmatprep.mubr.bf16.mxu0 0
        %1317 = vmatmul.mubr.bf16.gmra.mxu0 %v1012
        %v1318 = vpop.f32.mrf.mxu0
        %v1319 = vadd.f32 %v1017, %v1318
        %v1320 = vpop.f32.mrf.mxu0
        %v1321 = vadd.f32 %v1021, %v1320
        %v1322 = vpop.f32.mrf.mxu0
        %v1323 = vadd.f32 %v1017, %v1322
        %v1324 = vpop.f32.mrf.mxu0
        %v1325 = vadd.f32 %v1021, %v1324
        %1326 = vdwg.mxu0
        %1327 = vmatprep.subr.bf16.mxu0 %v1233
        %1328 = vmatpush1.bf16.msra.mxu0 %v1232
        %1329 = vmatprep.subr.bf16.mxu0 %v1227
        %1330 = vmatpush1.bf16.msra.mxu0 %v1226
        %1331 = vmatprep.subr.bf16.mxu0 %v1221
        %1332 = vmatpush1.bf16.msra.mxu0 %v1220
        %1333 = vmatprep.subr.bf16.mxu0 %v1215
        %1334 = vmatpush1.bf16.msra.mxu0 %v1214
        %1335 = vmatprep.subr.bf16.mxu0 %v1209
        %1336 = vmatpush1.bf16.msra.mxu0 %v1208
        %1337 = vmatprep.subr.bf16.mxu0 %v1203
        %1338 = vmatpush1.bf16.msra.mxu0 %v1202
        %1339 = vmatprep.subr.bf16.mxu0 %v1197
        %1340 = vmatpush1.bf16.msra.mxu0 %v1196
        %1341 = vmatprep.subr.bf16.mxu0 %v1191
        %1342 = vmatpush1.bf16.msra.mxu0 %v1190
        %1343 = vmatprep.subr.bf16.mxu0 0
        %1344 = vmatpush2.bf16.msra.mxu0 0
        %1345 = vmatprep.subr.bf16.mxu0 0
        %1346 = vmatpush2.bf16.msra.mxu0 0
        %1347 = vmatprep.subr.bf16.mxu0 0
        %1348 = vmatpush2.bf16.msra.mxu0 0
        %1349 = vmatprep.subr.bf16.mxu0 0
        %1350 = vmatpush2.bf16.msra.mxu0 0
        %1351 = vmatprep.subr.bf16.mxu0 0
        %1352 = vmatpush2.bf16.msra.mxu0 0
        %1353 = vmatprep.subr.bf16.mxu0 0
        %1354 = vmatpush2.bf16.msra.mxu0 0
        %1355 = vmatprep.subr.bf16.mxu0 0
        %1356 = vmatpush2.bf16.msra.mxu0 0
        %1357 = vmatprep.subr.bf16.mxu0 0
        %1358 = vmatpush2.bf16.msra.mxu0 0
        %1359 = vmatprep.mubr.bf16.mxu0 0
        %1360 = vmatmul.mubr.bf16.gmra.mxu0 %v1012
        %v1361 = vpop.f32.mrf.mxu0
        %v1362 = vadd.f32 %v1025, %v1361
        %v1363 = vpop.f32.mrf.mxu0
        %v1364 = vadd.f32 %v1029, %v1363
        %v1365 = vpop.f32.mrf.mxu0
        %v1366 = vadd.f32 %v1025, %v1365
        %v1367 = vpop.f32.mrf.mxu0
        %v1368 = vadd.f32 %v1029, %v1367
        %1369 = vdwg.mxu0
        %1370 = vmatprep.subr.bf16.mxu0 %v1235
        %1371 = vmatpush1.bf16.msra.mxu0 %v1234
        %1372 = vmatprep.subr.bf16.mxu0 %v1229
        %1373 = vmatpush1.bf16.msra.mxu0 %v1228
        %1374 = vmatprep.subr.bf16.mxu0 %v1223
        %1375 = vmatpush1.bf16.msra.mxu0 %v1222
        %1376 = vmatprep.subr.bf16.mxu0 %v1217
        %1377 = vmatpush1.bf16.msra.mxu0 %v1216
        %1378 = vmatprep.subr.bf16.mxu0 %v1211
        %1379 = vmatpush1.bf16.msra.mxu0 %v1210
        %1380 = vmatprep.subr.bf16.mxu0 %v1205
        %1381 = vmatpush1.bf16.msra.mxu0 %v1204
        %1382 = vmatprep.subr.bf16.mxu0 %v1199
        %1383 = vmatpush1.bf16.msra.mxu0 %v1198
        %1384 = vmatprep.subr.bf16.mxu0 %v1193
        %1385 = vmatpush1.bf16.msra.mxu0 %v1192
        %1386 = vmatprep.subr.bf16.mxu0 0
        %1387 = vmatpush2.bf16.msra.mxu0 0
        %1388 = vmatprep.subr.bf16.mxu0 0
        %1389 = vmatpush2.bf16.msra.mxu0 0
        %1390 = vmatprep.subr.bf16.mxu0 0
        %1391 = vmatpush2.bf16.msra.mxu0 0
        %1392 = vmatprep.subr.bf16.mxu0 0
        %1393 = vmatpush2.bf16.msra.mxu0 0
        %1394 = vmatprep.subr.bf16.mxu0 0
        %1395 = vmatpush2.bf16.msra.mxu0 0
        %1396 = vmatprep.subr.bf16.mxu0 0
        %1397 = vmatpush2.bf16.msra.mxu0 0
        %1398 = vmatprep.subr.bf16.mxu0 0
        %1399 = vmatpush2.bf16.msra.mxu0 0
        %1400 = vmatprep.subr.bf16.mxu0 0
        %1401 = vmatpush2.bf16.msra.mxu0 0
        %1402 = vmatprep.mubr.bf16.mxu0 0
        %1403 = vmatmul.mubr.bf16.gmra.mxu0 %v1012
        %v1404 = vpop.f32.mrf.mxu0
        %v1405 = vadd.f32 %v1033, %v1404
        %v1406 = vpop.f32.mrf.mxu0
        %v1407 = vadd.f32 %v1037, %v1406
        %v1408 = vpop.f32.mrf.mxu0
        %v1409 = vadd.f32 %v1033, %v1408
        %v1410 = vpop.f32.mrf.mxu0
        %v1411 = vadd.f32 %v1037, %v1410
        %1412 = vdwg.mxu0
        %v1413 = vld [vmem:[%s1] sm:$0x1]
        %1414 = vmatprep.subr.mxu0 0.0
        %1415 = vmatpush1.xpose.msra.mxu0 0.0
        %1416 = vmatprep.subr.mxu0 0.0
        %1417 = vmatpush1.xpose.msra.mxu0 0.0
        %1418 = vmatprep.subr.mxu0 0.0
        %1419 = vmatpush1.xpose.msra.mxu0 0.0
        %1420 = vmatprep.subr.mxu0 0.0
        %1421 = vmatpush1.xpose.msra.mxu0 0.0
        %1422 = vmatprep.subr.mxu0 0.0
        %1423 = vmatpush1.xpose.msra.mxu0 0.0
        %1424 = vmatprep.subr.mxu0 0.0
        %1425 = vmatpush1.xpose.msra.mxu0 0.0
        %1426 = vmatprep.subr.mxu0 0.0
        %1427 = vmatpush1.xpose.msra.mxu0 0.0
        %1428 = vmatprep.subr.mxu0 0.0
        %1429 = vmatpush1.xpose.msra.mxu0 0.0
        %1430 = vmatprep.subr.mxu0 0.0
        %1431 = vmatpush1.xpose.msra.mxu0 0.0
        %1432 = vmatprep.subr.mxu0 0.0
        %1433 = vmatpush1.xpose.msra.mxu0 0.0
        %1434 = vmatprep.subr.mxu0 0.0
        %1435 = vmatpush1.xpose.msra.mxu0 0.0
        %1436 = vmatprep.subr.mxu0 0.0
        %1437 = vmatpush1.xpose.msra.mxu0 0.0
        %1438 = vmatprep.subr.mxu0 0.0
        %1439 = vmatpush1.xpose.msra.mxu0 0.0
        %1440 = vmatprep.subr.mxu0 0.0
        %1441 = vmatpush1.xpose.msra.mxu0 0.0
        %1442 = vmatprep.subr.mxu0 0.0
        %1443 = vmatpush1.xpose.msra.mxu0 0.0
        %1444 = vmatprep.subr.mxu0 0.0
        %1445 = vmatpush1.xpose.msra.mxu0 %v1362
        %1446 = vmatprep.subr.mxu0 0.0
        %1447 = vmatpush2.xpose.msra.mxu0 0.0
        %1448 = vmatprep.subr.mxu0 0.0
        %1449 = vmatpush2.xpose.msra.mxu0 0.0
        %1450 = vmatprep.subr.mxu0 0.0
        %1451 = vmatpush2.xpose.msra.mxu0 0.0
        %1452 = vmatprep.subr.mxu0 0.0
        %1453 = vmatpush2.xpose.msra.mxu0 0.0
        %1454 = vmatprep.subr.mxu0 0.0
        %1455 = vmatpush2.xpose.msra.mxu0 0.0
        %1456 = vmatprep.subr.mxu0 0.0
        %1457 = vmatpush2.xpose.msra.mxu0 0.0
        %1458 = vmatprep.subr.mxu0 0.0
        %1459 = vmatpush2.xpose.msra.mxu0 0.0
        %1460 = vmatprep.subr.mxu0 0.0
        %1461 = vmatpush2.xpose.msra.mxu0 0.0
        %1462 = vmatprep.subr.mxu0 0.0
        %1463 = vmatpush2.xpose.msra.mxu0 0.0
        %1464 = vmatprep.subr.mxu0 0.0
        %1465 = vmatpush2.xpose.msra.mxu0 0.0
        %1466 = vmatprep.subr.mxu0 0.0
        %1467 = vmatpush2.xpose.msra.mxu0 0.0
        %1468 = vmatprep.subr.mxu0 0.0
        %1469 = vmatpush2.xpose.msra.mxu0 0.0
        %1470 = vmatprep.subr.mxu0 0.0
        %1471 = vmatpush2.xpose.msra.mxu0 0.0
        %1472 = vmatprep.subr.mxu0 0.0
        %1473 = vmatpush2.xpose.msra.mxu0 0.0
        %1474 = vmatprep.subr.mxu0 0.0
        %1475 = vmatpush2.xpose.msra.mxu0 0.0
        %1476 = vmatprep.subr.mxu0 0.0
        %1477 = vmatpush2.xpose.msra.mxu0 0.0
        %1478 = vmatprep.mubr.f32.mxu0 0.0
        %1479 = vmatmul.mubr.f32.gmra.mxu0 %v1319
        %v1480 = vpop.f32.mrf.mxu0
        %v1481 = vadd.f32 0.0, %v1480
        %v1482 = vpop.f32.mrf.mxu0
        %1483 = vdwg.mxu0
        %v1484 = vmul.f32 %v1481, 0.125
        %v1486 = vlaneseq
        %v1487 = vshrl.u32 %v1486, 7
        %v1488 = vsub.s32 0, %v1487
        %v1489 = vrot.slane %v1413, %v1488
        %v1491 = vadd.f32 %v1484, %v1489
        %vm1492 = vcmask 64512
        %v1493 = vsel %vm1492, %v1491, -inf
        %1494 = vmax.xlane.f32.xlu0 %v1493
        %v1495 = vpop.xlane.xlu0 %1494
        %v1496 = vsub.f32 %v1491, %v1495
        %v1497 = vmul.f32 %v1496, 1.442695
        %v1498 = vpow.pop %v1497
        %v1499 = vsel %vm1492, %v1498, 0.0
        %1500 = vadd.xlane.f32.xlu0 %v1499
        %v1501 = vpop.xlane.xlu0 %1500
        %v1502 = vrcp.pop %v1501
        %v1503 = vmul.f32 %v1498, %v1502
        %v1505 = vsel %vm1492, %v1503, 0
        %1507 = vmatprep.subr.mxu0 0.0
        %1508 = vmatpush1.msra.mxu0 0.0
        %1509 = vmatprep.subr.mxu0 0.0
        %1510 = vmatpush1.msra.mxu0 0.0
        %1511 = vmatprep.subr.mxu0 0.0
        %1512 = vmatpush1.msra.mxu0 0.0
        %1513 = vmatprep.subr.mxu0 0.0
        %1514 = vmatpush1.msra.mxu0 0.0
        %1515 = vmatprep.subr.mxu0 0.0
        %1516 = vmatpush1.msra.mxu0 0.0
        %1517 = vmatprep.subr.mxu0 0.0
        %1518 = vmatpush1.msra.mxu0 0.0
        %1519 = vmatprep.subr.mxu0 0.0
        %1520 = vmatpush1.msra.mxu0 0.0
        %1521 = vmatprep.subr.mxu0 0.0
        %1522 = vmatpush1.msra.mxu0 0.0
        %1523 = vmatprep.subr.mxu0 0.0
        %1524 = vmatpush1.msra.mxu0 0.0
        %1525 = vmatprep.subr.mxu0 0.0
        %1526 = vmatpush1.msra.mxu0 0.0
        %1527 = vmatprep.subr.mxu0 0.0
        %1528 = vmatpush1.msra.mxu0 0.0
        %1529 = vmatprep.subr.mxu0 0.0
        %1530 = vmatpush1.msra.mxu0 0.0
        %1531 = vmatprep.subr.mxu0 0.0
        %1532 = vmatpush1.msra.mxu0 0.0
        %1533 = vmatprep.subr.mxu0 0.0
        %1534 = vmatpush1.msra.mxu0 0.0
        %1535 = vmatprep.subr.mxu0 0.0
        %1536 = vmatpush1.msra.mxu0 0.0
        %1537 = vmatprep.subr.mxu0 0.0
        %1538 = vmatpush1.msra.mxu0 %v1405
        %1539 = vmatprep.subr.mxu0 0.0
        %1540 = vmatpush2.msra.mxu0 0.0
        %1541 = vmatprep.subr.mxu0 0.0
        %1542 = vmatpush2.msra.mxu0 0.0
        %1543 = vmatprep.subr.mxu0 0.0
        %1544 = vmatpush2.msra.mxu0 0.0
        %1545 = vmatprep.subr.mxu0 0.0
        %1546 = vmatpush2.msra.mxu0 0.0
        %1547 = vmatprep.subr.mxu0 0.0
        %1548 = vmatpush2.msra.mxu0 0.0
        %1549 = vmatprep.subr.mxu0 0.0
        %1550 = vmatpush2.msra.mxu0 0.0
        %1551 = vmatprep.subr.mxu0 0.0
        %1552 = vmatpush2.msra.mxu0 0.0
        %1553 = vmatprep.subr.mxu0 0.0
        %1554 = vmatpush2.msra.mxu0 0.0
        %1555 = vmatprep.subr.mxu0 0.0
        %1556 = vmatpush2.msra.mxu0 0.0
        %1557 = vmatprep.subr.mxu0 0.0
        %1558 = vmatpush2.msra.mxu0 0.0
        %1559 = vmatprep.subr.mxu0 0.0
        %1560 = vmatpush2.msra.mxu0 0.0
        %1561 = vmatprep.subr.mxu0 0.0
        %1562 = vmatpush2.msra.mxu0 0.0
        %1563 = vmatprep.subr.mxu0 0.0
        %1564 = vmatpush2.msra.mxu0 0.0
        %1565 = vmatprep.subr.mxu0 0.0
        %1566 = vmatpush2.msra.mxu0 0.0
        %1567 = vmatprep.subr.mxu0 0.0
        %1568 = vmatpush2.msra.mxu0 0.0
        %1569 = vmatprep.subr.mxu0 0.0
        %1570 = vmatpush2.msra.mxu0 0.0
        %1571 = vmatprep.mubr.f32.mxu0 0.0
        %1572 = vmatmul.mubr.f32.gmra.mxu0 %v1505
        %v1573 = vpop.f32.mrf.mxu0
        %v1574 = vadd.f32 0.0, %v1573
        %v1575 = vpop.f32.mrf.mxu0
        %1576 = vdwg.mxu0
        %1577 = vst [vmem:[#allocation3] sm:$0xff] %v1574
        %1578 = vmatprep.subr.mxu0 0.0
        %1579 = vmatpush1.xpose.msra.mxu0 0.0
        %1580 = vmatprep.subr.mxu0 0.0
        %1581 = vmatpush1.xpose.msra.mxu0 0.0
        %1582 = vmatprep.subr.mxu0 0.0
        %1583 = vmatpush1.xpose.msra.mxu0 0.0
        %1584 = vmatprep.subr.mxu0 0.0
        %1585 = vmatpush1.xpose.msra.mxu0 0.0
        %1586 = vmatprep.subr.mxu0 0.0
        %1587 = vmatpush1.xpose.msra.mxu0 0.0
        %1588 = vmatprep.subr.mxu0 0.0
        %1589 = vmatpush1.xpose.msra.mxu0 0.0
        %1590 = vmatprep.subr.mxu0 0.0
        %1591 = vmatpush1.xpose.msra.mxu0 0.0
        %1592 = vmatprep.subr.mxu0 0.0
        %1593 = vmatpush1.xpose.msra.mxu0 0.0
        %1594 = vmatprep.subr.mxu0 0.0
        %1595 = vmatpush1.xpose.msra.mxu0 0.0
        %1596 = vmatprep.subr.mxu0 0.0
        %1597 = vmatpush1.xpose.msra.mxu0 0.0
        %1598 = vmatprep.subr.mxu0 0.0
        %1599 = vmatpush1.xpose.msra.mxu0 0.0
        %1600 = vmatprep.subr.mxu0 0.0
        %1601 = vmatpush1.xpose.msra.mxu0 0.0
        %1602 = vmatprep.subr.mxu0 0.0
        %1603 = vmatpush1.xpose.msra.mxu0 0.0
        %1604 = vmatprep.subr.mxu0 0.0
        %1605 = vmatpush1.xpose.msra.mxu0 0.0
        %1606 = vmatprep.subr.mxu0 0.0
        %1607 = vmatpush1.xpose.msra.mxu0 0.0
        %1608 = vmatprep.subr.mxu0 0.0
        %1609 = vmatpush1.xpose.msra.mxu0 %v1364
        %1610 = vmatprep.subr.mxu0 0.0
        %1611 = vmatpush2.xpose.msra.mxu0 0.0
        %1612 = vmatprep.subr.mxu0 0.0
        %1613 = vmatpush2.xpose.msra.mxu0 0.0
        %1614 = vmatprep.subr.mxu0 0.0
        %1615 = vmatpush2.xpose.msra.mxu0 0.0
        %1616 = vmatprep.subr.mxu0 0.0
        %1617 = vmatpush2.xpose.msra.mxu0 0.0
        %1618 = vmatprep.subr.mxu0 0.0
        %1619 = vmatpush2.xpose.msra.mxu0 0.0
        %1620 = vmatprep.subr.mxu0 0.0
        %1621 = vmatpush2.xpose.msra.mxu0 0.0
        %1622 = vmatprep.subr.mxu0 0.0
        %1623 = vmatpush2.xpose.msra.mxu0 0.0
        %1624 = vmatprep.subr.mxu0 0.0
        %1625 = vmatpush2.xpose.msra.mxu0 0.0
        %1626 = vmatprep.subr.mxu0 0.0
        %1627 = vmatpush2.xpose.msra.mxu0 0.0
        %1628 = vmatprep.subr.mxu0 0.0
        %1629 = vmatpush2.xpose.msra.mxu0 0.0
        %1630 = vmatprep.subr.mxu0 0.0
        %1631 = vmatpush2.xpose.msra.mxu0 0.0
        %1632 = vmatprep.subr.mxu0 0.0
        %1633 = vmatpush2.xpose.msra.mxu0 0.0
        %1634 = vmatprep.subr.mxu0 0.0
        %1635 = vmatpush2.xpose.msra.mxu0 0.0
        %1636 = vmatprep.subr.mxu0 0.0
        %1637 = vmatpush2.xpose.msra.mxu0 0.0
        %1638 = vmatprep.subr.mxu0 0.0
        %1639 = vmatpush2.xpose.msra.mxu0 0.0
        %1640 = vmatprep.subr.mxu0 0.0
        %1641 = vmatpush2.xpose.msra.mxu0 0.0
        %1642 = vmatprep.mubr.f32.mxu0 0.0
        %1643 = vmatmul.mubr.f32.gmra.mxu0 %v1321
        %v1644 = vpop.f32.mrf.mxu0
        %v1645 = vadd.f32 0.0, %v1644
        %v1646 = vpop.f32.mrf.mxu0
        %1647 = vdwg.mxu0
        %v1648 = vmul.f32 %v1645, 0.125
        %v1649 = vadd.f32 %v1648, %v1489
        %v1650 = vsel %vm1492, %v1649, -inf
        %1651 = vmax.xlane.f32.xlu0 %v1650
        %v1652 = vpop.xlane.xlu0 %1651
        %v1653 = vsub.f32 %v1649, %v1652
        %v1654 = vmul.f32 %v1653, 1.442695
        %v1655 = vpow.pop %v1654
        %v1656 = vsel %vm1492, %v1655, 0.0
        %1657 = vadd.xlane.f32.xlu0 %v1656
        %v1658 = vpop.xlane.xlu0 %1657
        %v1659 = vrcp.pop %v1658
        %v1660 = vmul.f32 %v1655, %v1659
        %v1662 = vsel %vm1492, %v1660, 0
        %1664 = vmatprep.subr.mxu0 0.0
        %1665 = vmatpush1.msra.mxu0 0.0
        %1666 = vmatprep.subr.mxu0 0.0
        %1667 = vmatpush1.msra.mxu0 0.0
        %1668 = vmatprep.subr.mxu0 0.0
        %1669 = vmatpush1.msra.mxu0 0.0
        %1670 = vmatprep.subr.mxu0 0.0
        %1671 = vmatpush1.msra.mxu0 0.0
        %1672 = vmatprep.subr.mxu0 0.0
        %1673 = vmatpush1.msra.mxu0 0.0
        %1674 = vmatprep.subr.mxu0 0.0
        %1675 = vmatpush1.msra.mxu0 0.0
        %1676 = vmatprep.subr.mxu0 0.0
        %1677 = vmatpush1.msra.mxu0 0.0
        %1678 = vmatprep.subr.mxu0 0.0
        %1679 = vmatpush1.msra.mxu0 0.0
        %1680 = vmatprep.subr.mxu0 0.0
        %1681 = vmatpush1.msra.mxu0 0.0
        %1682 = vmatprep.subr.mxu0 0.0
        %1683 = vmatpush1.msra.mxu0 0.0
        %1684 = vmatprep.subr.mxu0 0.0
        %1685 = vmatpush1.msra.mxu0 0.0
        %1686 = vmatprep.subr.mxu0 0.0
        %1687 = vmatpush1.msra.mxu0 0.0
        %1688 = vmatprep.subr.mxu0 0.0
        %1689 = vmatpush1.msra.mxu0 0.0
        %1690 = vmatprep.subr.mxu0 0.0
        %1691 = vmatpush1.msra.mxu0 0.0
        %1692 = vmatprep.subr.mxu0 0.0
        %1693 = vmatpush1.msra.mxu0 0.0
        %1694 = vmatprep.subr.mxu0 0.0
        %1695 = vmatpush1.msra.mxu0 %v1407
        %1696 = vmatprep.subr.mxu0 0.0
        %1697 = vmatpush2.msra.mxu0 0.0
        %1698 = vmatprep.subr.mxu0 0.0
        %1699 = vmatpush2.msra.mxu0 0.0
        %1700 = vmatprep.subr.mxu0 0.0
        %1701 = vmatpush2.msra.mxu0 0.0
        %1702 = vmatprep.subr.mxu0 0.0
        %1703 = vmatpush2.msra.mxu0 0.0
        %1704 = vmatprep.subr.mxu0 0.0
        %1705 = vmatpush2.msra.mxu0 0.0
        %1706 = vmatprep.subr.mxu0 0.0
        %1707 = vmatpush2.msra.mxu0 0.0
        %1708 = vmatprep.subr.mxu0 0.0
        %1709 = vmatpush2.msra.mxu0 0.0
        %1710 = vmatprep.subr.mxu0 0.0
        %1711 = vmatpush2.msra.mxu0 0.0
        %1712 = vmatprep.subr.mxu0 0.0
        %1713 = vmatpush2.msra.mxu0 0.0
        %1714 = vmatprep.subr.mxu0 0.0
        %1715 = vmatpush2.msra.mxu0 0.0
        %1716 = vmatprep.subr.mxu0 0.0
        %1717 = vmatpush2.msra.mxu0 0.0
        %1718 = vmatprep.subr.mxu0 0.0
        %1719 = vmatpush2.msra.mxu0 0.0
        %1720 = vmatprep.subr.mxu0 0.0
        %1721 = vmatpush2.msra.mxu0 0.0
        %1722 = vmatprep.subr.mxu0 0.0
        %1723 = vmatpush2.msra.mxu0 0.0
        %1724 = vmatprep.subr.mxu0 0.0
        %1725 = vmatpush2.msra.mxu0 0.0
        %1726 = vmatprep.subr.mxu0 0.0
        %1727 = vmatpush2.msra.mxu0 0.0
        %1728 = vmatprep.mubr.f32.mxu0 0.0
        %1729 = vmatmul.mubr.f32.gmra.mxu0 %v1662
        %v1730 = vpop.f32.mrf.mxu0
        %v1731 = vadd.f32 0.0, %v1730
        %v1732 = vpop.f32.mrf.mxu0
        %1733 = vdwg.mxu0
        %1734 = vst [vmem:[#allocation3 + $0x8] sm:$0xff] %v1731
        %s1735 = scalar_lea.vmem %s1, 1
        %v1736 = vld [vmem:[%s1735] sm:$0x1]
        %1737 = vmatprep.subr.mxu0 0.0
        %1738 = vmatpush1.xpose.msra.mxu0 0.0
        %1739 = vmatprep.subr.mxu0 0.0
        %1740 = vmatpush1.xpose.msra.mxu0 0.0
        %1741 = vmatprep.subr.mxu0 0.0
        %1742 = vmatpush1.xpose.msra.mxu0 0.0
        %1743 = vmatprep.subr.mxu0 0.0
        %1744 = vmatpush1.xpose.msra.mxu0 0.0
        %1745 = vmatprep.subr.mxu0 0.0
        %1746 = vmatpush1.xpose.msra.mxu0 0.0
        %1747 = vmatprep.subr.mxu0 0.0
        %1748 = vmatpush1.xpose.msra.mxu0 0.0
        %1749 = vmatprep.subr.mxu0 0.0
        %1750 = vmatpush1.xpose.msra.mxu0 0.0
        %1751 = vmatprep.subr.mxu0 0.0
        %1752 = vmatpush1.xpose.msra.mxu0 0.0
        %1753 = vmatprep.subr.mxu0 0.0
        %1754 = vmatpush1.xpose.msra.mxu0 0.0
        %1755 = vmatprep.subr.mxu0 0.0
        %1756 = vmatpush1.xpose.msra.mxu0 0.0
        %1757 = vmatprep.subr.mxu0 0.0
        %1758 = vmatpush1.xpose.msra.mxu0 0.0
        %1759 = vmatprep.subr.mxu0 0.0
        %1760 = vmatpush1.xpose.msra.mxu0 0.0
        %1761 = vmatprep.subr.mxu0 0.0
        %1762 = vmatpush1.xpose.msra.mxu0 0.0
        %1763 = vmatprep.subr.mxu0 0.0
        %1764 = vmatpush1.xpose.msra.mxu0 0.0
        %1765 = vmatprep.subr.mxu0 0.0
        %1766 = vmatpush1.xpose.msra.mxu0 0.0
        %1767 = vmatprep.subr.mxu0 0.0
        %1768 = vmatpush1.xpose.msra.mxu0 %v1366
        %1769 = vmatprep.subr.mxu0 0.0
        %1770 = vmatpush2.xpose.msra.mxu0 0.0
        %1771 = vmatprep.subr.mxu0 0.0
        %1772 = vmatpush2.xpose.msra.mxu0 0.0
        %1773 = vmatprep.subr.mxu0 0.0
        %1774 = vmatpush2.xpose.msra.mxu0 0.0
        %1775 = vmatprep.subr.mxu0 0.0
        %1776 = vmatpush2.xpose.msra.mxu0 0.0
        %1777 = vmatprep.subr.mxu0 0.0
        %1778 = vmatpush2.xpose.msra.mxu0 0.0
        %1779 = vmatprep.subr.mxu0 0.0
        %1780 = vmatpush2.xpose.msra.mxu0 0.0
        %1781 = vmatprep.subr.mxu0 0.0
        %1782 = vmatpush2.xpose.msra.mxu0 0.0
        %1783 = vmatprep.subr.mxu0 0.0
        %1784 = vmatpush2.xpose.msra.mxu0 0.0
        %1785 = vmatprep.subr.mxu0 0.0
        %1786 = vmatpush2.xpose.msra.mxu0 0.0
        %1787 = vmatprep.subr.mxu0 0.0
        %1788 = vmatpush2.xpose.msra.mxu0 0.0
        %1789 = vmatprep.subr.mxu0 0.0
        %1790 = vmatpush2.xpose.msra.mxu0 0.0
        %1791 = vmatprep.subr.mxu0 0.0
        %1792 = vmatpush2.xpose.msra.mxu0 0.0
        %1793 = vmatprep.subr.mxu0 0.0
        %1794 = vmatpush2.xpose.msra.mxu0 0.0
        %1795 = vmatprep.subr.mxu0 0.0
        %1796 = vmatpush2.xpose.msra.mxu0 0.0
        %1797 = vmatprep.subr.mxu0 0.0
        %1798 = vmatpush2.xpose.msra.mxu0 0.0
        %1799 = vmatprep.subr.mxu0 0.0
        %1800 = vmatpush2.xpose.msra.mxu0 0.0
        %1801 = vmatprep.mubr.f32.mxu0 0.0
        %1802 = vmatmul.mubr.f32.gmra.mxu0 %v1323
        %v1803 = vpop.f32.mrf.mxu0
        %v1804 = vadd.f32 0.0, %v1803
        %v1805 = vpop.f32.mrf.mxu0
        %1806 = vdwg.mxu0
        %v1807 = vmul.f32 %v1804, 0.125
        %v1809 = vlaneseq
        %v1810 = vshrl.u32 %v1809, 7
        %v1811 = vsub.s32 0, %v1810
        %v1812 = vrot.slane %v1736, %v1811
        %v1814 = vadd.f32 %v1807, %v1812
        %v1815 = vsel %vm1492, %v1814, -inf
        %1816 = vmax.xlane.f32.xlu0 %v1815
        %v1817 = vpop.xlane.xlu0 %1816
        %v1818 = vsub.f32 %v1814, %v1817
        %v1819 = vmul.f32 %v1818, 1.442695
        %v1820 = vpow.pop %v1819
        %v1821 = vsel %vm1492, %v1820, 0.0
        %1822 = vadd.xlane.f32.xlu0 %v1821
        %v1823 = vpop.xlane.xlu0 %1822
        %v1824 = vrcp.pop %v1823
        %v1825 = vmul.f32 %v1820, %v1824
        %v1827 = vsel %vm1492, %v1825, 0
        %1829 = vmatprep.subr.mxu0 0.0
        %1830 = vmatpush1.msra.mxu0 0.0
        %1831 = vmatprep.subr.mxu0 0.0
        %1832 = vmatpush1.msra.mxu0 0.0
        %1833 = vmatprep.subr.mxu0 0.0
        %1834 = vmatpush1.msra.mxu0 0.0
        %1835 = vmatprep.subr.mxu0 0.0
        %1836 = vmatpush1.msra.mxu0 0.0
        %1837 = vmatprep.subr.mxu0 0.0
        %1838 = vmatpush1.msra.mxu0 0.0
        %1839 = vmatprep.subr.mxu0 0.0
        %1840 = vmatpush1.msra.mxu0 0.0
        %1841 = vmatprep.subr.mxu0 0.0
        %1842 = vmatpush1.msra.mxu0 0.0
        %1843 = vmatprep.subr.mxu0 0.0
        %1844 = vmatpush1.msra.mxu0 0.0
        %1845 = vmatprep.subr.mxu0 0.0
        %1846 = vmatpush1.msra.mxu0 0.0
        %1847 = vmatprep.subr.mxu0 0.0
        %1848 = vmatpush1.msra.mxu0 0.0
        %1849 = vmatprep.subr.mxu0 0.0
        %1850 = vmatpush1.msra.mxu0 0.0
        %1851 = vmatprep.subr.mxu0 0.0
        %1852 = vmatpush1.msra.mxu0 0.0
        %1853 = vmatprep.subr.mxu0 0.0
        %1854 = vmatpush1.msra.mxu0 0.0
        %1855 = vmatprep.subr.mxu0 0.0
        %1856 = vmatpush1.msra.mxu0 0.0
        %1857 = vmatprep.subr.mxu0 0.0
        %1858 = vmatpush1.msra.mxu0 0.0
        %1859 = vmatprep.subr.mxu0 0.0
        %1860 = vmatpush1.msra.mxu0 %v1409
        %1861 = vmatprep.subr.mxu0 0.0
        %1862 = vmatpush2.msra.mxu0 0.0
        %1863 = vmatprep.subr.mxu0 0.0
        %1864 = vmatpush2.msra.mxu0 0.0
        %1865 = vmatprep.subr.mxu0 0.0
        %1866 = vmatpush2.msra.mxu0 0.0
        %1867 = vmatprep.subr.mxu0 0.0
        %1868 = vmatpush2.msra.mxu0 0.0
        %1869 = vmatprep.subr.mxu0 0.0
        %1870 = vmatpush2.msra.mxu0 0.0
        %1871 = vmatprep.subr.mxu0 0.0
        %1872 = vmatpush2.msra.mxu0 0.0
        %1873 = vmatprep.subr.mxu0 0.0
        %1874 = vmatpush2.msra.mxu0 0.0
        %1875 = vmatprep.subr.mxu0 0.0
        %1876 = vmatpush2.msra.mxu0 0.0
        %1877 = vmatprep.subr.mxu0 0.0
        %1878 = vmatpush2.msra.mxu0 0.0
        %1879 = vmatprep.subr.mxu0 0.0
        %1880 = vmatpush2.msra.mxu0 0.0
        %1881 = vmatprep.subr.mxu0 0.0
        %1882 = vmatpush2.msra.mxu0 0.0
        %1883 = vmatprep.subr.mxu0 0.0
        %1884 = vmatpush2.msra.mxu0 0.0
        %1885 = vmatprep.subr.mxu0 0.0
        %1886 = vmatpush2.msra.mxu0 0.0
        %1887 = vmatprep.subr.mxu0 0.0
        %1888 = vmatpush2.msra.mxu0 0.0
        %1889 = vmatprep.subr.mxu0 0.0
        %1890 = vmatpush2.msra.mxu0 0.0
        %1891 = vmatprep.subr.mxu0 0.0
        %1892 = vmatpush2.msra.mxu0 0.0
        %1893 = vmatprep.mubr.f32.mxu0 0.0
        %1894 = vmatmul.mubr.f32.gmra.mxu0 %v1827
        %v1895 = vpop.f32.mrf.mxu0
        %v1896 = vadd.f32 0.0, %v1895
        %v1897 = vpop.f32.mrf.mxu0
        %1898 = vdwg.mxu0
        %1899 = vst [vmem:[#allocation3 + $0x10] sm:$0xff] %v1896
        %1900 = vmatprep.subr.mxu0 0.0
        %1901 = vmatpush1.xpose.msra.mxu0 0.0
        %1902 = vmatprep.subr.mxu0 0.0
        %1903 = vmatpush1.xpose.msra.mxu0 0.0
        %1904 = vmatprep.subr.mxu0 0.0
        %1905 = vmatpush1.xpose.msra.mxu0 0.0
        %1906 = vmatprep.subr.mxu0 0.0
        %1907 = vmatpush1.xpose.msra.mxu0 0.0
        %1908 = vmatprep.subr.mxu0 0.0
        %1909 = vmatpush1.xpose.msra.mxu0 0.0
        %1910 = vmatprep.subr.mxu0 0.0
        %1911 = vmatpush1.xpose.msra.mxu0 0.0
        %1912 = vmatprep.subr.mxu0 0.0
        %1913 = vmatpush1.xpose.msra.mxu0 0.0
        %1914 = vmatprep.subr.mxu0 0.0
        %1915 = vmatpush1.xpose.msra.mxu0 0.0
        %1916 = vmatprep.subr.mxu0 0.0
        %1917 = vmatpush1.xpose.msra.mxu0 0.0
        %1918 = vmatprep.subr.mxu0 0.0
        %1919 = vmatpush1.xpose.msra.mxu0 0.0
        %1920 = vmatprep.subr.mxu0 0.0
        %1921 = vmatpush1.xpose.msra.mxu0 0.0
        %1922 = vmatprep.subr.mxu0 0.0
        %1923 = vmatpush1.xpose.msra.mxu0 0.0
        %1924 = vmatprep.subr.mxu0 0.0
        %1925 = vmatpush1.xpose.msra.mxu0 0.0
        %1926 = vmatprep.subr.mxu0 0.0
        %1927 = vmatpush1.xpose.msra.mxu0 0.0
        %1928 = vmatprep.subr.mxu0 0.0
        %1929 = vmatpush1.xpose.msra.mxu0 0.0
        %1930 = vmatprep.subr.mxu0 0.0
        %1931 = vmatpush1.xpose.msra.mxu0 %v1368
        %1932 = vmatprep.subr.mxu0 0.0
        %1933 = vmatpush2.xpose.msra.mxu0 0.0
        %1934 = vmatprep.subr.mxu0 0.0
        %1935 = vmatpush2.xpose.msra.mxu0 0.0
        %1936 = vmatprep.subr.mxu0 0.0
        %1937 = vmatpush2.xpose.msra.mxu0 0.0
        %1938 = vmatprep.subr.mxu0 0.0
        %1939 = vmatpush2.xpose.msra.mxu0 0.0
        %1940 = vmatprep.subr.mxu0 0.0
        %1941 = vmatpush2.xpose.msra.mxu0 0.0
        %1942 = vmatprep.subr.mxu0 0.0
        %1943 = vmatpush2.xpose.msra.mxu0 0.0
        %1944 = vmatprep.subr.mxu0 0.0
        %1945 = vmatpush2.xpose.msra.mxu0 0.0
        %1946 = vmatprep.subr.mxu0 0.0
        %1947 = vmatpush2.xpose.msra.mxu0 0.0
        %1948 = vmatprep.subr.mxu0 0.0
        %1949 = vmatpush2.xpose.msra.mxu0 0.0
        %1950 = vmatprep.subr.mxu0 0.0
        %1951 = vmatpush2.xpose.msra.mxu0 0.0
        %1952 = vmatprep.subr.mxu0 0.0
        %1953 = vmatpush2.xpose.msra.mxu0 0.0
        %1954 = vmatprep.subr.mxu0 0.0
        %1955 = vmatpush2.xpose.msra.mxu0 0.0
        %1956 = vmatprep.subr.mxu0 0.0
        %1957 = vmatpush2.xpose.msra.mxu0 0.0
        %1958 = vmatprep.subr.mxu0 0.0
        %1959 = vmatpush2.xpose.msra.mxu0 0.0
        %1960 = vmatprep.subr.mxu0 0.0
        %1961 = vmatpush2.xpose.msra.mxu0 0.0
        %1962 = vmatprep.subr.mxu0 0.0
        %1963 = vmatpush2.xpose.msra.mxu0 0.0
        %1964 = vmatprep.mubr.f32.mxu0 0.0
        %1965 = vmatmul.mubr.f32.gmra.mxu0 %v1325
        %v1966 = vpop.f32.mrf.mxu0
        %v1967 = vadd.f32 0.0, %v1966
        %v1968 = vpop.f32.mrf.mxu0
        %1969 = vdwg.mxu0
        %v1970 = vmul.f32 %v1967, 0.125
        %v1971 = vadd.f32 %v1970, %v1812
        %v1972 = vsel %vm1492, %v1971, -inf
        %1973 = vmax.xlane.f32.xlu0 %v1972
        %v1974 = vpop.xlane.xlu0 %1973
        %v1975 = vsub.f32 %v1971, %v1974
        %v1976 = vmul.f32 %v1975, 1.442695
        %v1977 = vpow.pop %v1976
        %v1978 = vsel %vm1492, %v1977, 0.0
        %1979 = vadd.xlane.f32.xlu0 %v1978
        %v1980 = vpop.xlane.xlu0 %1979
        %v1981 = vrcp.pop %v1980
        %v1982 = vmul.f32 %v1977, %v1981
        %v1984 = vsel %vm1492, %v1982, 0
        %1986 = vmatprep.subr.mxu0 0.0
        %1987 = vmatpush1.msra.mxu0 0.0
        %1988 = vmatprep.subr.mxu0 0.0
        %1989 = vmatpush1.msra.mxu0 0.0
        %1990 = vmatprep.subr.mxu0 0.0
        %1991 = vmatpush1.msra.mxu0 0.0
        %1992 = vmatprep.subr.mxu0 0.0
        %1993 = vmatpush1.msra.mxu0 0.0
        %1994 = vmatprep.subr.mxu0 0.0
        %1995 = vmatpush1.msra.mxu0 0.0
        %1996 = vmatprep.subr.mxu0 0.0
        %1997 = vmatpush1.msra.mxu0 0.0
        %1998 = vmatprep.subr.mxu0 0.0
        %1999 = vmatpush1.msra.mxu0 0.0
        %2000 = vmatprep.subr.mxu0 0.0
        %2001 = vmatpush1.msra.mxu0 0.0
        %2002 = vmatprep.subr.mxu0 0.0
        %2003 = vmatpush1.msra.mxu0 0.0
        %2004 = vmatprep.subr.mxu0 0.0
        %2005 = vmatpush1.msra.mxu0 0.0
        %2006 = vmatprep.subr.mxu0 0.0
        %2007 = vmatpush1.msra.mxu0 0.0
        %2008 = vmatprep.subr.mxu0 0.0
        %2009 = vmatpush1.msra.mxu0 0.0
        %2010 = vmatprep.subr.mxu0 0.0
        %2011 = vmatpush1.msra.mxu0 0.0
        %2012 = vmatprep.subr.mxu0 0.0
        %2013 = vmatpush1.msra.mxu0 0.0
        %2014 = vmatprep.subr.mxu0 0.0
        %2015 = vmatpush1.msra.mxu0 0.0
        %2016 = vmatprep.subr.mxu0 0.0
        %2017 = vmatpush1.msra.mxu0 %v1411
        %2018 = vmatprep.subr.mxu0 0.0
        %2019 = vmatpush2.msra.mxu0 0.0
        %2020 = vmatprep.subr.mxu0 0.0
        %2021 = vmatpush2.msra.mxu0 0.0
        %2022 = vmatprep.subr.mxu0 0.0
        %2023 = vmatpush2.msra.mxu0 0.0
        %2024 = vmatprep.subr.mxu0 0.0
        %2025 = vmatpush2.msra.mxu0 0.0
        %2026 = vmatprep.subr.mxu0 0.0
        %2027 = vmatpush2.msra.mxu0 0.0
        %2028 = vmatprep.subr.mxu0 0.0
        %2029 = vmatpush2.msra.mxu0 0.0
        %2030 = vmatprep.subr.mxu0 0.0
        %2031 = vmatpush2.msra.mxu0 0.0
        %2032 = vmatprep.subr.mxu0 0.0
        %2033 = vmatpush2.msra.mxu0 0.0
        %2034 = vmatprep.subr.mxu0 0.0
        %2035 = vmatpush2.msra.mxu0 0.0
        %2036 = vmatprep.subr.mxu0 0.0
        %2037 = vmatpush2.msra.mxu0 0.0
        %2038 = vmatprep.subr.mxu0 0.0
        %2039 = vmatpush2.msra.mxu0 0.0
        %2040 = vmatprep.subr.mxu0 0.0
        %2041 = vmatpush2.msra.mxu0 0.0
        %2042 = vmatprep.subr.mxu0 0.0
        %2043 = vmatpush2.msra.mxu0 0.0
        %2044 = vmatprep.subr.mxu0 0.0
        %2045 = vmatpush2.msra.mxu0 0.0
        %2046 = vmatprep.subr.mxu0 0.0
        %2047 = vmatpush2.msra.mxu0 0.0
        %2048 = vmatprep.subr.mxu0 0.0
        %2049 = vmatpush2.msra.mxu0 0.0
        %2050 = vmatprep.mubr.f32.mxu0 0.0
        %2051 = vmatmul.mubr.f32.gmra.mxu0 %v1984
        %v2052 = vpop.f32.mrf.mxu0
        %v2053 = vadd.f32 0.0, %v2052
        %v2054 = vpop.f32.mrf.mxu0
        %2055 = vdwg.mxu0
        %2056 = vst [vmem:[#allocation3 + $0x18] sm:$0xff] %v2053
        %v2057 = vld [vmem:[#allocation3] sm:$0xff]
        %v2058 = vld [vmem:[#allocation3 + $0x8] sm:$0xff]
        %v2059 = vld [vmem:[#allocation3 + $0x10] sm:$0xff]
        %v2060 = vld [vmem:[#allocation3 + $0x18] sm:$0xff]
        %v2061 = vld [vmem:[%s900] sm:$0xf]
        %v2062 = vld [vmem:[%s900 + $0x4] sm:$0xf]
        %v2063 = vld [vmem:[%s900 + $0x8] sm:$0xf]
        %v2064 = vld [vmem:[%s900 + $0xc] sm:$0xf]
        %v2065 = vld [vmem:[%s900 + $0x10] sm:$0xf]
        %v2066 = vld [vmem:[%s900 + $0x14] sm:$0xf]
        %v2067 = vld [vmem:[%s900 + $0x18] sm:$0xf]
        %v2068 = vld [vmem:[%s900 + $0x1c] sm:$0xf]
        %v2069 = vld [vmem:[%s900 + $0x20] sm:$0xf]
        %v2070 = vld [vmem:[%s900 + $0x24] sm:$0xf]
        %v2071 = vld [vmem:[%s900 + $0x28] sm:$0xf]
        %v2072 = vld [vmem:[%s900 + $0x2c] sm:$0xf]
        %v2073 = vld [vmem:[%s900 + $0x30] sm:$0xf]
        %v2074 = vld [vmem:[%s900 + $0x34] sm:$0xf]
        %v2075 = vld [vmem:[%s900 + $0x38] sm:$0xf]
        %v2076 = vld [vmem:[%s900 + $0x3c] sm:$0xf]
        %v2077 = vld [vmem:[%s900 + $0x40] sm:$0xf]
        %v2078 = vld [vmem:[%s900 + $0x44] sm:$0xf]
        %v2079 = vld [vmem:[%s900 + $0x48] sm:$0xf]
        %v2080 = vld [vmem:[%s900 + $0x4c] sm:$0xf]
        %v2081 = vld [vmem:[%s900 + $0x50] sm:$0xf]
        %v2082 = vld [vmem:[%s900 + $0x54] sm:$0xf]
        %v2083 = vld [vmem:[%s900 + $0x58] sm:$0xf]
        %v2084 = vld [vmem:[%s900 + $0x5c] sm:$0xf]
        %v2085 = vld [vmem:[%s900 + $0x60] sm:$0xf]
        %v2086 = vld [vmem:[%s900 + $0x64] sm:$0xf]
        %v2087 = vld [vmem:[%s900 + $0x68] sm:$0xf]
        %v2088 = vld [vmem:[%s900 + $0x6c] sm:$0xf]
        %v2089 = vld [vmem:[%s900 + $0x70] sm:$0xf]
        %v2090 = vld [vmem:[%s900 + $0x74] sm:$0xf]
        %v2091 = vld [vmem:[%s900 + $0x78] sm:$0xf]
        %v2092 = vld [vmem:[%s900 + $0x7c] sm:$0xf]
        %v2093 = vld [vmem:[%s903] sm:$0x1]
        %v2094 = vpack.c.bf16 %v2059, %v2057
        %v2095 = vpack.c.bf16 %v2060, %v2058
        %v2097 = vlaneseq
        %v2098 = vshrl.u32 %v2097, 7
        %v2099 = vsub.s32 0, %v2098
        %v2100 = vrot.slane %v2093, %v2099
        %v2134 = vunpack.c.l.b16 %v2061
        %v2135 = vunpack.c.l.b16 %v2062
        %v2136 = vunpack.c.l.b16 %v2063
        %v2137 = vunpack.c.l.b16 %v2064
        %v2138 = vunpack.c.l.b16 %v2065
        %v2139 = vunpack.c.l.b16 %v2066
        %v2140 = vunpack.c.l.b16 %v2067
        %v2141 = vunpack.c.l.b16 %v2068
        %v2142 = vunpack.c.l.b16 %v2069
        %v2143 = vunpack.c.l.b16 %v2070
        %v2144 = vunpack.c.l.b16 %v2071
        %v2145 = vunpack.c.l.b16 %v2072
        %v2146 = vunpack.c.l.b16 %v2073
        %v2147 = vunpack.c.l.b16 %v2074
        %v2148 = vunpack.c.l.b16 %v2075
        %v2149 = vunpack.c.l.b16 %v2076
        %v2150 = vunpack.c.l.b16 %v2077
        %v2151 = vunpack.c.l.b16 %v2078
        %v2152 = vunpack.c.l.b16 %v2079
        %v2153 = vunpack.c.l.b16 %v2080
        %v2154 = vunpack.c.l.b16 %v2081
        %v2155 = vunpack.c.l.b16 %v2082
        %v2156 = vunpack.c.l.b16 %v2083
        %v2157 = vunpack.c.l.b16 %v2084
        %v2158 = vunpack.c.l.b16 %v2085
        %v2159 = vunpack.c.l.b16 %v2086
        %v2160 = vunpack.c.l.b16 %v2087
        %v2161 = vunpack.c.l.b16 %v2088
        %v2162 = vunpack.c.l.b16 %v2089
        %v2163 = vunpack.c.l.b16 %v2090
        %v2164 = vunpack.c.l.b16 %v2091
        %v2165 = vunpack.c.l.b16 %v2092
        %v2166 = vpack.c.b16 %v2135, %v2134
        %v2167 = vpack.c.b16 %v2137, %v2136
        %v2168 = vpack.c.b16 %v2139, %v2138
        %v2169 = vpack.c.b16 %v2141, %v2140
        %v2170 = vpack.c.b16 %v2143, %v2142
        %v2171 = vpack.c.b16 %v2145, %v2144
        %v2172 = vpack.c.b16 %v2147, %v2146
        %v2173 = vpack.c.b16 %v2149, %v2148
        %v2174 = vpack.c.b16 %v2151, %v2150
        %v2175 = vpack.c.b16 %v2153, %v2152
        %v2176 = vpack.c.b16 %v2155, %v2154
        %v2177 = vpack.c.b16 %v2157, %v2156
        %v2178 = vpack.c.b16 %v2159, %v2158
        %v2179 = vpack.c.b16 %v2161, %v2160
        %v2180 = vpack.c.b16 %v2163, %v2162
        %v2181 = vpack.c.b16 %v2165, %v2164
        %2198 = vmatprep.subr.bf16.mxu0 0
        %2199 = vmatpush1.bf16.msra.mxu0 %v2173
        %2200 = vmatprep.subr.bf16.mxu0 0
        %2201 = vmatpush1.bf16.msra.mxu0 %v2172
        %2202 = vmatprep.subr.bf16.mxu0 0
        %2203 = vmatpush1.bf16.msra.mxu0 %v2171
        %2204 = vmatprep.subr.bf16.mxu0 0
        %2205 = vmatpush1.bf16.msra.mxu0 %v2170
        %2206 = vmatprep.subr.bf16.mxu0 0
        %2207 = vmatpush1.bf16.msra.mxu0 %v2169
        %2208 = vmatprep.subr.bf16.mxu0 0
        %2209 = vmatpush1.bf16.msra.mxu0 %v2168
        %2210 = vmatprep.subr.bf16.mxu0 0
        %2211 = vmatpush1.bf16.msra.mxu0 %v2167
        %2212 = vmatprep.subr.bf16.mxu0 0
        %2213 = vmatpush1.bf16.msra.mxu0 %v2166
        %2214 = vmatprep.subr.bf16.mxu0 0
        %2215 = vmatpush2.bf16.msra.mxu0 %v2181
        %2216 = vmatprep.subr.bf16.mxu0 0
        %2217 = vmatpush2.bf16.msra.mxu0 %v2180
        %2218 = vmatprep.subr.bf16.mxu0 0
        %2219 = vmatpush2.bf16.msra.mxu0 %v2179
        %2220 = vmatprep.subr.bf16.mxu0 0
        %2221 = vmatpush2.bf16.msra.mxu0 %v2178
        %2222 = vmatprep.subr.bf16.mxu0 0
        %2223 = vmatpush2.bf16.msra.mxu0 %v2177
        %2224 = vmatprep.subr.bf16.mxu0 0
        %2225 = vmatpush2.bf16.msra.mxu0 %v2176
        %2226 = vmatprep.subr.bf16.mxu0 0
        %2227 = vmatpush2.bf16.msra.mxu0 %v2175
        %2228 = vmatprep.subr.bf16.mxu0 0
        %2229 = vmatpush2.bf16.msra.mxu0 %v2174
        %2230 = vmatprep.mubr.bf16.mxu0 %v2095
        %2231 = vmatmul.mubr.bf16.gmra.mxu0 %v2094
        %v2232 = vpop.f32.mrf.mxu0
        %v2233 = vadd.f32 %v2100, %v2232
        %v2234 = vpop.f32.mrf.mxu0
        %v2235 = vpop.f32.mrf.mxu0
        %v2236 = vadd.f32 %v2100, %v2235
        %v2237 = vpop.f32.mrf.mxu0
        %2238 = vdwg.mxu0
        %v2239 = vadd.f32 %v2233, %v961
        %v2240 = vadd.f32 %v2236, %v962
        %v2241 = vld [vmem:[%s749] sm:$0x1]
        %v2242 = vld [vmem:[%s757] sm:$0x1]
        %2243 = vadd.xlane.f32.xlu0 %v2239
        %v2244 = vpop.xlane.xlu0 %2243
        %2245 = vadd.xlane.f32.xlu0 %v2240
        %v2246 = vpop.xlane.xlu0 %2245
        %v2247 = vrcp.pop 128.0
        %v2248 = vmul.f32 %v2244, %v2247
        %v2249 = vmul.f32 %v2246, %v2247
        %v2250 = vsub.f32 %v2239, %v2248
        %v2251 = vsub.f32 %v2240, %v2249
        %v2252 = vmul.f32 %v2250, %v2250
        %v2253 = vmul.f32 %v2251, %v2251
        %2254 = vadd.xlane.f32.xlu0 %v2252
        %v2255 = vpop.xlane.xlu0 %2254
        %2256 = vadd.xlane.f32.xlu0 %v2253
        %v2257 = vpop.xlane.xlu0 %2256
        %v2258 = vmul.f32 %v2255, %v2247
        %v2259 = vmul.f32 %v2257, %v2247
        %v2260 = vadd.f32 %v2258, 1e-12
        %v2261 = vadd.f32 %v2259, 1e-12
        %v2262 = vrsqrt.pop %v2260
        %v2263 = vrsqrt.pop %v2261
        %v2264 = vmul.f32 %v2250, %v2262
        %v2265 = vmul.f32 %v2251, %v2263
        %v2267 = vlaneseq
        %v2268 = vshrl.u32 %v2267, 7
        %v2269 = vsub.s32 0, %v2268
        %v2270 = vrot.slane %v2241, %v2269
        %v2272 = vmul.f32 %v2264, %v2270
        %v2273 = vmul.f32 %v2265, %v2270
        %v2275 = vlaneseq
        %v2276 = vshrl.u32 %v2275, 7
        %v2277 = vsub.s32 0, %v2276
        %v2278 = vrot.slane %v2242, %v2277
        %v2280 = vadd.f32 %v2272, %v2278
        %v2281 = vadd.f32 %v2273, %v2278
        %v2282 = vld [vmem:[%s766] sm:$0xff]
        %v2283 = vld [vmem:[%s766 + $0x8] sm:$0xff]
        %v2284 = vld [vmem:[%s766 + $0x10] sm:$0xff]
        %v2285 = vld [vmem:[%s766 + $0x18] sm:$0xff]
        %v2286 = vld [vmem:[%s766 + $0x20] sm:$0xff]
        %v2287 = vld [vmem:[%s766 + $0x28] sm:$0xff]
        %v2288 = vld [vmem:[%s766 + $0x30] sm:$0xff]
        %v2289 = vld [vmem:[%s766 + $0x38] sm:$0xff]
        %v2290 = vld [vmem:[%s766 + $0x40] sm:$0xff]
        %v2291 = vld [vmem:[%s766 + $0x48] sm:$0xff]
        %v2292 = vld [vmem:[%s766 + $0x50] sm:$0xff]
        %v2293 = vld [vmem:[%s766 + $0x58] sm:$0xff]
        %v2294 = vld [vmem:[%s766 + $0x60] sm:$0xff]
        %v2295 = vld [vmem:[%s766 + $0x68] sm:$0xff]
        %v2296 = vld [vmem:[%s766 + $0x70] sm:$0xff]
        %v2297 = vld [vmem:[%s766 + $0x78] sm:$0xff]
        %v2298 = vld [vmem:[%s766 + $0x80] sm:$0xff]
        %v2299 = vld [vmem:[%s766 + $0x88] sm:$0xff]
        %v2300 = vld [vmem:[%s766 + $0x90] sm:$0xff]
        %v2301 = vld [vmem:[%s766 + $0x98] sm:$0xff]
        %v2302 = vld [vmem:[%s766 + $0xa0] sm:$0xff]
        %v2303 = vld [vmem:[%s766 + $0xa8] sm:$0xff]
        %v2304 = vld [vmem:[%s766 + $0xb0] sm:$0xff]
        %v2305 = vld [vmem:[%s766 + $0xb8] sm:$0xff]
        %v2306 = vld [vmem:[%s766 + $0xc0] sm:$0xff]
        %v2307 = vld [vmem:[%s766 + $0xc8] sm:$0xff]
        %v2308 = vld [vmem:[%s766 + $0xd0] sm:$0xff]
        %v2309 = vld [vmem:[%s766 + $0xd8] sm:$0xff]
        %v2310 = vld [vmem:[%s766 + $0xe0] sm:$0xff]
        %v2311 = vld [vmem:[%s766 + $0xe8] sm:$0xff]
        %v2312 = vld [vmem:[%s766 + $0xf0] sm:$0xff]
        %v2313 = vld [vmem:[%s766 + $0xf8] sm:$0xff]
        %v2314 = vld [vmem:[%s907] sm:$0xf]
        %v2315 = vpack.c.bf16 %v2281, %v2280
        %v2317 = vlaneseq
        %v2318 = vshrl.u32 %v2317, 7
        %v2319 = vsub.s32 0, %v2318
        %v2320 = vrot.slane %v2314, %v2319
        %v2321 = vlaneseq
        %v2322 = vshrl.u32 %v2321, 7
        %v2323 = vsub.s32 1, %v2322
        %v2324 = vrot.slane %v2314, %v2323
        %v2325 = vlaneseq
        %v2326 = vshrl.u32 %v2325, 7
        %v2327 = vsub.s32 2, %v2326
        %v2328 = vrot.slane %v2314, %v2327
        %v2329 = vlaneseq
        %v2330 = vshrl.u32 %v2329, 7
        %v2331 = vsub.s32 3, %v2330
        %v2332 = vrot.slane %v2314, %v2331
        %v2369 = vunpack.c.l.b16 %v2282
        %v2370 = vunpack.c.h.b16 %v2282
        %v2371 = vunpack.c.l.b16 %v2283
        %v2372 = vunpack.c.h.b16 %v2283
        %v2373 = vunpack.c.l.b16 %v2284
        %v2374 = vunpack.c.h.b16 %v2284
        %v2375 = vunpack.c.l.b16 %v2285
        %v2376 = vunpack.c.h.b16 %v2285
        %v2377 = vunpack.c.l.b16 %v2286
        %v2378 = vunpack.c.h.b16 %v2286
        %v2379 = vunpack.c.l.b16 %v2287
        %v2380 = vunpack.c.h.b16 %v2287
        %v2381 = vunpack.c.l.b16 %v2288
        %v2382 = vunpack.c.h.b16 %v2288
        %v2383 = vunpack.c.l.b16 %v2289
        %v2384 = vunpack.c.h.b16 %v2289
        %v2385 = vunpack.c.l.b16 %v2290
        %v2386 = vunpack.c.h.b16 %v2290
        %v2387 = vunpack.c.l.b16 %v2291
        %v2388 = vunpack.c.h.b16 %v2291
        %v2389 = vunpack.c.l.b16 %v2292
        %v2390 = vunpack.c.h.b16 %v2292
        %v2391 = vunpack.c.l.b16 %v2293
        %v2392 = vunpack.c.h.b16 %v2293
        %v2393 = vunpack.c.l.b16 %v2294
        %v2394 = vunpack.c.h.b16 %v2294
        %v2395 = vunpack.c.l.b16 %v2295
        %v2396 = vunpack.c.h.b16 %v2295
        %v2397 = vunpack.c.l.b16 %v2296
        %v2398 = vunpack.c.h.b16 %v2296
        %v2399 = vunpack.c.l.b16 %v2297
        %v2400 = vunpack.c.h.b16 %v2297
        %v2401 = vunpack.c.l.b16 %v2298
        %v2402 = vunpack.c.h.b16 %v2298
        %v2403 = vunpack.c.l.b16 %v2299
        %v2404 = vunpack.c.h.b16 %v2299
        %v2405 = vunpack.c.l.b16 %v2300
        %v2406 = vunpack.c.h.b16 %v2300
        %v2407 = vunpack.c.l.b16 %v2301
        %v2408 = vunpack.c.h.b16 %v2301
        %v2409 = vunpack.c.l.b16 %v2302
        %v2410 = vunpack.c.h.b16 %v2302
        %v2411 = vunpack.c.l.b16 %v2303
        %v2412 = vunpack.c.h.b16 %v2303
        %v2413 = vunpack.c.l.b16 %v2304
        %v2414 = vunpack.c.h.b16 %v2304
        %v2415 = vunpack.c.l.b16 %v2305
        %v2416 = vunpack.c.h.b16 %v2305
        %v2417 = vunpack.c.l.b16 %v2306
        %v2418 = vunpack.c.h.b16 %v2306
        %v2419 = vunpack.c.l.b16 %v2307
        %v2420 = vunpack.c.h.b16 %v2307
        %v2421 = vunpack.c.l.b16 %v2308
        %v2422 = vunpack.c.h.b16 %v2308
        %v2423 = vunpack.c.l.b16 %v2309
        %v2424 = vunpack.c.h.b16 %v2309
        %v2425 = vunpack.c.l.b16 %v2310
        %v2426 = vunpack.c.h.b16 %v2310
        %v2427 = vunpack.c.l.b16 %v2311
        %v2428 = vunpack.c.h.b16 %v2311
        %v2429 = vunpack.c.l.b16 %v2312
        %v2430 = vunpack.c.h.b16 %v2312
        %v2431 = vunpack.c.l.b16 %v2313
        %v2432 = vunpack.c.h.b16 %v2313
        %v2433 = vpack.c.b16 %v2373, %v2369
        %v2434 = vpack.c.b16 %v2374, %v2370
        %v2435 = vpack.c.b16 %v2375, %v2371
        %v2436 = vpack.c.b16 %v2376, %v2372
        %v2437 = vpack.c.b16 %v2381, %v2377
        %v2438 = vpack.c.b16 %v2382, %v2378
        %v2439 = vpack.c.b16 %v2383, %v2379
        %v2440 = vpack.c.b16 %v2384, %v2380
        %v2441 = vpack.c.b16 %v2389, %v2385
        %v2442 = vpack.c.b16 %v2390, %v2386
        %v2443 = vpack.c.b16 %v2391, %v2387
        %v2444 = vpack.c.b16 %v2392, %v2388
        %v2445 = vpack.c.b16 %v2397, %v2393
        %v2446 = vpack.c.b16 %v2398, %v2394
        %v2447 = vpack.c.b16 %v2399, %v2395
        %v2448 = vpack.c.b16 %v2400, %v2396
        %v2449 = vpack.c.b16 %v2405, %v2401
        %v2450 = vpack.c.b16 %v2406, %v2402
        %v2451 = vpack.c.b16 %v2407, %v2403
        %v2452 = vpack.c.b16 %v2408, %v2404
        %v2453 = vpack.c.b16 %v2413, %v2409
        %v2454 = vpack.c.b16 %v2414, %v2410
        %v2455 = vpack.c.b16 %v2415, %v2411
        %v2456 = vpack.c.b16 %v2416, %v2412
        %v2457 = vpack.c.b16 %v2421, %v2417
        %v2458 = vpack.c.b16 %v2422, %v2418
        %v2459 = vpack.c.b16 %v2423, %v2419
        %v2460 = vpack.c.b16 %v2424, %v2420
        %v2461 = vpack.c.b16 %v2429, %v2425
        %v2462 = vpack.c.b16 %v2430, %v2426
        %v2463 = vpack.c.b16 %v2431, %v2427
        %v2464 = vpack.c.b16 %v2432, %v2428
        %2497 = vmatprep.subr.bf16.mxu0 %v2462
        %2498 = vmatpush1.bf16.msra.mxu0 %v2461
        %2499 = vmatprep.subr.bf16.mxu0 %v2458
        %2500 = vmatpush1.bf16.msra.mxu0 %v2457
        %2501 = vmatprep.subr.bf16.mxu0 %v2454
        %2502 = vmatpush1.bf16.msra.mxu0 %v2453
        %2503 = vmatprep.subr.bf16.mxu0 %v2450
        %2504 = vmatpush1.bf16.msra.mxu0 %v2449
        %2505 = vmatprep.subr.bf16.mxu0 %v2446
        %2506 = vmatpush1.bf16.msra.mxu0 %v2445
        %2507 = vmatprep.subr.bf16.mxu0 %v2442
        %2508 = vmatpush1.bf16.msra.mxu0 %v2441
        %2509 = vmatprep.subr.bf16.mxu0 %v2438
        %2510 = vmatpush1.bf16.msra.mxu0 %v2437
        %2511 = vmatprep.subr.bf16.mxu0 %v2434
        %2512 = vmatpush1.bf16.msra.mxu0 %v2433
        %2513 = vmatprep.subr.bf16.mxu0 0
        %2514 = vmatpush2.bf16.msra.mxu0 0
        %2515 = vmatprep.subr.bf16.mxu0 0
        %2516 = vmatpush2.bf16.msra.mxu0 0
        %2517 = vmatprep.subr.bf16.mxu0 0
        %2518 = vmatpush2.bf16.msra.mxu0 0
        %2519 = vmatprep.subr.bf16.mxu0 0
        %2520 = vmatpush2.bf16.msra.mxu0 0
        %2521 = vmatprep.subr.bf16.mxu0 0
        %2522 = vmatpush2.bf16.msra.mxu0 0
        %2523 = vmatprep.subr.bf16.mxu0 0
        %2524 = vmatpush2.bf16.msra.mxu0 0
        %2525 = vmatprep.subr.bf16.mxu0 0
        %2526 = vmatpush2.bf16.msra.mxu0 0
        %2527 = vmatprep.subr.bf16.mxu0 0
        %2528 = vmatpush2.bf16.msra.mxu0 0
        %2529 = vmatprep.mubr.bf16.mxu0 0
        %2530 = vmatmul.mubr.bf16.gmra.mxu0 %v2315
        %v2531 = vpop.f32.mrf.mxu0
        %v2532 = vadd.f32 %v2320, %v2531
        %v2533 = vpop.f32.mrf.mxu0
        %v2534 = vadd.f32 %v2324, %v2533
        %v2535 = vpop.f32.mrf.mxu0
        %v2536 = vadd.f32 %v2320, %v2535
        %v2537 = vpop.f32.mrf.mxu0
        %v2538 = vadd.f32 %v2324, %v2537
        %2539 = vdwg.mxu0
        %2540 = vmatprep.subr.bf16.mxu0 %v2464
        %2541 = vmatpush1.bf16.msra.mxu0 %v2463
        %2542 = vmatprep.subr.bf16.mxu0 %v2460
        %2543 = vmatpush1.bf16.msra.mxu0 %v2459
        %2544 = vmatprep.subr.bf16.mxu0 %v2456
        %2545 = vmatpush1.bf16.msra.mxu0 %v2455
        %2546 = vmatprep.subr.bf16.mxu0 %v2452
        %2547 = vmatpush1.bf16.msra.mxu0 %v2451
        %2548 = vmatprep.subr.bf16.mxu0 %v2448
        %2549 = vmatpush1.bf16.msra.mxu0 %v2447
        %2550 = vmatprep.subr.bf16.mxu0 %v2444
        %2551 = vmatpush1.bf16.msra.mxu0 %v2443
        %2552 = vmatprep.subr.bf16.mxu0 %v2440
        %2553 = vmatpush1.bf16.msra.mxu0 %v2439
        %2554 = vmatprep.subr.bf16.mxu0 %v2436
        %2555 = vmatpush1.bf16.msra.mxu0 %v2435
        %2556 = vmatprep.subr.bf16.mxu0 0
        %2557 = vmatpush2.bf16.msra.mxu0 0
        %2558 = vmatprep.subr.bf16.mxu0 0
        %2559 = vmatpush2.bf16.msra.mxu0 0
        %2560 = vmatprep.subr.bf16.mxu0 0
        %2561 = vmatpush2.bf16.msra.mxu0 0
        %2562 = vmatprep.subr.bf16.mxu0 0
        %2563 = vmatpush2.bf16.msra.mxu0 0
        %2564 = vmatprep.subr.bf16.mxu0 0
        %2565 = vmatpush2.bf16.msra.mxu0 0
        %2566 = vmatprep.subr.bf16.mxu0 0
        %2567 = vmatpush2.bf16.msra.mxu0 0
        %2568 = vmatprep.subr.bf16.mxu0 0
        %2569 = vmatpush2.bf16.msra.mxu0 0
        %2570 = vmatprep.subr.bf16.mxu0 0
        %2571 = vmatpush2.bf16.msra.mxu0 0
        %2572 = vmatprep.mubr.bf16.mxu0 0
        %2573 = vmatmul.mubr.bf16.gmra.mxu0 %v2315
        %v2574 = vpop.f32.mrf.mxu0
        %v2575 = vadd.f32 %v2328, %v2574
        %v2576 = vpop.f32.mrf.mxu0
        %v2577 = vadd.f32 %v2332, %v2576
        %v2578 = vpop.f32.mrf.mxu0
        %v2579 = vadd.f32 %v2328, %v2578
        %v2580 = vpop.f32.mrf.mxu0
        %v2581 = vadd.f32 %v2332, %v2580
        %2582 = vdwg.mxu0
        %v2583 = vmul.f32 %v2532, 0.5
        %v2584 = vmul.f32 %v2534, 0.5
        %v2585 = vmul.f32 %v2575, 0.5
        %v2586 = vmul.f32 %v2577, 0.5
        %v2587 = vmul.f32 %v2536, 0.5
        %v2588 = vmul.f32 %v2538, 0.5
        %v2589 = vmul.f32 %v2579, 0.5
        %v2590 = vmul.f32 %v2581, 0.5
        %v2591 = vmul.f32 %v2532, 0.044715
        %v2592 = vmul.f32 %v2534, 0.044715
        %v2593 = vmul.f32 %v2575, 0.044715
        %v2594 = vmul.f32 %v2577, 0.044715
        %v2595 = vmul.f32 %v2536, 0.044715
        %v2596 = vmul.f32 %v2538, 0.044715
        %v2597 = vmul.f32 %v2579, 0.044715
        %v2598 = vmul.f32 %v2581, 0.044715
        %v2599 = vmul.f32 %v2591, %v2532
        %v2600 = vmul.f32 %v2592, %v2534
        %v2601 = vmul.f32 %v2593, %v2575
        %v2602 = vmul.f32 %v2594, %v2577
        %v2603 = vmul.f32 %v2595, %v2536
        %v2604 = vmul.f32 %v2596, %v2538
        %v2605 = vmul.f32 %v2597, %v2579
        %v2606 = vmul.f32 %v2598, %v2581
        %v2607 = vmul.f32 %v2599, %v2532
        %v2608 = vmul.f32 %v2600, %v2534
        %v2609 = vmul.f32 %v2601, %v2575
        %v2610 = vmul.f32 %v2602, %v2577
        %v2611 = vmul.f32 %v2603, %v2536
        %v2612 = vmul.f32 %v2604, %v2538
        %v2613 = vmul.f32 %v2605, %v2579
        %v2614 = vmul.f32 %v2606, %v2581
        %v2615 = vadd.f32 %v2532, %v2607
        %v2616 = vadd.f32 %v2534, %v2608
        %v2617 = vadd.f32 %v2575, %v2609
        %v2618 = vadd.f32 %v2577, %v2610
        %v2619 = vadd.f32 %v2536, %v2611
        %v2620 = vadd.f32 %v2538, %v2612
        %v2621 = vadd.f32 %v2579, %v2613
        %v2622 = vadd.f32 %v2581, %v2614
        %v2623 = vmul.f32 %v2615, 0.7978846
        %v2624 = vmul.f32 %v2616, 0.7978846
        %v2625 = vmul.f32 %v2617, 0.7978846
        %v2626 = vmul.f32 %v2618, 0.7978846
        %v2627 = vmul.f32 %v2619, 0.7978846
        %v2628 = vmul.f32 %v2620, 0.7978846
        %v2629 = vmul.f32 %v2621, 0.7978846
        %v2630 = vmul.f32 %v2622, 0.7978846
        %v2631 = vtanh.pop %v2623
        %v2632 = vtanh.pop %v2624
        %v2633 = vtanh.pop %v2625
        %v2634 = vtanh.pop %v2626
        %v2635 = vtanh.pop %v2627
        %v2636 = vtanh.pop %v2628
        %v2637 = vtanh.pop %v2629
        %v2638 = vtanh.pop %v2630
        %v2639 = vadd.f32 %v2631, 1.0
        %v2640 = vadd.f32 %v2632, 1.0
        %v2641 = vadd.f32 %v2633, 1.0
        %v2642 = vadd.f32 %v2634, 1.0
        %v2643 = vadd.f32 %v2635, 1.0
        %v2644 = vadd.f32 %v2636, 1.0
        %v2645 = vadd.f32 %v2637, 1.0
        %v2646 = vadd.f32 %v2638, 1.0
        %v2647 = vmul.f32 %v2583, %v2639
        %v2648 = vmul.f32 %v2584, %v2640
        %v2649 = vmul.f32 %v2585, %v2641
        %v2650 = vmul.f32 %v2586, %v2642
        %v2651 = vmul.f32 %v2587, %v2643
        %v2652 = vmul.f32 %v2588, %v2644
        %v2653 = vmul.f32 %v2589, %v2645
        %v2654 = vmul.f32 %v2590, %v2646
        %v2655 = vld [vmem:[%s775] sm:$0xf]
        %v2656 = vld [vmem:[%s775 + $0x4] sm:$0xf]
        %v2657 = vld [vmem:[%s775 + $0x8] sm:$0xf]
        %v2658 = vld [vmem:[%s775 + $0xc] sm:$0xf]
        %v2659 = vld [vmem:[%s775 + $0x10] sm:$0xf]
        %v2660 = vld [vmem:[%s775 + $0x14] sm:$0xf]
        %v2661 = vld [vmem:[%s775 + $0x18] sm:$0xf]
        %v2662 = vld [vmem:[%s775 + $0x1c] sm:$0xf]
        %v2663 = vld [vmem:[%s775 + $0x20] sm:$0xf]
        %v2664 = vld [vmem:[%s775 + $0x24] sm:$0xf]
        %v2665 = vld [vmem:[%s775 + $0x28] sm:$0xf]
        %v2666 = vld [vmem:[%s775 + $0x2c] sm:$0xf]
        %v2667 = vld [vmem:[%s775 + $0x30] sm:$0xf]
        %v2668 = vld [vmem:[%s775 + $0x34] sm:$0xf]
        %v2669 = vld [vmem:[%s775 + $0x38] sm:$0xf]
        %v2670 = vld [vmem:[%s775 + $0x3c] sm:$0xf]
        %v2671 = vld [vmem:[%s775 + $0x40] sm:$0xf]
        %v2672 = vld [vmem:[%s775 + $0x44] sm:$0xf]
        %v2673 = vld [vmem:[%s775 + $0x48] sm:$0xf]
        %v2674 = vld [vmem:[%s775 + $0x4c] sm:$0xf]
        %v2675 = vld [vmem:[%s775 + $0x50] sm:$0xf]
        %v2676 = vld [vmem:[%s775 + $0x54] sm:$0xf]
        %v2677 = vld [vmem:[%s775 + $0x58] sm:$0xf]
        %v2678 = vld [vmem:[%s775 + $0x5c] sm:$0xf]
        %v2679 = vld [vmem:[%s775 + $0x60] sm:$0xf]
        %v2680 = vld [vmem:[%s775 + $0x64] sm:$0xf]
        %v2681 = vld [vmem:[%s775 + $0x68] sm:$0xf]
        %v2682 = vld [vmem:[%s775 + $0x6c] sm:$0xf]
        %v2683 = vld [vmem:[%s775 + $0x70] sm:$0xf]
        %v2684 = vld [vmem:[%s775 + $0x74] sm:$0xf]
        %v2685 = vld [vmem:[%s775 + $0x78] sm:$0xf]
        %v2686 = vld [vmem:[%s775 + $0x7c] sm:$0xf]
        %v2687 = vld [vmem:[%s775 + $0x80] sm:$0xf]
        %v2688 = vld [vmem:[%s775 + $0x84] sm:$0xf]
        %v2689 = vld [vmem:[%s775 + $0x88] sm:$0xf]
        %v2690 = vld [vmem:[%s775 + $0x8c] sm:$0xf]
        %v2691 = vld [vmem:[%s775 + $0x90] sm:$0xf]
        %v2692 = vld [vmem:[%s775 + $0x94] sm:$0xf]
        %v2693 = vld [vmem:[%s775 + $0x98] sm:$0xf]
        %v2694 = vld [vmem:[%s775 + $0x9c] sm:$0xf]
        %v2695 = vld [vmem:[%s775 + $0xa0] sm:$0xf]
        %v2696 = vld [vmem:[%s775 + $0xa4] sm:$0xf]
        %v2697 = vld [vmem:[%s775 + $0xa8] sm:$0xf]
        %v2698 = vld [vmem:[%s775 + $0xac] sm:$0xf]
        %v2699 = vld [vmem:[%s775 + $0xb0] sm:$0xf]
        %v2700 = vld [vmem:[%s775 + $0xb4] sm:$0xf]
        %v2701 = vld [vmem:[%s775 + $0xb8] sm:$0xf]
        %v2702 = vld [vmem:[%s775 + $0xbc] sm:$0xf]
        %v2703 = vld [vmem:[%s775 + $0xc0] sm:$0xf]
        %v2704 = vld [vmem:[%s775 + $0xc4] sm:$0xf]
        %v2705 = vld [vmem:[%s775 + $0xc8] sm:$0xf]
        %v2706 = vld [vmem:[%s775 + $0xcc] sm:$0xf]
        %v2707 = vld [vmem:[%s775 + $0xd0] sm:$0xf]
        %v2708 = vld [vmem:[%s775 + $0xd4] sm:$0xf]
        %v2709 = vld [vmem:[%s775 + $0xd8] sm:$0xf]
        %v2710 = vld [vmem:[%s775 + $0xdc] sm:$0xf]
        %v2711 = vld [vmem:[%s775 + $0xe0] sm:$0xf]
        %v2712 = vld [vmem:[%s775 + $0xe4] sm:$0xf]
        %v2713 = vld [vmem:[%s775 + $0xe8] sm:$0xf]
        %v2714 = vld [vmem:[%s775 + $0xec] sm:$0xf]
        %v2715 = vld [vmem:[%s775 + $0xf0] sm:$0xf]
        %v2716 = vld [vmem:[%s775 + $0xf4] sm:$0xf]
        %v2717 = vld [vmem:[%s775 + $0xf8] sm:$0xf]
        %v2718 = vld [vmem:[%s775 + $0xfc] sm:$0xf]
        %v2719 = vld [vmem:[%s910] sm:$0x1]
        %v2720 = vpack.c.bf16 %v2651, %v2647
        %v2721 = vpack.c.bf16 %v2652, %v2648
        %v2722 = vpack.c.bf16 %v2653, %v2649
        %v2723 = vpack.c.bf16 %v2654, %v2650
        %v2725 = vlaneseq
        %v2726 = vshrl.u32 %v2725, 7
        %v2727 = vsub.s32 0, %v2726
        %v2728 = vrot.slane %v2719, %v2727
        %v2794 = vunpack.c.l.b16 %v2655
        %v2795 = vunpack.c.l.b16 %v2656
        %v2796 = vunpack.c.l.b16 %v2657
        %v2797 = vunpack.c.l.b16 %v2658
        %v2798 = vunpack.c.l.b16 %v2659
        %v2799 = vunpack.c.l.b16 %v2660
        %v2800 = vunpack.c.l.b16 %v2661
        %v2801 = vunpack.c.l.b16 %v2662
        %v2802 = vunpack.c.l.b16 %v2663
        %v2803 = vunpack.c.l.b16 %v2664
        %v2804 = vunpack.c.l.b16 %v2665
        %v2805 = vunpack.c.l.b16 %v2666
        %v2806 = vunpack.c.l.b16 %v2667
        %v2807 = vunpack.c.l.b16 %v2668
        %v2808 = vunpack.c.l.b16 %v2669
        %v2809 = vunpack.c.l.b16 %v2670
        %v2810 = vunpack.c.l.b16 %v2671
        %v2811 = vunpack.c.l.b16 %v2672
        %v2812 = vunpack.c.l.b16 %v2673
        %v2813 = vunpack.c.l.b16 %v2674
        %v2814 = vunpack.c.l.b16 %v2675
        %v2815 = vunpack.c.l.b16 %v2676
        %v2816 = vunpack.c.l.b16 %v2677
        %v2817 = vunpack.c.l.b16 %v2678
        %v2818 = vunpack.c.l.b16 %v2679
        %v2819 = vunpack.c.l.b16 %v2680
        %v2820 = vunpack.c.l.b16 %v2681
        %v2821 = vunpack.c.l.b16 %v2682
        %v2822 = vunpack.c.l.b16 %v2683
        %v2823 = vunpack.c.l.b16 %v2684
        %v2824 = vunpack.c.l.b16 %v2685
        %v2825 = vunpack.c.l.b16 %v2686
        %v2826 = vunpack.c.l.b16 %v2687
        %v2827 = vunpack.c.l.b16 %v2688
        %v2828 = vunpack.c.l.b16 %v2689
        %v2829 = vunpack.c.l.b16 %v2690
        %v2830 = vunpack.c.l.b16 %v2691
        %v2831 = vunpack.c.l.b16 %v2692
        %v2832 = vunpack.c.l.b16 %v2693
        %v2833 = vunpack.c.l.b16 %v2694
        %v2834 = vunpack.c.l.b16 %v2695
        %v2835 = vunpack.c.l.b16 %v2696
        %v2836 = vunpack.c.l.b16 %v2697
        %v2837 = vunpack.c.l.b16 %v2698
        %v2838 = vunpack.c.l.b16 %v2699
        %v2839 = vunpack.c.l.b16 %v2700
        %v2840 = vunpack.c.l.b16 %v2701
        %v2841 = vunpack.c.l.b16 %v2702
        %v2842 = vunpack.c.l.b16 %v2703
        %v2843 = vunpack.c.l.b16 %v2704
        %v2844 = vunpack.c.l.b16 %v2705
        %v2845 = vunpack.c.l.b16 %v2706
        %v2846 = vunpack.c.l.b16 %v2707
        %v2847 = vunpack.c.l.b16 %v2708
        %v2848 = vunpack.c.l.b16 %v2709
        %v2849 = vunpack.c.l.b16 %v2710
        %v2850 = vunpack.c.l.b16 %v2711
        %v2851 = vunpack.c.l.b16 %v2712
        %v2852 = vunpack.c.l.b16 %v2713
        %v2853 = vunpack.c.l.b16 %v2714
        %v2854 = vunpack.c.l.b16 %v2715
        %v2855 = vunpack.c.l.b16 %v2716
        %v2856 = vunpack.c.l.b16 %v2717
        %v2857 = vunpack.c.l.b16 %v2718
        %v2858 = vpack.c.b16 %v2795, %v2794
        %v2859 = vpack.c.b16 %v2797, %v2796
        %v2860 = vpack.c.b16 %v2799, %v2798
        %v2861 = vpack.c.b16 %v2801, %v2800
        %v2862 = vpack.c.b16 %v2803, %v2802
        %v2863 = vpack.c.b16 %v2805, %v2804
        %v2864 = vpack.c.b16 %v2807, %v2806
        %v2865 = vpack.c.b16 %v2809, %v2808
        %v2866 = vpack.c.b16 %v2811, %v2810
        %v2867 = vpack.c.b16 %v2813, %v2812
        %v2868 = vpack.c.b16 %v2815, %v2814
        %v2869 = vpack.c.b16 %v2817, %v2816
        %v2870 = vpack.c.b16 %v2819, %v2818
        %v2871 = vpack.c.b16 %v2821, %v2820
        %v2872 = vpack.c.b16 %v2823, %v2822
        %v2873 = vpack.c.b16 %v2825, %v2824
        %v2874 = vpack.c.b16 %v2827, %v2826
        %v2875 = vpack.c.b16 %v2829, %v2828
        %v2876 = vpack.c.b16 %v2831, %v2830
        %v2877 = vpack.c.b16 %v2833, %v2832
        %v2878 = vpack.c.b16 %v2835, %v2834
        %v2879 = vpack.c.b16 %v2837, %v2836
        %v2880 = vpack.c.b16 %v2839, %v2838
        %v2881 = vpack.c.b16 %v2841, %v2840
        %v2882 = vpack.c.b16 %v2843, %v2842
        %v2883 = vpack.c.b16 %v2845, %v2844
        %v2884 = vpack.c.b16 %v2847, %v2846
        %v2885 = vpack.c.b16 %v2849, %v2848
        %v2886 = vpack.c.b16 %v2851, %v2850
        %v2887 = vpack.c.b16 %v2853, %v2852
        %v2888 = vpack.c.b16 %v2855, %v2854
        %v2889 = vpack.c.b16 %v2857, %v2856
        %2922 = vmatprep.subr.bf16.mxu0 0
        %2923 = vmatpush1.bf16.msra.mxu0 %v2865
        %2924 = vmatprep.subr.bf16.mxu0 0
        %2925 = vmatpush1.bf16.msra.mxu0 %v2864
        %2926 = vmatprep.subr.bf16.mxu0 0
        %2927 = vmatpush1.bf16.msra.mxu0 %v2863
        %2928 = vmatprep.subr.bf16.mxu0 0
        %2929 = vmatpush1.bf16.msra.mxu0 %v2862
        %2930 = vmatprep.subr.bf16.mxu0 0
        %2931 = vmatpush1.bf16.msra.mxu0 %v2861
        %2932 = vmatprep.subr.bf16.mxu0 0
        %2933 = vmatpush1.bf16.msra.mxu0 %v2860
        %2934 = vmatprep.subr.bf16.mxu0 0
        %2935 = vmatpush1.bf16.msra.mxu0 %v2859
        %2936 = vmatprep.subr.bf16.mxu0 0
        %2937 = vmatpush1.bf16.msra.mxu0 %v2858
        %2938 = vmatprep.subr.bf16.mxu0 0
        %2939 = vmatpush2.bf16.msra.mxu0 %v2873
        %2940 = vmatprep.subr.bf16.mxu0 0
        %2941 = vmatpush2.bf16.msra.mxu0 %v2872
        %2942 = vmatprep.subr.bf16.mxu0 0
        %2943 = vmatpush2.bf16.msra.mxu0 %v2871
        %2944 = vmatprep.subr.bf16.mxu0 0
        %2945 = vmatpush2.bf16.msra.mxu0 %v2870
        %2946 = vmatprep.subr.bf16.mxu0 0
        %2947 = vmatpush2.bf16.msra.mxu0 %v2869
        %2948 = vmatprep.subr.bf16.mxu0 0
        %2949 = vmatpush2.bf16.msra.mxu0 %v2868
        %2950 = vmatprep.subr.bf16.mxu0 0
        %2951 = vmatpush2.bf16.msra.mxu0 %v2867
        %2952 = vmatprep.subr.bf16.mxu0 0
        %2953 = vmatpush2.bf16.msra.mxu0 %v2866
        %2954 = vmatprep.mubr.bf16.mxu0 %v2721
        %2955 = vmatmul.mubr.bf16.gmra.mxu0 %v2720
        %v2956 = vpop.f32.mrf.mxu0
        %v2957 = vadd.f32 %v2728, %v2956
        %v2958 = vpop.f32.mrf.mxu0
        %v2959 = vpop.f32.mrf.mxu0
        %v2960 = vadd.f32 %v2728, %v2959
        %v2961 = vpop.f32.mrf.mxu0
        %2962 = vdwg.mxu0
        %2963 = vmatprep.subr.bf16.mxu0 0
        %2964 = vmatpush1.bf16.msra.mxu0 %v2881
        %2965 = vmatprep.subr.bf16.mxu0 0
        %2966 = vmatpush1.bf16.msra.mxu0 %v2880
        %2967 = vmatprep.subr.bf16.mxu0 0
        %2968 = vmatpush1.bf16.msra.mxu0 %v2879
        %2969 = vmatprep.subr.bf16.mxu0 0
        %2970 = vmatpush1.bf16.msra.mxu0 %v2878
        %2971 = vmatprep.subr.bf16.mxu0 0
        %2972 = vmatpush1.bf16.msra.mxu0 %v2877
        %2973 = vmatprep.subr.bf16.mxu0 0
        %2974 = vmatpush1.bf16.msra.mxu0 %v2876
        %2975 = vmatprep.subr.bf16.mxu0 0
        %2976 = vmatpush1.bf16.msra.mxu0 %v2875
        %2977 = vmatprep.subr.bf16.mxu0 0
        %2978 = vmatpush1.bf16.msra.mxu0 %v2874
        %2979 = vmatprep.subr.bf16.mxu0 0
        %2980 = vmatpush2.bf16.msra.mxu0 %v2889
        %2981 = vmatprep.subr.bf16.mxu0 0
        %2982 = vmatpush2.bf16.msra.mxu0 %v2888
        %2983 = vmatprep.subr.bf16.mxu0 0
        %2984 = vmatpush2.bf16.msra.mxu0 %v2887
        %2985 = vmatprep.subr.bf16.mxu0 0
        %2986 = vmatpush2.bf16.msra.mxu0 %v2886
        %2987 = vmatprep.subr.bf16.mxu0 0
        %2988 = vmatpush2.bf16.msra.mxu0 %v2885
        %2989 = vmatprep.subr.bf16.mxu0 0
        %2990 = vmatpush2.bf16.msra.mxu0 %v2884
        %2991 = vmatprep.subr.bf16.mxu0 0
        %2992 = vmatpush2.bf16.msra.mxu0 %v2883
        %2993 = vmatprep.subr.bf16.mxu0 0
        %2994 = vmatpush2.bf16.msra.mxu0 %v2882
        %2995 = vmatprep.mubr.bf16.mxu0 %v2723
        %2996 = vmatmul.mubr.bf16.gmra.mxu0 %v2722
        %v2997 = vpop.f32.mrf.mxu0
        %v2998 = vadd.f32 %v2957, %v2997
        %v2999 = vpop.f32.mrf.mxu0
        %v3000 = vpop.f32.mrf.mxu0
        %v3001 = vadd.f32 %v2960, %v3000
        %v3002 = vpop.f32.mrf.mxu0
        %3003 = vdwg.mxu0
        %v3004 = vadd.f32 %v2998, %v2280
        %v3005 = vadd.f32 %v3001, %v2281
        %v3006 = vld [vmem:[%s783] sm:$0x1]
        %v3007 = vld [vmem:[%s791] sm:$0x1]
        %3008 = vadd.xlane.f32.xlu0 %v3004
        %v3009 = vpop.xlane.xlu0 %3008
        %3010 = vadd.xlane.f32.xlu0 %v3005
        %v3011 = vpop.xlane.xlu0 %3010
        %v3012 = vmul.f32 %v3009, %v2247
        %v3013 = vmul.f32 %v3011, %v2247
        %v3014 = vsub.f32 %v3004, %v3012
        %v3015 = vsub.f32 %v3005, %v3013
        %v3016 = vmul.f32 %v3014, %v3014
        %v3017 = vmul.f32 %v3015, %v3015
        %3018 = vadd.xlane.f32.xlu0 %v3016
        %v3019 = vpop.xlane.xlu0 %3018
        %3020 = vadd.xlane.f32.xlu0 %v3017
        %v3021 = vpop.xlane.xlu0 %3020
        %v3022 = vmul.f32 %v3019, %v2247
        %v3023 = vmul.f32 %v3021, %v2247
        %v3024 = vadd.f32 %v3022, 1e-12
        %v3025 = vadd.f32 %v3023, 1e-12
        %v3026 = vrsqrt.pop %v3024
        %v3027 = vrsqrt.pop %v3025
        %v3028 = vmul.f32 %v3014, %v3026
        %v3029 = vmul.f32 %v3015, %v3027
        %v3031 = vlaneseq
        %v3032 = vshrl.u32 %v3031, 7
        %v3033 = vsub.s32 0, %v3032
        %v3034 = vrot.slane %v3006, %v3033
        %v3036 = vmul.f32 %v3028, %v3034
        %v3037 = vmul.f32 %v3029, %v3034
        %v3039 = vlaneseq
        %v3040 = vshrl.u32 %v3039, 7
        %v3041 = vsub.s32 0, %v3040
        %v3042 = vrot.slane %v3007, %v3041
        %v3044 = vadd.f32 %v3036, %v3042
        %v3045 = vadd.f32 %v3037, %v3042
        %3046 = vst [vmem:[#allocation2] sm:$0xff] %v3044
        %3047 = vst [vmem:[#allocation2 + $0x8] sm:$0xff] %v3045
        %p3048 = scmp.eq.s32.totalorder %s32, 1
        // Predicated region
        $region141: #{salary_predictor_forward.1} parent=91 // pred_check
          %p3049 = pneg %p3048
        $region142: #{salary_predictor_forward.1} parent=91 // pred_check_branch
          %3051 = sbr.rel (%p3049) target = $region144
        $region143: #{salary_predictor_forward.1} parent=91 // pred_region
          %v3052 = vld [vmem:[#allocation15] sm:$0xf]
          %v3053 = vld [vmem:[#allocation15 + $0x4] sm:$0xf]
          %v3054 = vld [vmem:[#allocation15 + $0x8] sm:$0xf]
          %v3055 = vld [vmem:[#allocation15 + $0xc] sm:$0xf]
          %v3056 = vld [vmem:[#allocation15 + $0x10] sm:$0xf]
          %v3057 = vld [vmem:[#allocation15 + $0x14] sm:$0xf]
          %v3058 = vld [vmem:[#allocation15 + $0x18] sm:$0xf]
          %v3059 = vld [vmem:[#allocation15 + $0x1c] sm:$0xf]
          %v3060 = vld [vmem:[#allocation15 + $0x20] sm:$0xf]
          %v3061 = vld [vmem:[#allocation15 + $0x24] sm:$0xf]
          %v3062 = vld [vmem:[#allocation15 + $0x28] sm:$0xf]
          %v3063 = vld [vmem:[#allocation15 + $0x2c] sm:$0xf]
          %v3064 = vld [vmem:[#allocation15 + $0x30] sm:$0xf]
          %v3065 = vld [vmem:[#allocation15 + $0x34] sm:$0xf]
          %v3066 = vld [vmem:[#allocation15 + $0x38] sm:$0xf]
          %v3067 = vld [vmem:[#allocation15 + $0x3c] sm:$0xf]
          %v3068 = vld [vmem:[#allocation16] sm:$0x1]
          %v3069 = vpack.c.bf16 %v3045, %v3044
          %v3071 = vlaneseq
          %v3072 = vshrl.u32 %v3071, 7
          %v3073 = vsub.s32 0, %v3072
          %v3074 = vrot.slane %v3068, %v3073
          %v3092 = vunpack.c.l.b16 %v3052
          %v3093 = vunpack.c.l.b16 %v3053
          %v3094 = vunpack.c.l.b16 %v3054
          %v3095 = vunpack.c.l.b16 %v3055
          %v3096 = vunpack.c.l.b16 %v3056
          %v3097 = vunpack.c.l.b16 %v3057
          %v3098 = vunpack.c.l.b16 %v3058
          %v3099 = vunpack.c.l.b16 %v3059
          %v3100 = vunpack.c.l.b16 %v3060
          %v3101 = vunpack.c.l.b16 %v3061
          %v3102 = vunpack.c.l.b16 %v3062
          %v3103 = vunpack.c.l.b16 %v3063
          %v3104 = vunpack.c.l.b16 %v3064
          %v3105 = vunpack.c.l.b16 %v3065
          %v3106 = vunpack.c.l.b16 %v3066
          %v3107 = vunpack.c.l.b16 %v3067
          %v3108 = vpack.c.b16 %v3093, %v3092
          %v3109 = vpack.c.b16 %v3095, %v3094
          %v3110 = vpack.c.b16 %v3097, %v3096
          %v3111 = vpack.c.b16 %v3099, %v3098
          %v3112 = vpack.c.b16 %v3101, %v3100
          %v3113 = vpack.c.b16 %v3103, %v3102
          %v3114 = vpack.c.b16 %v3105, %v3104
          %v3115 = vpack.c.b16 %v3107, %v3106
          %3124 = vmatprep.subr.bf16.mxu0 0
          %3125 = vmatpush1.bf16.msra.mxu0 %v3115
          %3126 = vmatprep.subr.bf16.mxu0 0
          %3127 = vmatpush1.bf16.msra.mxu0 %v3114
          %3128 = vmatprep.subr.bf16.mxu0 0
          %3129 = vmatpush1.bf16.msra.mxu0 %v3113
          %3130 = vmatprep.subr.bf16.mxu0 0
          %3131 = vmatpush1.bf16.msra.mxu0 %v3112
          %3132 = vmatprep.subr.bf16.mxu0 0
          %3133 = vmatpush1.bf16.msra.mxu0 %v3111
          %3134 = vmatprep.subr.bf16.mxu0 0
          %3135 = vmatpush1.bf16.msra.mxu0 %v3110
          %3136 = vmatprep.subr.bf16.mxu0 0
          %3137 = vmatpush1.bf16.msra.mxu0 %v3109
          %3138 = vmatprep.subr.bf16.mxu0 0
          %3139 = vmatpush1.bf16.msra.mxu0 %v3108
          %3140 = vmatprep.subr.bf16.mxu0 0
          %3141 = vmatpush2.bf16.msra.mxu0 0
          %3142 = vmatprep.subr.bf16.mxu0 0
          %3143 = vmatpush2.bf16.msra.mxu0 0
          %3144 = vmatprep.subr.bf16.mxu0 0
          %3145 = vmatpush2.bf16.msra.mxu0 0
          %3146 = vmatprep.subr.bf16.mxu0 0
          %3147 = vmatpush2.bf16.msra.mxu0 0
          %3148 = vmatprep.subr.bf16.mxu0 0
          %3149 = vmatpush2.bf16.msra.mxu0 0
          %3150 = vmatprep.subr.bf16.mxu0 0
          %3151 = vmatpush2.bf16.msra.mxu0 0
          %3152 = vmatprep.subr.bf16.mxu0 0
          %3153 = vmatpush2.bf16.msra.mxu0 0
          %3154 = vmatprep.subr.bf16.mxu0 0
          %3155 = vmatpush2.bf16.msra.mxu0 0
          %3156 = vmatprep.mubr.bf16.mxu0 0
          %3157 = vmatmul.mubr.bf16.gmra.mxu0 %v3069
          %v3158 = vpop.f32.mrf.mxu0
          %v3159 = vadd.f32 %v3074, %v3158
          %v3160 = vpop.f32.mrf.mxu0
          %v3161 = vpop.f32.mrf.mxu0
          %v3162 = vadd.f32 %v3074, %v3161
          %v3163 = vpop.f32.mrf.mxu0
          %3164 = vdwg.mxu0
          %3165 = vst [vmem:[%s18] sm:$0xff] %v3159
          %3166 = vst [vmem:[%s18 + $0x8] sm:$0xff] %v3162
        $region144: #{salary_predictor_forward.1} parent=91 // pred_fallthru
          _
        // Predicated region
        $region145: #{salary_predictor_forward.1} parent=91 // pred_check
          %p3167 = pneg %p483
        $region146: #{salary_predictor_forward.1} parent=91 // pred_check_branch
          %3169 = sbr.rel (%p3167) target = $region148
        $region147: #{salary_predictor_forward.1} parent=91 // pred_region
          _
        $region148: #{salary_predictor_forward.1} parent=91 // pred_fallthru
          _
        // Predicated region
        $region149: #{salary_predictor_forward.1} parent=91 // pred_check
          %p3170 = pneg %p483
        $region150: #{salary_predictor_forward.1} parent=91 // pred_check_branch
          %3172 = sbr.rel (%p3170) target = $region152
        $region151: #{salary_predictor_forward.1} parent=91 // pred_region
          _
        $region152: #{salary_predictor_forward.1} parent=91 // pred_fallthru
          _
      $region92: #{salary_predictor_forward.1} parent=5 // pred_fallthru
        _
      %p3173 = scmp.le.s32.totalorder 2, %s27
      // Predicated region
      $region153: #{salary_predictor_forward.1} parent=5 // pred_check
        %p3174 = pneg %p3173
      $region154: #{salary_predictor_forward.1} parent=5 // pred_check_branch
        %3176 = sbr.rel (%p3174) target = $region156
      $region155: #{salary_predictor_forward.1} parent=5 // pred_region
        %s3177 = ssub.s32 %s27, 2
      $region156: #{salary_predictor_forward.1} parent=5 // pred_fallthru
        _
    $region6: #{salary_predictor_forward.1} parent=1 // loop_footer
      %s31 = sadd.s32 1, %s27
    $region7: #{salary_predictor_forward.1} parent=1 // loop_footer_branch
      %26 = sbr.rel target = $region3
    $region8: #{salary_predictor_forward.1} parent=1 // loop_exit
      _
    %3178 = vsyncpa [#allocation5], 1
    %s3179 = scalar_lea.sflag [#allocation5], 1
    %3180 = vsyncpa %s3179, 1
    %3181 = vsyncpa [#allocation7], 1
    %3182 = vsyncpa [#allocation17], 1

</llo_original>
